<compile_context>
chip_gen: v7x
topology: tpu7x:2x2x1
jax: 0.10.0
libtpu: 0.0.40
codegen_flags: <defaults>
</compile_context>

<pallas_src>
import functools

import jax
import jax.numpy as jnp
from jax.experimental import pallas as pl
from jax.experimental.pallas import tpu as pltpu

# ----------------------------- config (cfg) ---------------------------------
BATCH = 2
SAMPLE_RATE = 16000
CW_LEN = 16                                  # ms -> 256 samples
CONV_LAYERS = [(16, 31, 1), (16, 5, 1)]      # (out_channels, kernel_size, stride)
CONV_POOL = [2, 2]
FC_LAYERS = [64, 64]
NUM_CLASSES = 10
MIN_LOW_HZ = 50.0
MIN_BAND_HZ = 50.0
LN_EPS = 1e-5

L_IN = CW_LEN * SAMPLE_RATE // 1000          # 256
C0, K0, _ = CONV_LAYERS[0]                   # 16, 31
C1, K1, _ = CONV_LAYERS[1]                   # 16, 5
PAD0 = (K0 - 1) // 2                         # 15
L0 = L_IN + 2 * PAD0 - K0 + 1                # 256 (conv0 output length)
L0P = L0 // CONV_POOL[0]                     # 128
L1 = L0P - K1 + 1                            # 124 (conv1 output length)
L1P = L1 // CONV_POOL[1]                     # 62
CONV_OUTPUT_SIZE = C1 * L1P                  # 992

assert CONV_POOL == [2, 2] and L0 % 2 == 0 and L1 % 2 == 0


# --------------------------- SincConv filter glue ---------------------------
def to_mel(hz):
    return 2595.0 * jnp.log10(1.0 + hz / 700.0)


def to_hz(mel):
    return 700.0 * (10.0 ** (mel / 2595.0) - 1.0)


def make_sinc_filters(low_hz_, band_hz_, kernel_size,
                      sample_rate=SAMPLE_RATE,
                      min_low_hz=MIN_LOW_HZ, min_band_hz=MIN_BAND_HZ):
    """Replicates SincConv.forward() filter construction verbatim (incl. the (n + 1e-8)
    center-tap behaviour of the given spec).  Returns (C_out, K)."""
    K = kernel_size
    n_idx = jnp.arange(K, dtype=jnp.float32)
    window_ = 0.54 - 0.46 * jnp.cos(2.0 * jnp.pi * n_idx / (K - 1))     # hamming, periodic=False
    n_ = (2.0 * jnp.pi * jnp.arange(-(K // 2), K // 2 + 1,
                                    dtype=jnp.float32))[None, :] / sample_rate

    low = min_low_hz + jnp.abs(low_hz_)                                 # (C, 1)
    high = jnp.clip(low + min_band_hz + jnp.abs(band_hz_), min_low_hz, sample_rate / 2)
    band = high - low                                                   # (C, 1)

    f_times_t = low * n_
    band_pass = (jnp.sin(f_times_t + band * n_) - jnp.sin(f_times_t)) / (n_ + 1e-8)
    band_pass = band_pass * window_[None, :]
    band_pass = band_pass / (2.0 * band + 1e-8)
    return band_pass                                                    # (C_out, K)


# ------------------------------ shared math ----------------------------------
def _leaky(x):
    return jnp.where(x >= 0.0, x, 0.01 * x)


def _channel_ln(x, gamma, beta, eps=LN_EPS):
    """LayerNorm over channels; x is (C, N) channels-first, gamma/beta are (C, 1)."""
    mean = jnp.mean(x, axis=0, keepdims=True)
    var = jnp.mean((x - mean) ** 2, axis=0, keepdims=True)
    return (x - mean) * jax.lax.rsqrt(var + eps) * gamma + beta


def _last_ln(x, gamma, beta, eps=LN_EPS):
    """LayerNorm over the last dim (FC layers and the plain-JAX reference)."""
    mean = jnp.mean(x, axis=-1, keepdims=True)
    var = jnp.mean((x - mean) ** 2, axis=-1, keepdims=True)
    return (x - mean) * jax.lax.rsqrt(var + eps) * gamma + beta


# ------------------------------ the fused kernel --------------------------------
def _sincnet_kernel(x_ref, w0_ref, g0_ref, be0_ref,
                    w1_ref, b1_ref, g1_ref, be1_ref,
                    f1w_ref, f1b_ref, f1g_ref, f1be_ref,
                    f2w_ref, f2b_ref, f2g_ref, f2be_ref,
                    cw_ref, cb_ref, o_ref,
                    x0_sc, x1_sc, fc_sc, *, batch):
    """Whole SincNet forward, channels-first (channels on sublanes, time on lanes)."""
    f32 = jnp.float32

    # ---------------- pad the waveform (time on lanes) ----------------
    x = x_ref[...]                                                    # (B, 256)
    zpad = jnp.zeros((batch, PAD0), f32)
    xp = jnp.concatenate([zpad, x, zpad], axis=1)                     # (B, 286)

    # ---------------- conv0 (SincConv): im2col via contiguous lane slices ----------------
    # x0_sc[k, b*256 + t] = xp[b, t + k]
    for k in range(K0):
        for b in range(batch):
            x0_sc[k:k + 1, b * L0:(b + 1) * L0] = xp[b:b + 1, k:k + L0]
    y0 = jnp.dot(w0_ref[...], x0_sc[...], preferred_element_type=f32)  # (16, B*256), no bias

    # ---------------- MaxPool1d(2): adjacent-column max + even-column selection ----------
    # sel[t, j] = 1 iff t == 2j; built in-register, reused (sliced) by both pool layers.
    rr = jax.lax.broadcasted_iota(jnp.int32, (L0 - 1, L0P), 0)
    cc = jax.lax.broadcasted_iota(jnp.int32, (L0 - 1, L0P), 1)
    sel = jnp.where(rr == 2 * cc, 1.0, 0.0).astype(f32)               # (255, 128)

    parts = []
    for b in range(batch):
        yb = y0[:, b * L0:(b + 1) * L0]                               # (16, 256)
        ym = jnp.maximum(yb[:, 0:L0 - 1], yb[:, 1:L0])                # (16, 255) max(t, t+1)
        parts.append(jnp.dot(ym, sel, preferred_element_type=f32))    # (16, 128) keep even t
    p0 = jnp.concatenate(parts, axis=1)                               # (16, B*128)

    h1 = _leaky(_channel_ln(p0, g0_ref[...], be0_ref[...]))           # (16, B*128)

    # ---------------- conv1: im2col from contiguous (16, 124) blocks ----------------
    # x1_sc[k*16 + c, b*124 + u] = h1[c, b*128 + u + k]
    for k in range(K1):
        for b in range(batch):
            x1_sc[k * C0:(k + 1) * C0, b * L1:(b + 1) * L1] = \
                h1[:, b * L0P + k: b * L0P + k + L1]
    y1 = (jnp.dot(w1_ref[...], x1_sc[...], preferred_element_type=f32)
          + b1_ref[...])                                              # (16, B*124)

    parts = []
    for b in range(batch):
        yb = y1[:, b * L1:(b + 1) * L1]                               # (16, 124)
        ym = jnp.maximum(yb[:, 0:L1 - 1], yb[:, 1:L1])                # (16, 123)
        parts.append(jnp.dot(ym, sel[:L1 - 1, :L1P],
                             preferred_element_type=f32))             # (16, 62)
    p1 = jnp.concatenate(parts, axis=1)                               # (16, B*62)

    h2 = _leaky(_channel_ln(p1, g1_ref[...], be1_ref[...]))           # (16, B*62)

    # ---------------- channel-major flatten (torch x.view(B, -1)) ----------------
    # fc_sc[b, c*62 + r] = h2[c, b*62 + r]
    for b in range(batch):
        for c in range(C1):
            fc_sc[b:b + 1, c * L1P:(c + 1) * L1P] = h2[c:c + 1, b * L1P:(b + 1) * L1P]
    h = fc_sc[...]                                                    # (B, 992)

    # ---------------- FC stack ----------------
    h = jnp.dot(h, f1w_ref[...], preferred_element_type=f32) + f1b_ref[...]
    h = _leaky(_last_ln(h, f1g_ref[...], f1be_ref[...]))
    # TODO(synk): Dropout(0.5) is identity in eval mode.
    h = jnp.dot(h, f2w_ref[...], preferred_element_type=f32) + f2b_ref[...]
    h = _leaky(_last_ln(h, f2g_ref[...], f2be_ref[...]))
    o_ref[...] = (jnp.dot(h, cw_ref[...], preferred_element_type=f32)
                  + cb_ref[...]).astype(o_ref.dtype)


# ------------------------------ Pallas wrapper --------------------------------
def _full_spec(shape):
    n = len(shape)
    return pl.BlockSpec(shape, lambda i, _n=n: (0,) * _n)


def sincnet_forward(x, params):
    B = x.shape[0]
    x2 = x[:, 0, :].astype(jnp.float32)                               # (B, 256), free reshape
    p = params
    args = (x2,
            p["conv0"]["w"], p["conv0"]["gamma"], p["conv0"]["beta"],
            p["conv1"]["w"], p["conv1"]["b"], p["conv1"]["gamma"], p["conv1"]["beta"],
            p["fc1"]["w"], p["fc1"]["b"], p["fc1"]["gamma"], p["fc1"]["beta"],
            p["fc2"]["w"], p["fc2"]["b"], p["fc2"]["gamma"], p["fc2"]["beta"],
            p["cls"]["w"], p["cls"]["b"])
    return pl.pallas_call(
        functools.partial(_sincnet_kernel, batch=B),
        out_shape=jax.ShapeDtypeStruct((B, NUM_CLASSES), jnp.float32),
        grid=(1,),
        in_specs=[_full_spec(a.shape) for a in args],
        out_specs=_full_spec((B, NUM_CLASSES)),
        scratch_shapes=[
            pltpu.VMEM((K0, B * L0), jnp.float32),         # conv0 im2col
            pltpu.VMEM((K1 * C0, B * L1), jnp.float32),    # conv1 im2col
            pltpu.VMEM((B, CONV_OUTPUT_SIZE), jnp.float32),  # channel-major flatten
        ],
        compiler_params=pltpu.CompilerParams(dimension_semantics=("arbitrary",)),
    )(*args)


# ------------------------------- parameters ------------------------------------
def init_params(key):
    params = {}

    # Conv layer 0: SincConv (mel-spaced init as in the torch __init__); F.conv1d has no bias.
    mel = jnp.linspace(to_mel(jnp.float32(MIN_LOW_HZ)),
                       to_mel(jnp.float32(SAMPLE_RATE / 2 - (MIN_LOW_HZ + MIN_BAND_HZ))),
                       C0 + 1)
    hz = to_hz(mel)
    low_hz = hz[:-1][:, None].astype(jnp.float32)
    band_hz = (hz[1:] - hz[:-1])[:, None].astype(jnp.float32)
    # Eval mode: the filter bank is a pure function of the parameters -> build it ONCE here
    # (perf feedback: no per-call transcendental fusion / extra dispatch).
    w0 = make_sinc_filters(low_hz, band_hz, K0)                        # (16, 31)
    params["conv0"] = {
        "low_hz": low_hz, "band_hz": band_hz, "w": w0,
        "gamma": jnp.ones((C0, 1), jnp.float32),
        "beta": jnp.zeros((C0, 1), jnp.float32),
    }

    # Conv layer 1: torch layout (C_out, C_in, K), repacked once to (C_out, K*C_in) so the
    # kernel's im2col row index k*C_in + c_in lines up.
    kw, kb = jax.random.split(jax.random.fold_in(key, 101))
    w1_torch = 0.1 * jax.random.normal(kw, (C1, C0, K1), jnp.float32)
    params["conv1"] = {
        "w_torch": w1_torch,
        "w": jnp.transpose(w1_torch, (0, 2, 1)).reshape(C1, K1 * C0),  # (16, 80)
        "b": 0.1 * jax.random.normal(kb, (C1, 1), jnp.float32),
        "gamma": jnp.ones((C1, 1), jnp.float32),
        "beta": jnp.zeros((C1, 1), jnp.float32),
    }

    # FC layers: weights stored (in, out) = torch weight.T.  The kernel builds the FC input in
    # torch's channel-major flatten order, so no row permutation is needed.
    kw, kb = jax.random.split(jax.random.fold_in(key, 200))
    params["fc1"] = {
        "w": 0.05 * jax.random.normal(kw, (CONV_OUTPUT_SIZE, FC_LAYERS[0]), jnp.float32),
        "b": 0.05 * jax.random.normal(kb, (1, FC_LAYERS[0]), jnp.float32),
        "gamma": jnp.ones((1, FC_LAYERS[0]), jnp.float32),
        "beta": jnp.zeros((1, FC_LAYERS[0]), jnp.float32),
    }
    kw, kb = jax.random.split(jax.random.fold_in(key, 201))
    params["fc2"] = {
        "w": 0.05 * jax.random.normal(kw, (FC_LAYERS[0], FC_LAYERS[1]), jnp.float32),
        "b": 0.05 * jax.random.normal(kb, (1, FC_LAYERS[1]), jnp.float32),
        "gamma": jnp.ones((1, FC_LAYERS[1]), jnp.float32),
        "beta": jnp.zeros((1, FC_LAYERS[1]), jnp.float32),
    }
    kw, kb = jax.random.split(jax.random.fold_in(key, 300))
    params["cls"] = {
        "w": 0.05 * jax.random.normal(kw, (FC_LAYERS[1], NUM_CLASSES), jnp.float32),
        "b": 0.05 * jax.random.normal(kb, (1, NUM_CLASSES), jnp.float32),
    }
    return params


# --------------------------- plain-JAX reference --------------------------------
def _reference_forward(x, params):
    """Straightforward jnp implementation used only to validate the fused kernel."""
    hi = jax.lax.Precision.HIGHEST
    B = x.shape[0]
    x2 = x[:, 0, :].astype(jnp.float32)
    xp = jnp.pad(x2, ((0, 0), (PAD0, PAD0)))                           # (B, 286)

    # conv0 + pool + channelwise LN + leaky
    w0 = params["conv0"]["w"]                                          # (16, 31)
    win0 = jnp.stack([xp[:, s:s + K0] for s in range(L0)], axis=1)     # (B, 256, 31)
    y = jnp.einsum("btk,ck->bct", win0, w0, precision=hi)              # (B, 16, 256)
    y = jnp.max(y.reshape(B, C0, L0P, 2), axis=3)                      # (B, 16, 128)
    g0 = params["conv0"]["gamma"][:, 0]
    b0 = params["conv0"]["beta"][:, 0]
    y = jnp.moveaxis(y, 1, 2)                                          # (B, 128, 16)
    y = _leaky(_last_ln(y, g0, b0))
    y = jnp.moveaxis(y, 2, 1)                                          # (B, 16, 128)

    # conv1 + pool + channelwise LN + leaky
    w1 = params["conv1"]["w_torch"]                                    # (16, 16, 5)
    win1 = jnp.stack([y[:, :, u:u + K1] for u in range(L1)], axis=2)   # (B, 16, 124, 5)
    z = jnp.einsum("bcuk,dck->bdu", win1, w1, precision=hi) + params["conv1"]["b"]
    z = jnp.max(z.reshape(B, C1, L1P, 2), axis=3)                      # (B, 16, 62)
    g1 = params["conv1"]["gamma"][:, 0]
    b1 = params["conv1"]["beta"][:, 0]
    z = jnp.moveaxis(z, 1, 2)
    z = _leaky(_last_ln(z, g1, b1))
    z = jnp.moveaxis(z, 2, 1)                                          # (B, 16, 62)

    h = z.reshape(B, -1)                                               # channel-major flatten
    f1, f2, cls = params["fc1"], params["fc2"], params["cls"]
    h = _leaky(_last_ln(jnp.dot(h, f1["w"], precision=hi) + f1["b"], f1["gamma"], f1["beta"]))
    h = _leaky(_last_ln(jnp.dot(h, f2["w"], precision=hi) + f2["b"], f2["gamma"], f2["beta"]))
    return jnp.dot(h, cls["w"], precision=hi) + cls["b"]


# ----------------------------------- main ----------------------------------------
if __name__ == "__main__":
    key = jax.random.PRNGKey(0)
    params = init_params(key)

    x = jax.random.normal(jax.random.fold_in(key, 999), (BATCH, 1, L_IN), jnp.float32)

    logits = jax.jit(sincnet_forward)(x, params)
    jax.block_until_ready(logits)
    assert logits.shape == (BATCH, NUM_CLASSES), logits.shape
    assert bool(jnp.all(jnp.isfinite(logits)))

    # Cross-check the fused Pallas pipeline against the plain-JAX reference.
    ref = jax.jit(_reference_forward)(x, params)
    err = float(jnp.max(jnp.abs(logits - ref)))
    assert err < 5e-2, f"mismatch vs reference: max abs err = {err}"

    print("KERNEL_OK")
</pallas_src>

<mosaic_0001>
module attributes {stable_mosaic.version = 11 : i64} {
  func.func @_sincnet_kernel(%arg0: i32, %arg1: memref<2x256xf32, #tpu.memory_space<vmem>>, %arg2: memref<16x31xf32, #tpu.memory_space<vmem>>, %arg3: memref<16x1xf32, #tpu.memory_space<vmem>>, %arg4: memref<16x1xf32, #tpu.memory_space<vmem>>, %arg5: memref<16x80xf32, #tpu.memory_space<vmem>>, %arg6: memref<16x1xf32, #tpu.memory_space<vmem>>, %arg7: memref<16x1xf32, #tpu.memory_space<vmem>>, %arg8: memref<16x1xf32, #tpu.memory_space<vmem>>, %arg9: memref<992x64xf32, #tpu.memory_space<vmem>>, %arg10: memref<1x64xf32, #tpu.memory_space<vmem>>, %arg11: memref<1x64xf32, #tpu.memory_space<vmem>>, %arg12: memref<1x64xf32, #tpu.memory_space<vmem>>, %arg13: memref<64x64xf32, #tpu.memory_space<vmem>>, %arg14: memref<1x64xf32, #tpu.memory_space<vmem>>, %arg15: memref<1x64xf32, #tpu.memory_space<vmem>>, %arg16: memref<1x64xf32, #tpu.memory_space<vmem>>, %arg17: memref<64x10xf32, #tpu.memory_space<vmem>>, %arg18: memref<1x10xf32, #tpu.memory_space<vmem>>, %arg19: memref<2x10xf32, #tpu.memory_space<vmem>>, %arg20: memref<31x512xf32, #tpu.memory_space<vmem>>, %arg21: memref<80x248xf32, #tpu.memory_space<vmem>>, %arg22: memref<2x992xf32, #tpu.memory_space<vmem>>) attributes {dimension_semantics = [#tpu.dimension_semantics<arbitrary>], iteration_bounds = array<i64: 1>, scalar_prefetch = 0 : i64, scratch_operands = 3 : i64, tpu.core_type = #tpu.core_type<tc>, window_params = [{pipeline_mode = #tpu.pipeline_mode<synchronous>, transform_indices = @transform_0, window_bounds = array<i64: 2, 256>}, {pipeline_mode = #tpu.pipeline_mode<synchronous>, transform_indices = @transform_1, window_bounds = array<i64: 16, 31>}, {pipeline_mode = #tpu.pipeline_mode<synchronous>, transform_indices = @transform_2, window_bounds = array<i64: 16, 1>}, {pipeline_mode = #tpu.pipeline_mode<synchronous>, transform_indices = @transform_3, window_bounds = array<i64: 16, 1>}, {pipeline_mode = #tpu.pipeline_mode<synchronous>, transform_indices = @transform_4, window_bounds = array<i64: 16, 80>}, {pipeline_mode = #tpu.pipeline_mode<synchronous>, transform_indices = @transform_5, window_bounds = array<i64: 16, 1>}, {pipeline_mode = #tpu.pipeline_mode<synchronous>, transform_indices = @transform_6, window_bounds = array<i64: 16, 1>}, {pipeline_mode = #tpu.pipeline_mode<synchronous>, transform_indices = @transform_7, window_bounds = array<i64: 16, 1>}, {pipeline_mode = #tpu.pipeline_mode<synchronous>, transform_indices = @transform_8, window_bounds = array<i64: 992, 64>}, {pipeline_mode = #tpu.pipeline_mode<synchronous>, transform_indices = @transform_9, window_bounds = array<i64: 1, 64>}, {pipeline_mode = #tpu.pipeline_mode<synchronous>, transform_indices = @transform_10, window_bounds = array<i64: 1, 64>}, {pipeline_mode = #tpu.pipeline_mode<synchronous>, transform_indices = @transform_11, window_bounds = array<i64: 1, 64>}, {pipeline_mode = #tpu.pipeline_mode<synchronous>, transform_indices = @transform_12, window_bounds = array<i64: 64, 64>}, {pipeline_mode = #tpu.pipeline_mode<synchronous>, transform_indices = @transform_13, window_bounds = array<i64: 1, 64>}, {pipeline_mode = #tpu.pipeline_mode<synchronous>, transform_indices = @transform_14, window_bounds = array<i64: 1, 64>}, {pipeline_mode = #tpu.pipeline_mode<synchronous>, transform_indices = @transform_15, window_bounds = array<i64: 1, 64>}, {pipeline_mode = #tpu.pipeline_mode<synchronous>, transform_indices = @transform_16, window_bounds = array<i64: 64, 10>}, {pipeline_mode = #tpu.pipeline_mode<synchronous>, transform_indices = @transform_17, window_bounds = array<i64: 1, 10>}, {pipeline_mode = #tpu.pipeline_mode<synchronous>, transform_indices = @transform_18, window_bounds = array<i64: 2, 10>}]} {
    %c0 = arith.constant 0 : index
    %c0_0 = arith.constant 0 : index
    %0 = vector.load %arg1[%c0, %c0_0] : memref<2x256xf32, #tpu.memory_space<vmem>>, vector<2x256xf32>
    %cst = arith.constant 0.000000e+00 : f32
    %1 = vector.broadcast %cst : f32 to vector<2x15xf32>
    %2 = tpu.concatenate %1, %0, %1 in 1 : vector<2x15xf32>, vector<2x256xf32>, vector<2x15xf32> -> vector<2x286xf32>
    %3 = vector.extract_strided_slice %2 {offsets = [0, 0], sizes = [1, 256], strides = [1, 1]} : vector<2x286xf32> to vector<1x256xf32>
    %c0_1 = arith.constant 0 : index
    %c0_2 = arith.constant 0 : index
    %4 = vector.load %arg20[%c0_1, %c0_2] : memref<31x512xf32, #tpu.memory_space<vmem>>, vector<1x256xf32>
    tpu.vector_store %arg20[%c0_1, %c0_2], %3 {strides = array<i32>} : memref<31x512xf32, #tpu.memory_space<vmem>>, vector<1x256xf32>,
    %5 = vector.extract_strided_slice %2 {offsets = [1, 0], sizes = [1, 256], strides = [1, 1]} : vector<2x286xf32> to vector<1x256xf32>
    %c0_3 = arith.constant 0 : index
    %c256 = arith.constant 256 : index
    %6 = vector.load %arg20[%c0_3, %c256] : memref<31x512xf32, #tpu.memory_space<vmem>>, vector<1x256xf32>
    tpu.vector_store %arg20[%c0_3, %c256], %5 {strides = array<i32>} : memref<31x512xf32, #tpu.memory_space<vmem>>, vector<1x256xf32>,
    %7 = vector.extract_strided_slice %2 {offsets = [0, 1], sizes = [1, 256], strides = [1, 1]} : vector<2x286xf32> to vector<1x256xf32>
    %c1 = arith.constant 1 : index
    %c0_4 = arith.constant 0 : index
    %8 = vector.load %arg20[%c1, %c0_4] : memref<31x512xf32, #tpu.memory_space<vmem>>, vector<1x256xf32>
    tpu.vector_store %arg20[%c1, %c0_4], %7 {strides = array<i32>} : memref<31x512xf32, #tpu.memory_space<vmem>>, vector<1x256xf32>,
    %9 = vector.extract_strided_slice %2 {offsets = [1, 1], sizes = [1, 256], strides = [1, 1]} : vector<2x286xf32> to vector<1x256xf32>
    %c1_5 = arith.constant 1 : index
    %c256_6 = arith.constant 256 : index
    %10 = vector.load %arg20[%c1_5, %c256_6] : memref<31x512xf32, #tpu.memory_space<vmem>>, vector<1x256xf32>
    tpu.vector_store %arg20[%c1_5, %c256_6], %9 {strides = array<i32>} : memref<31x512xf32, #tpu.memory_space<vmem>>, vector<1x256xf32>,
    %11 = vector.extract_strided_slice %2 {offsets = [0, 2], sizes = [1, 256], strides = [1, 1]} : vector<2x286xf32> to vector<1x256xf32>
    %c2 = arith.constant 2 : index
    %c0_7 = arith.constant 0 : index
    %12 = vector.load %arg20[%c2, %c0_7] : memref<31x512xf32, #tpu.memory_space<vmem>>, vector<1x256xf32>
    tpu.vector_store %arg20[%c2, %c0_7], %11 {strides = array<i32>} : memref<31x512xf32, #tpu.memory_space<vmem>>, vector<1x256xf32>,
    %13 = vector.extract_strided_slice %2 {offsets = [1, 2], sizes = [1, 256], strides = [1, 1]} : vector<2x286xf32> to vector<1x256xf32>
    %c2_8 = arith.constant 2 : index
    %c256_9 = arith.constant 256 : index
    %14 = vector.load %arg20[%c2_8, %c256_9] : memref<31x512xf32, #tpu.memory_space<vmem>>, vector<1x256xf32>
    tpu.vector_store %arg20[%c2_8, %c256_9], %13 {strides = array<i32>} : memref<31x512xf32, #tpu.memory_space<vmem>>, vector<1x256xf32>,
    %15 = vector.extract_strided_slice %2 {offsets = [0, 3], sizes = [1, 256], strides = [1, 1]} : vector<2x286xf32> to vector<1x256xf32>
    %c3 = arith.constant 3 : index
    %c0_10 = arith.constant 0 : index
    %16 = vector.load %arg20[%c3, %c0_10] : memref<31x512xf32, #tpu.memory_space<vmem>>, vector<1x256xf32>
    tpu.vector_store %arg20[%c3, %c0_10], %15 {strides = array<i32>} : memref<31x512xf32, #tpu.memory_space<vmem>>, vector<1x256xf32>,
    %17 = vector.extract_strided_slice %2 {offsets = [1, 3], sizes = [1, 256], strides = [1, 1]} : vector<2x286xf32> to vector<1x256xf32>
    %c3_11 = arith.constant 3 : index
    %c256_12 = arith.constant 256 : index
    %18 = vector.load %arg20[%c3_11, %c256_12] : memref<31x512xf32, #tpu.memory_space<vmem>>, vector<1x256xf32>
    tpu.vector_store %arg20[%c3_11, %c256_12], %17 {strides = array<i32>} : memref<31x512xf32, #tpu.memory_space<vmem>>, vector<1x256xf32>,
    %19 = vector.extract_strided_slice %2 {offsets = [0, 4], sizes = [1, 256], strides = [1, 1]} : vector<2x286xf32> to vector<1x256xf32>
    %c4 = arith.constant 4 : index
    %c0_13 = arith.constant 0 : index
    %20 = vector.load %arg20[%c4, %c0_13] : memref<31x512xf32, #tpu.memory_space<vmem>>, vector<1x256xf32>
    tpu.vector_store %arg20[%c4, %c0_13], %19 {strides = array<i32>} : memref<31x512xf32, #tpu.memory_space<vmem>>, vector<1x256xf32>,
    %21 = vector.extract_strided_slice %2 {offsets = [1, 4], sizes = [1, 256], strides = [1, 1]} : vector<2x286xf32> to vector<1x256xf32>
    %c4_14 = arith.constant 4 : index
    %c256_15 = arith.constant 256 : index
    %22 = vector.load %arg20[%c4_14, %c256_15] : memref<31x512xf32, #tpu.memory_space<vmem>>, vector<1x256xf32>
    tpu.vector_store %arg20[%c4_14, %c256_15], %21 {strides = array<i32>} : memref<31x512xf32, #tpu.memory_space<vmem>>, vector<1x256xf32>,
    %23 = vector.extract_strided_slice %2 {offsets = [0, 5], sizes = [1, 256], strides = [1, 1]} : vector<2x286xf32> to vector<1x256xf32>
    %c5 = arith.constant 5 : index
    %c0_16 = arith.constant 0 : index
    %24 = vector.load %arg20[%c5, %c0_16] : memref<31x512xf32, #tpu.memory_space<vmem>>, vector<1x256xf32>
    tpu.vector_store %arg20[%c5, %c0_16], %23 {strides = array<i32>} : memref<31x512xf32, #tpu.memory_space<vmem>>, vector<1x256xf32>,
    %25 = vector.extract_strided_slice %2 {offsets = [1, 5], sizes = [1, 256], strides = [1, 1]} : vector<2x286xf32> to vector<1x256xf32>
    %c5_17 = arith.constant 5 : index
    %c256_18 = arith.constant 256 : index
    %26 = vector.load %arg20[%c5_17, %c256_18] : memref<31x512xf32, #tpu.memory_space<vmem>>, vector<1x256xf32>
    tpu.vector_store %arg20[%c5_17, %c256_18], %25 {strides = array<i32>} : memref<31x512xf32, #tpu.memory_space<vmem>>, vector<1x256xf32>,
    %27 = vector.extract_strided_slice %2 {offsets = [0, 6], sizes = [1, 256], strides = [1, 1]} : vector<2x286xf32> to vector<1x256xf32>
    %c6 = arith.constant 6 : index
    %c0_19 = arith.constant 0 : index
    %28 = vector.load %arg20[%c6, %c0_19] : memref<31x512xf32, #tpu.memory_space<vmem>>, vector<1x256xf32>
    tpu.vector_store %arg20[%c6, %c0_19], %27 {strides = array<i32>} : memref<31x512xf32, #tpu.memory_space<vmem>>, vector<1x256xf32>,
    %29 = vector.extract_strided_slice %2 {offsets = [1, 6], sizes = [1, 256], strides = [1, 1]} : vector<2x286xf32> to vector<1x256xf32>
    %c6_20 = arith.constant 6 : index
    %c256_21 = arith.constant 256 : index
    %30 = vector.load %arg20[%c6_20, %c256_21] : memref<31x512xf32, #tpu.memory_space<vmem>>, vector<1x256xf32>
    tpu.vector_store %arg20[%c6_20, %c256_21], %29 {strides = array<i32>} : memref<31x512xf32, #tpu.memory_space<vmem>>, vector<1x256xf32>,
    %31 = vector.extract_strided_slice %2 {offsets = [0, 7], sizes = [1, 256], strides = [1, 1]} : vector<2x286xf32> to vector<1x256xf32>
    %c7 = arith.constant 7 : index
    %c0_22 = arith.constant 0 : index
    %32 = vector.load %arg20[%c7, %c0_22] : memref<31x512xf32, #tpu.memory_space<vmem>>, vector<1x256xf32>
    tpu.vector_store %arg20[%c7, %c0_22], %31 {strides = array<i32>} : memref<31x512xf32, #tpu.memory_space<vmem>>, vector<1x256xf32>,
    %33 = vector.extract_strided_slice %2 {offsets = [1, 7], sizes = [1, 256], strides = [1, 1]} : vector<2x286xf32> to vector<1x256xf32>
    %c7_23 = arith.constant 7 : index
    %c256_24 = arith.constant 256 : index
    %34 = vector.load %arg20[%c7_23, %c256_24] : memref<31x512xf32, #tpu.memory_space<vmem>>, vector<1x256xf32>
    tpu.vector_store %arg20[%c7_23, %c256_24], %33 {strides = array<i32>} : memref<31x512xf32, #tpu.memory_space<vmem>>, vector<1x256xf32>,
    %35 = vector.extract_strided_slice %2 {offsets = [0, 8], sizes = [1, 256], strides = [1, 1]} : vector<2x286xf32> to vector<1x256xf32>
    %c8 = arith.constant 8 : index
    %c0_25 = arith.constant 0 : index
    %36 = vector.load %arg20[%c8, %c0_25] : memref<31x512xf32, #tpu.memory_space<vmem>>, vector<1x256xf32>
    tpu.vector_store %arg20[%c8, %c0_25], %35 {strides = array<i32>} : memref<31x512xf32, #tpu.memory_space<vmem>>, vector<1x256xf32>,
    %37 = vector.extract_strided_slice %2 {offsets = [1, 8], sizes = [1, 256], strides = [1, 1]} : vector<2x286xf32> to vector<1x256xf32>
    %c8_26 = arith.constant 8 : index
    %c256_27 = arith.constant 256 : index
    %38 = vector.load %arg20[%c8_26, %c256_27] : memref<31x512xf32, #tpu.memory_space<vmem>>, vector<1x256xf32>
    tpu.vector_store %arg20[%c8_26, %c256_27], %37 {strides = array<i32>} : memref<31x512xf32, #tpu.memory_space<vmem>>, vector<1x256xf32>,
    %39 = vector.extract_strided_slice %2 {offsets = [0, 9], sizes = [1, 256], strides = [1, 1]} : vector<2x286xf32> to vector<1x256xf32>
    %c9 = arith.constant 9 : index
    %c0_28 = arith.constant 0 : index
    %40 = vector.load %arg20[%c9, %c0_28] : memref<31x512xf32, #tpu.memory_space<vmem>>, vector<1x256xf32>
    tpu.vector_store %arg20[%c9, %c0_28], %39 {strides = array<i32>} : memref<31x512xf32, #tpu.memory_space<vmem>>, vector<1x256xf32>,
    %41 = vector.extract_strided_slice %2 {offsets = [1, 9], sizes = [1, 256], strides = [1, 1]} : vector<2x286xf32> to vector<1x256xf32>
    %c9_29 = arith.constant 9 : index
    %c256_30 = arith.constant 256 : index
    %42 = vector.load %arg20[%c9_29, %c256_30] : memref<31x512xf32, #tpu.memory_space<vmem>>, vector<1x256xf32>
    tpu.vector_store %arg20[%c9_29, %c256_30], %41 {strides = array<i32>} : memref<31x512xf32, #tpu.memory_space<vmem>>, vector<1x256xf32>,
    %43 = vector.extract_strided_slice %2 {offsets = [0, 10], sizes = [1, 256], strides = [1, 1]} : vector<2x286xf32> to vector<1x256xf32>
    %c10 = arith.constant 10 : index
    %c0_31 = arith.constant 0 : index
    %44 = vector.load %arg20[%c10, %c0_31] : memref<31x512xf32, #tpu.memory_space<vmem>>, vector<1x256xf32>
    tpu.vector_store %arg20[%c10, %c0_31], %43 {strides = array<i32>} : memref<31x512xf32, #tpu.memory_space<vmem>>, vector<1x256xf32>,
    %45 = vector.extract_strided_slice %2 {offsets = [1, 10], sizes = [1, 256], strides = [1, 1]} : vector<2x286xf32> to vector<1x256xf32>
    %c10_32 = arith.constant 10 : index
    %c256_33 = arith.constant 256 : index
    %46 = vector.load %arg20[%c10_32, %c256_33] : memref<31x512xf32, #tpu.memory_space<vmem>>, vector<1x256xf32>
    tpu.vector_store %arg20[%c10_32, %c256_33], %45 {strides = array<i32>} : memref<31x512xf32, #tpu.memory_space<vmem>>, vector<1x256xf32>,
    %47 = vector.extract_strided_slice %2 {offsets = [0, 11], sizes = [1, 256], strides = [1, 1]} : vector<2x286xf32> to vector<1x256xf32>
    %c11 = arith.constant 11 : index
    %c0_34 = arith.constant 0 : index
    %48 = vector.load %arg20[%c11, %c0_34] : memref<31x512xf32, #tpu.memory_space<vmem>>, vector<1x256xf32>
    tpu.vector_store %arg20[%c11, %c0_34], %47 {strides = array<i32>} : memref<31x512xf32, #tpu.memory_space<vmem>>, vector<1x256xf32>,
    %49 = vector.extract_strided_slice %2 {offsets = [1, 11], sizes = [1, 256], strides = [1, 1]} : vector<2x286xf32> to vector<1x256xf32>
    %c11_35 = arith.constant 11 : index
    %c256_36 = arith.constant 256 : index
    %50 = vector.load %arg20[%c11_35, %c256_36] : memref<31x512xf32, #tpu.memory_space<vmem>>, vector<1x256xf32>
    tpu.vector_store %arg20[%c11_35, %c256_36], %49 {strides = array<i32>} : memref<31x512xf32, #tpu.memory_space<vmem>>, vector<1x256xf32>,
    %51 = vector.extract_strided_slice %2 {offsets = [0, 12], sizes = [1, 256], strides = [1, 1]} : vector<2x286xf32> to vector<1x256xf32>
    %c12 = arith.constant 12 : index
    %c0_37 = arith.constant 0 : index
    %52 = vector.load %arg20[%c12, %c0_37] : memref<31x512xf32, #tpu.memory_space<vmem>>, vector<1x256xf32>
    tpu.vector_store %arg20[%c12, %c0_37], %51 {strides = array<i32>} : memref<31x512xf32, #tpu.memory_space<vmem>>, vector<1x256xf32>,
    %53 = vector.extract_strided_slice %2 {offsets = [1, 12], sizes = [1, 256], strides = [1, 1]} : vector<2x286xf32> to vector<1x256xf32>
    %c12_38 = arith.constant 12 : index
    %c256_39 = arith.constant 256 : index
    %54 = vector.load %arg20[%c12_38, %c256_39] : memref<31x512xf32, #tpu.memory_space<vmem>>, vector<1x256xf32>
    tpu.vector_store %arg20[%c12_38, %c256_39], %53 {strides = array<i32>} : memref<31x512xf32, #tpu.memory_space<vmem>>, vector<1x256xf32>,
    %55 = vector.extract_strided_slice %2 {offsets = [0, 13], sizes = [1, 256], strides = [1, 1]} : vector<2x286xf32> to vector<1x256xf32>
    %c13 = arith.constant 13 : index
    %c0_40 = arith.constant 0 : index
    %56 = vector.load %arg20[%c13, %c0_40] : memref<31x512xf32, #tpu.memory_space<vmem>>, vector<1x256xf32>
    tpu.vector_store %arg20[%c13, %c0_40], %55 {strides = array<i32>} : memref<31x512xf32, #tpu.memory_space<vmem>>, vector<1x256xf32>,
    %57 = vector.extract_strided_slice %2 {offsets = [1, 13], sizes = [1, 256], strides = [1, 1]} : vector<2x286xf32> to vector<1x256xf32>
    %c13_41 = arith.constant 13 : index
    %c256_42 = arith.constant 256 : index
    %58 = vector.load %arg20[%c13_41, %c256_42] : memref<31x512xf32, #tpu.memory_space<vmem>>, vector<1x256xf32>
    tpu.vector_store %arg20[%c13_41, %c256_42], %57 {strides = array<i32>} : memref<31x512xf32, #tpu.memory_space<vmem>>, vector<1x256xf32>,
    %59 = vector.extract_strided_slice %2 {offsets = [0, 14], sizes = [1, 256], strides = [1, 1]} : vector<2x286xf32> to vector<1x256xf32>
    %c14 = arith.constant 14 : index
    %c0_43 = arith.constant 0 : index
    %60 = vector.load %arg20[%c14, %c0_43] : memref<31x512xf32, #tpu.memory_space<vmem>>, vector<1x256xf32>
    tpu.vector_store %arg20[%c14, %c0_43], %59 {strides = array<i32>} : memref<31x512xf32, #tpu.memory_space<vmem>>, vector<1x256xf32>,
    %61 = vector.extract_strided_slice %2 {offsets = [1, 14], sizes = [1, 256], strides = [1, 1]} : vector<2x286xf32> to vector<1x256xf32>
    %c14_44 = arith.constant 14 : index
    %c256_45 = arith.constant 256 : index
    %62 = vector.load %arg20[%c14_44, %c256_45] : memref<31x512xf32, #tpu.memory_space<vmem>>, vector<1x256xf32>
    tpu.vector_store %arg20[%c14_44, %c256_45], %61 {strides = array<i32>} : memref<31x512xf32, #tpu.memory_space<vmem>>, vector<1x256xf32>,
    %63 = vector.extract_strided_slice %2 {offsets = [0, 15], sizes = [1, 256], strides = [1, 1]} : vector<2x286xf32> to vector<1x256xf32>
    %c15 = arith.constant 15 : index
    %c0_46 = arith.constant 0 : index
    %64 = vector.load %arg20[%c15, %c0_46] : memref<31x512xf32, #tpu.memory_space<vmem>>, vector<1x256xf32>
    tpu.vector_store %arg20[%c15, %c0_46], %63 {strides = array<i32>} : memref<31x512xf32, #tpu.memory_space<vmem>>, vector<1x256xf32>,
    %65 = vector.extract_strided_slice %2 {offsets = [1, 15], sizes = [1, 256], strides = [1, 1]} : vector<2x286xf32> to vector<1x256xf32>
    %c15_47 = arith.constant 15 : index
    %c256_48 = arith.constant 256 : index
    %66 = vector.load %arg20[%c15_47, %c256_48] : memref<31x512xf32, #tpu.memory_space<vmem>>, vector<1x256xf32>
    tpu.vector_store %arg20[%c15_47, %c256_48], %65 {strides = array<i32>} : memref<31x512xf32, #tpu.memory_space<vmem>>, vector<1x256xf32>,
    %67 = vector.extract_strided_slice %2 {offsets = [0, 16], sizes = [1, 256], strides = [1, 1]} : vector<2x286xf32> to vector<1x256xf32>
    %c16 = arith.constant 16 : index
    %c0_49 = arith.constant 0 : index
    %68 = vector.load %arg20[%c16, %c0_49] : memref<31x512xf32, #tpu.memory_space<vmem>>, vector<1x256xf32>
    tpu.vector_store %arg20[%c16, %c0_49], %67 {strides = array<i32>} : memref<31x512xf32, #tpu.memory_space<vmem>>, vector<1x256xf32>,
    %69 = vector.extract_strided_slice %2 {offsets = [1, 16], sizes = [1, 256], strides = [1, 1]} : vector<2x286xf32> to vector<1x256xf32>
    %c16_50 = arith.constant 16 : index
    %c256_51 = arith.constant 256 : index
    %70 = vector.load %arg20[%c16_50, %c256_51] : memref<31x512xf32, #tpu.memory_space<vmem>>, vector<1x256xf32>
    tpu.vector_store %arg20[%c16_50, %c256_51], %69 {strides = array<i32>} : memref<31x512xf32, #tpu.memory_space<vmem>>, vector<1x256xf32>,
    %71 = vector.extract_strided_slice %2 {offsets = [0, 17], sizes = [1, 256], strides = [1, 1]} : vector<2x286xf32> to vector<1x256xf32>
    %c17 = arith.constant 17 : index
    %c0_52 = arith.constant 0 : index
    %72 = vector.load %arg20[%c17, %c0_52] : memref<31x512xf32, #tpu.memory_space<vmem>>, vector<1x256xf32>
    tpu.vector_store %arg20[%c17, %c0_52], %71 {strides = array<i32>} : memref<31x512xf32, #tpu.memory_space<vmem>>, vector<1x256xf32>,
    %73 = vector.extract_strided_slice %2 {offsets = [1, 17], sizes = [1, 256], strides = [1, 1]} : vector<2x286xf32> to vector<1x256xf32>
    %c17_53 = arith.constant 17 : index
    %c256_54 = arith.constant 256 : index
    %74 = vector.load %arg20[%c17_53, %c256_54] : memref<31x512xf32, #tpu.memory_space<vmem>>, vector<1x256xf32>
    tpu.vector_store %arg20[%c17_53, %c256_54], %73 {strides = array<i32>} : memref<31x512xf32, #tpu.memory_space<vmem>>, vector<1x256xf32>,
    %75 = vector.extract_strided_slice %2 {offsets = [0, 18], sizes = [1, 256], strides = [1, 1]} : vector<2x286xf32> to vector<1x256xf32>
    %c18 = arith.constant 18 : index
    %c0_55 = arith.constant 0 : index
    %76 = vector.load %arg20[%c18, %c0_55] : memref<31x512xf32, #tpu.memory_space<vmem>>, vector<1x256xf32>
    tpu.vector_store %arg20[%c18, %c0_55], %75 {strides = array<i32>} : memref<31x512xf32, #tpu.memory_space<vmem>>, vector<1x256xf32>,
    %77 = vector.extract_strided_slice %2 {offsets = [1, 18], sizes = [1, 256], strides = [1, 1]} : vector<2x286xf32> to vector<1x256xf32>
    %c18_56 = arith.constant 18 : index
    %c256_57 = arith.constant 256 : index
    %78 = vector.load %arg20[%c18_56, %c256_57] : memref<31x512xf32, #tpu.memory_space<vmem>>, vector<1x256xf32>
    tpu.vector_store %arg20[%c18_56, %c256_57], %77 {strides = array<i32>} : memref<31x512xf32, #tpu.memory_space<vmem>>, vector<1x256xf32>,
    %79 = vector.extract_strided_slice %2 {offsets = [0, 19], sizes = [1, 256], strides = [1, 1]} : vector<2x286xf32> to vector<1x256xf32>
    %c19 = arith.constant 19 : index
    %c0_58 = arith.constant 0 : index
    %80 = vector.load %arg20[%c19, %c0_58] : memref<31x512xf32, #tpu.memory_space<vmem>>, vector<1x256xf32>
    tpu.vector_store %arg20[%c19, %c0_58], %79 {strides = array<i32>} : memref<31x512xf32, #tpu.memory_space<vmem>>, vector<1x256xf32>,
    %81 = vector.extract_strided_slice %2 {offsets = [1, 19], sizes = [1, 256], strides = [1, 1]} : vector<2x286xf32> to vector<1x256xf32>
    %c19_59 = arith.constant 19 : index
    %c256_60 = arith.constant 256 : index
    %82 = vector.load %arg20[%c19_59, %c256_60] : memref<31x512xf32, #tpu.memory_space<vmem>>, vector<1x256xf32>
    tpu.vector_store %arg20[%c19_59, %c256_60], %81 {strides = array<i32>} : memref<31x512xf32, #tpu.memory_space<vmem>>, vector<1x256xf32>,
    %83 = vector.extract_strided_slice %2 {offsets = [0, 20], sizes = [1, 256], strides = [1, 1]} : vector<2x286xf32> to vector<1x256xf32>
    %c20 = arith.constant 20 : index
    %c0_61 = arith.constant 0 : index
    %84 = vector.load %arg20[%c20, %c0_61] : memref<31x512xf32, #tpu.memory_space<vmem>>, vector<1x256xf32>
    tpu.vector_store %arg20[%c20, %c0_61], %83 {strides = array<i32>} : memref<31x512xf32, #tpu.memory_space<vmem>>, vector<1x256xf32>,
    %85 = vector.extract_strided_slice %2 {offsets = [1, 20], sizes = [1, 256], strides = [1, 1]} : vector<2x286xf32> to vector<1x256xf32>
    %c20_62 = arith.constant 20 : index
    %c256_63 = arith.constant 256 : index
    %86 = vector.load %arg20[%c20_62, %c256_63] : memref<31x512xf32, #tpu.memory_space<vmem>>, vector<1x256xf32>
    tpu.vector_store %arg20[%c20_62, %c256_63], %85 {strides = array<i32>} : memref<31x512xf32, #tpu.memory_space<vmem>>, vector<1x256xf32>,
    %87 = vector.extract_strided_slice %2 {offsets = [0, 21], sizes = [1, 256], strides = [1, 1]} : vector<2x286xf32> to vector<1x256xf32>
    %c21 = arith.constant 21 : index
    %c0_64 = arith.constant 0 : index
    %88 = vector.load %arg20[%c21, %c0_64] : memref<31x512xf32, #tpu.memory_space<vmem>>, vector<1x256xf32>
    tpu.vector_store %arg20[%c21, %c0_64], %87 {strides = array<i32>} : memref<31x512xf32, #tpu.memory_space<vmem>>, vector<1x256xf32>,
    %89 = vector.extract_strided_slice %2 {offsets = [1, 21], sizes = [1, 256], strides = [1, 1]} : vector<2x286xf32> to vector<1x256xf32>
    %c21_65 = arith.constant 21 : index
    %c256_66 = arith.constant 256 : index
    %90 = vector.load %arg20[%c21_65, %c256_66] : memref<31x512xf32, #tpu.memory_space<vmem>>, vector<1x256xf32>
    tpu.vector_store %arg20[%c21_65, %c256_66], %89 {strides = array<i32>} : memref<31x512xf32, #tpu.memory_space<vmem>>, vector<1x256xf32>,
    %91 = vector.extract_strided_slice %2 {offsets = [0, 22], sizes = [1, 256], strides = [1, 1]} : vector<2x286xf32> to vector<1x256xf32>
    %c22 = arith.constant 22 : index
    %c0_67 = arith.constant 0 : index
    %92 = vector.load %arg20[%c22, %c0_67] : memref<31x512xf32, #tpu.memory_space<vmem>>, vector<1x256xf32>
    tpu.vector_store %arg20[%c22, %c0_67], %91 {strides = array<i32>} : memref<31x512xf32, #tpu.memory_space<vmem>>, vector<1x256xf32>,
    %93 = vector.extract_strided_slice %2 {offsets = [1, 22], sizes = [1, 256], strides = [1, 1]} : vector<2x286xf32> to vector<1x256xf32>
    %c22_68 = arith.constant 22 : index
    %c256_69 = arith.constant 256 : index
    %94 = vector.load %arg20[%c22_68, %c256_69] : memref<31x512xf32, #tpu.memory_space<vmem>>, vector<1x256xf32>
    tpu.vector_store %arg20[%c22_68, %c256_69], %93 {strides = array<i32>} : memref<31x512xf32, #tpu.memory_space<vmem>>, vector<1x256xf32>,
    %95 = vector.extract_strided_slice %2 {offsets = [0, 23], sizes = [1, 256], strides = [1, 1]} : vector<2x286xf32> to vector<1x256xf32>
    %c23 = arith.constant 23 : index
    %c0_70 = arith.constant 0 : index
    %96 = vector.load %arg20[%c23, %c0_70] : memref<31x512xf32, #tpu.memory_space<vmem>>, vector<1x256xf32>
    tpu.vector_store %arg20[%c23, %c0_70], %95 {strides = array<i32>} : memref<31x512xf32, #tpu.memory_space<vmem>>, vector<1x256xf32>,
    %97 = vector.extract_strided_slice %2 {offsets = [1, 23], sizes = [1, 256], strides = [1, 1]} : vector<2x286xf32> to vector<1x256xf32>
    %c23_71 = arith.constant 23 : index
    %c256_72 = arith.constant 256 : index
    %98 = vector.load %arg20[%c23_71, %c256_72] : memref<31x512xf32, #tpu.memory_space<vmem>>, vector<1x256xf32>
    tpu.vector_store %arg20[%c23_71, %c256_72], %97 {strides = array<i32>} : memref<31x512xf32, #tpu.memory_space<vmem>>, vector<1x256xf32>,
    %99 = vector.extract_strided_slice %2 {offsets = [0, 24], sizes = [1, 256], strides = [1, 1]} : vector<2x286xf32> to vector<1x256xf32>
    %c24 = arith.constant 24 : index
    %c0_73 = arith.constant 0 : index
    %100 = vector.load %arg20[%c24, %c0_73] : memref<31x512xf32, #tpu.memory_space<vmem>>, vector<1x256xf32>
    tpu.vector_store %arg20[%c24, %c0_73], %99 {strides = array<i32>} : memref<31x512xf32, #tpu.memory_space<vmem>>, vector<1x256xf32>,
    %101 = vector.extract_strided_slice %2 {offsets = [1, 24], sizes = [1, 256], strides = [1, 1]} : vector<2x286xf32> to vector<1x256xf32>
    %c24_74 = arith.constant 24 : index
    %c256_75 = arith.constant 256 : index
    %102 = vector.load %arg20[%c24_74, %c256_75] : memref<31x512xf32, #tpu.memory_space<vmem>>, vector<1x256xf32>
    tpu.vector_store %arg20[%c24_74, %c256_75], %101 {strides = array<i32>} : memref<31x512xf32, #tpu.memory_space<vmem>>, vector<1x256xf32>,
    %103 = vector.extract_strided_slice %2 {offsets = [0, 25], sizes = [1, 256], strides = [1, 1]} : vector<2x286xf32> to vector<1x256xf32>
    %c25 = arith.constant 25 : index
    %c0_76 = arith.constant 0 : index
    %104 = vector.load %arg20[%c25, %c0_76] : memref<31x512xf32, #tpu.memory_space<vmem>>, vector<1x256xf32>
    tpu.vector_store %arg20[%c25, %c0_76], %103 {strides = array<i32>} : memref<31x512xf32, #tpu.memory_space<vmem>>, vector<1x256xf32>,
    %105 = vector.extract_strided_slice %2 {offsets = [1, 25], sizes = [1, 256], strides = [1, 1]} : vector<2x286xf32> to vector<1x256xf32>
    %c25_77 = arith.constant 25 : index
    %c256_78 = arith.constant 256 : index
    %106 = vector.load %arg20[%c25_77, %c256_78] : memref<31x512xf32, #tpu.memory_space<vmem>>, vector<1x256xf32>
    tpu.vector_store %arg20[%c25_77, %c256_78], %105 {strides = array<i32>} : memref<31x512xf32, #tpu.memory_space<vmem>>, vector<1x256xf32>,
    %107 = vector.extract_strided_slice %2 {offsets = [0, 26], sizes = [1, 256], strides = [1, 1]} : vector<2x286xf32> to vector<1x256xf32>
    %c26 = arith.constant 26 : index
    %c0_79 = arith.constant 0 : index
    %108 = vector.load %arg20[%c26, %c0_79] : memref<31x512xf32, #tpu.memory_space<vmem>>, vector<1x256xf32>
    tpu.vector_store %arg20[%c26, %c0_79], %107 {strides = array<i32>} : memref<31x512xf32, #tpu.memory_space<vmem>>, vector<1x256xf32>,
    %109 = vector.extract_strided_slice %2 {offsets = [1, 26], sizes = [1, 256], strides = [1, 1]} : vector<2x286xf32> to vector<1x256xf32>
    %c26_80 = arith.constant 26 : index
    %c256_81 = arith.constant 256 : index
    %110 = vector.load %arg20[%c26_80, %c256_81] : memref<31x512xf32, #tpu.memory_space<vmem>>, vector<1x256xf32>
    tpu.vector_store %arg20[%c26_80, %c256_81], %109 {strides = array<i32>} : memref<31x512xf32, #tpu.memory_space<vmem>>, vector<1x256xf32>,
    %111 = vector.extract_strided_slice %2 {offsets = [0, 27], sizes = [1, 256], strides = [1, 1]} : vector<2x286xf32> to vector<1x256xf32>
    %c27 = arith.constant 27 : index
    %c0_82 = arith.constant 0 : index
    %112 = vector.load %arg20[%c27, %c0_82] : memref<31x512xf32, #tpu.memory_space<vmem>>, vector<1x256xf32>
    tpu.vector_store %arg20[%c27, %c0_82], %111 {strides = array<i32>} : memref<31x512xf32, #tpu.memory_space<vmem>>, vector<1x256xf32>,
    %113 = vector.extract_strided_slice %2 {offsets = [1, 27], sizes = [1, 256], strides = [1, 1]} : vector<2x286xf32> to vector<1x256xf32>
    %c27_83 = arith.constant 27 : index
    %c256_84 = arith.constant 256 : index
    %114 = vector.load %arg20[%c27_83, %c256_84] : memref<31x512xf32, #tpu.memory_space<vmem>>, vector<1x256xf32>
    tpu.vector_store %arg20[%c27_83, %c256_84], %113 {strides = array<i32>} : memref<31x512xf32, #tpu.memory_space<vmem>>, vector<1x256xf32>,
    %115 = vector.extract_strided_slice %2 {offsets = [0, 28], sizes = [1, 256], strides = [1, 1]} : vector<2x286xf32> to vector<1x256xf32>
    %c28 = arith.constant 28 : index
    %c0_85 = arith.constant 0 : index
    %116 = vector.load %arg20[%c28, %c0_85] : memref<31x512xf32, #tpu.memory_space<vmem>>, vector<1x256xf32>
    tpu.vector_store %arg20[%c28, %c0_85], %115 {strides = array<i32>} : memref<31x512xf32, #tpu.memory_space<vmem>>, vector<1x256xf32>,
    %117 = vector.extract_strided_slice %2 {offsets = [1, 28], sizes = [1, 256], strides = [1, 1]} : vector<2x286xf32> to vector<1x256xf32>
    %c28_86 = arith.constant 28 : index
    %c256_87 = arith.constant 256 : index
    %118 = vector.load %arg20[%c28_86, %c256_87] : memref<31x512xf32, #tpu.memory_space<vmem>>, vector<1x256xf32>
    tpu.vector_store %arg20[%c28_86, %c256_87], %117 {strides = array<i32>} : memref<31x512xf32, #tpu.memory_space<vmem>>, vector<1x256xf32>,
    %119 = vector.extract_strided_slice %2 {offsets = [0, 29], sizes = [1, 256], strides = [1, 1]} : vector<2x286xf32> to vector<1x256xf32>
    %c29 = arith.constant 29 : index
    %c0_88 = arith.constant 0 : index
    %120 = vector.load %arg20[%c29, %c0_88] : memref<31x512xf32, #tpu.memory_space<vmem>>, vector<1x256xf32>
    tpu.vector_store %arg20[%c29, %c0_88], %119 {strides = array<i32>} : memref<31x512xf32, #tpu.memory_space<vmem>>, vector<1x256xf32>,
    %121 = vector.extract_strided_slice %2 {offsets = [1, 29], sizes = [1, 256], strides = [1, 1]} : vector<2x286xf32> to vector<1x256xf32>
    %c29_89 = arith.constant 29 : index
    %c256_90 = arith.constant 256 : index
    %122 = vector.load %arg20[%c29_89, %c256_90] : memref<31x512xf32, #tpu.memory_space<vmem>>, vector<1x256xf32>
    tpu.vector_store %arg20[%c29_89, %c256_90], %121 {strides = array<i32>} : memref<31x512xf32, #tpu.memory_space<vmem>>, vector<1x256xf32>,
    %123 = vector.extract_strided_slice %2 {offsets = [0, 30], sizes = [1, 256], strides = [1, 1]} : vector<2x286xf32> to vector<1x256xf32>
    %c30 = arith.constant 30 : index
    %c0_91 = arith.constant 0 : index
    %124 = vector.load %arg20[%c30, %c0_91] : memref<31x512xf32, #tpu.memory_space<vmem>>, vector<1x256xf32>
    tpu.vector_store %arg20[%c30, %c0_91], %123 {strides = array<i32>} : memref<31x512xf32, #tpu.memory_space<vmem>>, vector<1x256xf32>,
    %125 = vector.extract_strided_slice %2 {offsets = [1, 30], sizes = [1, 256], strides = [1, 1]} : vector<2x286xf32> to vector<1x256xf32>
    %c30_92 = arith.constant 30 : index
    %c256_93 = arith.constant 256 : index
    %126 = vector.load %arg20[%c30_92, %c256_93] : memref<31x512xf32, #tpu.memory_space<vmem>>, vector<1x256xf32>
    tpu.vector_store %arg20[%c30_92, %c256_93], %125 {strides = array<i32>} : memref<31x512xf32, #tpu.memory_space<vmem>>, vector<1x256xf32>,
    %c0_94 = arith.constant 0 : index
    %c0_95 = arith.constant 0 : index
    %127 = vector.load %arg2[%c0_94, %c0_95] : memref<16x31xf32, #tpu.memory_space<vmem>>, vector<16x31xf32>
    %c0_96 = arith.constant 0 : index
    %c0_97 = arith.constant 0 : index
    %128 = vector.load %arg20[%c0_96, %c0_97] : memref<31x512xf32, #tpu.memory_space<vmem>>, vector<31x512xf32>
    %cst_98 = arith.constant dense<0.000000e+00> : vector<16x512xf32>
    %129 = tpu.matmul %127, %128, %cst_98 {dimension_numbers = #tpu.dot_dimension_numbers<[1], [0], [0], [1], [0, 0, 1, 1], [], []>} : vector<16x31xf32>, vector<31x512xf32>, vector<16x512xf32> -> vector<16x512xf32>
    %130 = tpu.iota {dimensions = array<i32: 0>} : vector<255x128xi32>
    %131 = tpu.iota {dimensions = array<i32: 1>} : vector<255x128xi32>
    %c2_i32 = arith.constant 2 : i32
    %132 = vector.broadcast %c2_i32 : i32 to vector<255x128xi32>
    %133 = arith.muli %132, %131 : vector<255x128xi32>
    %134 = arith.cmpi eq, %130, %133 : vector<255x128xi32>
    %cst_99 = arith.constant 1.000000e+00 : f32
    %cst_100 = arith.constant 0.000000e+00 : f32
    %135 = vector.broadcast %cst_99 : f32 to vector<255x128xf32>
    %136 = vector.broadcast %cst_100 : f32 to vector<255x128xf32>
    %137 = arith.select %134, %135, %136 : vector<255x128xi1>, vector<255x128xf32>
    %138 = vector.extract_strided_slice %129 {offsets = [0, 0], sizes = [16, 256], strides = [1, 1]} : vector<16x512xf32> to vector<16x256xf32>
    %139 = vector.extract_strided_slice %138 {offsets = [0, 0], sizes = [16, 255], strides = [1, 1]} : vector<16x256xf32> to vector<16x255xf32>
    %140 = vector.extract_strided_slice %138 {offsets = [0, 1], sizes = [16, 255], strides = [1, 1]} : vector<16x256xf32> to vector<16x255xf32>
    %141 = arith.maximumf %139, %140 : vector<16x255xf32>
    %cst_101 = arith.constant dense<0.000000e+00> : vector<16x128xf32>
    %142 = tpu.matmul %141, %137, %cst_101 {dimension_numbers = #tpu.dot_dimension_numbers<[1], [0], [0], [1], [0, 0, 1, 1], [], []>} : vector<16x255xf32>, vector<255x128xf32>, vector<16x128xf32> -> vector<16x128xf32>
    %143 = vector.extract_strided_slice %129 {offsets = [0, 256], sizes = [16, 256], strides = [1, 1]} : vector<16x512xf32> to vector<16x256xf32>
    %144 = vector.extract_strided_slice %143 {offsets = [0, 0], sizes = [16, 255], strides = [1, 1]} : vector<16x256xf32> to vector<16x255xf32>
    %145 = vector.extract_strided_slice %143 {offsets = [0, 1], sizes = [16, 255], strides = [1, 1]} : vector<16x256xf32> to vector<16x255xf32>
    %146 = arith.maximumf %144, %145 : vector<16x255xf32>
    %cst_102 = arith.constant dense<0.000000e+00> : vector<16x128xf32>
    %147 = tpu.matmul %146, %137, %cst_102 {dimension_numbers = #tpu.dot_dimension_numbers<[1], [0], [0], [1], [0, 0, 1, 1], [], []>} : vector<16x255xf32>, vector<255x128xf32>, vector<16x128xf32> -> vector<16x128xf32>
    %148 = tpu.concatenate %142, %147 in 1 : vector<16x128xf32>, vector<16x128xf32> -> vector<16x256xf32>
    %c0_103 = arith.constant 0 : index
    %c0_104 = arith.constant 0 : index
    %149 = vector.load %arg3[%c0_103, %c0_104] : memref<16x1xf32, #tpu.memory_space<vmem>>, vector<16x1xf32>
    %c0_105 = arith.constant 0 : index
    %c0_106 = arith.constant 0 : index
    %150 = vector.load %arg4[%c0_105, %c0_106] : memref<16x1xf32, #tpu.memory_space<vmem>>, vector<16x1xf32>
    %cst_107 = arith.constant dense<0.000000e+00> : vector<256xf32>
    %151 = vector.multi_reduction <add>, %148, %cst_107 [0] : vector<16x256xf32> to vector<256xf32>
    %152 = vector.shape_cast %151 : vector<256xf32> to vector<1x256xf32>
    %cst_108 = arith.constant 1.600000e+01 : f32
    %153 = vector.broadcast %cst_108 : f32 to vector<1x256xf32>
    %154 = arith.divf %152, %153 : vector<1x256xf32>
    %155 = vector.broadcast %154 : vector<1x256xf32> to vector<16x256xf32>
    %156 = arith.subf %148, %155 : vector<16x256xf32>
    %157 = arith.mulf %156, %156 : vector<16x256xf32>
    %cst_109 = arith.constant dense<0.000000e+00> : vector<256xf32>
    %158 = vector.multi_reduction <add>, %157, %cst_109 [0] : vector<16x256xf32> to vector<256xf32>
    %159 = vector.shape_cast %158 : vector<256xf32> to vector<1x256xf32>
    %cst_110 = arith.constant 1.600000e+01 : f32
    %160 = vector.broadcast %cst_110 : f32 to vector<1x256xf32>
    %161 = arith.divf %159, %160 : vector<1x256xf32>
    %162 = vector.broadcast %154 : vector<1x256xf32> to vector<16x256xf32>
    %163 = arith.subf %148, %162 : vector<16x256xf32>
    %cst_111 = arith.constant 9.99999974E-6 : f32
    %164 = vector.broadcast %cst_111 : f32 to vector<1x256xf32>
    %165 = arith.addf %161, %164 : vector<1x256xf32>
    %166 = math.rsqrt %165 : vector<1x256xf32>
    %167 = vector.broadcast %166 : vector<1x256xf32> to vector<16x256xf32>
    %168 = arith.mulf %163, %167 : vector<16x256xf32>
    %169 = vector.broadcast %149 : vector<16x1xf32> to vector<16x256xf32>
    %170 = arith.mulf %168, %169 : vector<16x256xf32>
    %171 = vector.broadcast %150 : vector<16x1xf32> to vector<16x256xf32>
    %172 = arith.addf %170, %171 : vector<16x256xf32>
    %cst_112 = arith.constant 0.000000e+00 : f32
    %173 = vector.broadcast %cst_112 : f32 to vector<16x256xf32>
    %174 = arith.cmpf oge, %172, %173 : vector<16x256xf32>
    %cst_113 = arith.constant 0.00999999977 : f32
    %175 = vector.broadcast %cst_113 : f32 to vector<16x256xf32>
    %176 = arith.mulf %175, %172 : vector<16x256xf32>
    %177 = arith.select %174, %172, %176 : vector<16x256xi1>, vector<16x256xf32>
    %178 = vector.extract_strided_slice %177 {offsets = [0, 0], sizes = [16, 124], strides = [1, 1]} : vector<16x256xf32> to vector<16x124xf32>
    %c0_114 = arith.constant 0 : index
    %c0_115 = arith.constant 0 : index
    %179 = vector.load %arg21[%c0_114, %c0_115] : memref<80x248xf32, #tpu.memory_space<vmem>>, vector<16x124xf32>
    tpu.vector_store %arg21[%c0_114, %c0_115], %178 {strides = array<i32>} : memref<80x248xf32, #tpu.memory_space<vmem>>, vector<16x124xf32>,
    %180 = vector.extract_strided_slice %177 {offsets = [0, 128], sizes = [16, 124], strides = [1, 1]} : vector<16x256xf32> to vector<16x124xf32>
    %c0_116 = arith.constant 0 : index
    %c124 = arith.constant 124 : index
    %181 = vector.load %arg21[%c0_116, %c124] : memref<80x248xf32, #tpu.memory_space<vmem>>, vector<16x124xf32>
    tpu.vector_store %arg21[%c0_116, %c124], %180 {strides = array<i32>} : memref<80x248xf32, #tpu.memory_space<vmem>>, vector<16x124xf32>,
    %182 = vector.extract_strided_slice %177 {offsets = [0, 1], sizes = [16, 124], strides = [1, 1]} : vector<16x256xf32> to vector<16x124xf32>
    %c16_117 = arith.constant 16 : index
    %c0_118 = arith.constant 0 : index
    %183 = vector.load %arg21[%c16_117, %c0_118] : memref<80x248xf32, #tpu.memory_space<vmem>>, vector<16x124xf32>
    tpu.vector_store %arg21[%c16_117, %c0_118], %182 {strides = array<i32>} : memref<80x248xf32, #tpu.memory_space<vmem>>, vector<16x124xf32>,
    %184 = vector.extract_strided_slice %177 {offsets = [0, 129], sizes = [16, 124], strides = [1, 1]} : vector<16x256xf32> to vector<16x124xf32>
    %c16_119 = arith.constant 16 : index
    %c124_120 = arith.constant 124 : index
    %185 = vector.load %arg21[%c16_119, %c124_120] : memref<80x248xf32, #tpu.memory_space<vmem>>, vector<16x124xf32>
    tpu.vector_store %arg21[%c16_119, %c124_120], %184 {strides = array<i32>} : memref<80x248xf32, #tpu.memory_space<vmem>>, vector<16x124xf32>,
    %186 = vector.extract_strided_slice %177 {offsets = [0, 2], sizes = [16, 124], strides = [1, 1]} : vector<16x256xf32> to vector<16x124xf32>
    %c32 = arith.constant 32 : index
    %c0_121 = arith.constant 0 : index
    %187 = vector.load %arg21[%c32, %c0_121] : memref<80x248xf32, #tpu.memory_space<vmem>>, vector<16x124xf32>
    tpu.vector_store %arg21[%c32, %c0_121], %186 {strides = array<i32>} : memref<80x248xf32, #tpu.memory_space<vmem>>, vector<16x124xf32>,
    %188 = vector.extract_strided_slice %177 {offsets = [0, 130], sizes = [16, 124], strides = [1, 1]} : vector<16x256xf32> to vector<16x124xf32>
    %c32_122 = arith.constant 32 : index
    %c124_123 = arith.constant 124 : index
    %189 = vector.load %arg21[%c32_122, %c124_123] : memref<80x248xf32, #tpu.memory_space<vmem>>, vector<16x124xf32>
    tpu.vector_store %arg21[%c32_122, %c124_123], %188 {strides = array<i32>} : memref<80x248xf32, #tpu.memory_space<vmem>>, vector<16x124xf32>,
    %190 = vector.extract_strided_slice %177 {offsets = [0, 3], sizes = [16, 124], strides = [1, 1]} : vector<16x256xf32> to vector<16x124xf32>
    %c48 = arith.constant 48 : index
    %c0_124 = arith.constant 0 : index
    %191 = vector.load %arg21[%c48, %c0_124] : memref<80x248xf32, #tpu.memory_space<vmem>>, vector<16x124xf32>
    tpu.vector_store %arg21[%c48, %c0_124], %190 {strides = array<i32>} : memref<80x248xf32, #tpu.memory_space<vmem>>, vector<16x124xf32>,
    %192 = vector.extract_strided_slice %177 {offsets = [0, 131], sizes = [16, 124], strides = [1, 1]} : vector<16x256xf32> to vector<16x124xf32>
    %c48_125 = arith.constant 48 : index
    %c124_126 = arith.constant 124 : index
    %193 = vector.load %arg21[%c48_125, %c124_126] : memref<80x248xf32, #tpu.memory_space<vmem>>, vector<16x124xf32>
    tpu.vector_store %arg21[%c48_125, %c124_126], %192 {strides = array<i32>} : memref<80x248xf32, #tpu.memory_space<vmem>>, vector<16x124xf32>,
    %194 = vector.extract_strided_slice %177 {offsets = [0, 4], sizes = [16, 124], strides = [1, 1]} : vector<16x256xf32> to vector<16x124xf32>
    %c64 = arith.constant 64 : index
    %c0_127 = arith.constant 0 : index
    %195 = vector.load %arg21[%c64, %c0_127] : memref<80x248xf32, #tpu.memory_space<vmem>>, vector<16x124xf32>
    tpu.vector_store %arg21[%c64, %c0_127], %194 {strides = array<i32>} : memref<80x248xf32, #tpu.memory_space<vmem>>, vector<16x124xf32>,
    %196 = vector.extract_strided_slice %177 {offsets = [0, 132], sizes = [16, 124], strides = [1, 1]} : vector<16x256xf32> to vector<16x124xf32>
    %c64_128 = arith.constant 64 : index
    %c124_129 = arith.constant 124 : index
    %197 = vector.load %arg21[%c64_128, %c124_129] : memref<80x248xf32, #tpu.memory_space<vmem>>, vector<16x124xf32>
    tpu.vector_store %arg21[%c64_128, %c124_129], %196 {strides = array<i32>} : memref<80x248xf32, #tpu.memory_space<vmem>>, vector<16x124xf32>,
    %c0_130 = arith.constant 0 : index
    %c0_131 = arith.constant 0 : index
    %198 = vector.load %arg5[%c0_130, %c0_131] : memref<16x80xf32, #tpu.memory_space<vmem>>, vector<16x80xf32>
    %c0_132 = arith.constant 0 : index
    %c0_133 = arith.constant 0 : index
    %199 = vector.load %arg21[%c0_132, %c0_133] : memref<80x248xf32, #tpu.memory_space<vmem>>, vector<80x248xf32>
    %cst_134 = arith.constant dense<0.000000e+00> : vector<16x248xf32>
    %200 = tpu.matmul %198, %199, %cst_134 {dimension_numbers = #tpu.dot_dimension_numbers<[1], [0], [0], [1], [0, 0, 1, 1], [], []>} : vector<16x80xf32>, vector<80x248xf32>, vector<16x248xf32> -> vector<16x248xf32>
    %c0_135 = arith.constant 0 : index
    %c0_136 = arith.constant 0 : index
    %201 = vector.load %arg6[%c0_135, %c0_136] : memref<16x1xf32, #tpu.memory_space<vmem>>, vector<16x1xf32>
    %202 = vector.broadcast %201 : vector<16x1xf32> to vector<16x248xf32>
    %203 = arith.addf %200, %202 : vector<16x248xf32>
    %204 = vector.extract_strided_slice %203 {offsets = [0, 0], sizes = [16, 124], strides = [1, 1]} : vector<16x248xf32> to vector<16x124xf32>
    %205 = vector.extract_strided_slice %204 {offsets = [0, 0], sizes = [16, 123], strides = [1, 1]} : vector<16x124xf32> to vector<16x123xf32>
    %206 = vector.extract_strided_slice %204 {offsets = [0, 1], sizes = [16, 123], strides = [1, 1]} : vector<16x124xf32> to vector<16x123xf32>
    %207 = arith.maximumf %205, %206 : vector<16x123xf32>
    %208 = vector.extract_strided_slice %137 {offsets = [0, 0], sizes = [123, 62], strides = [1, 1]} : vector<255x128xf32> to vector<123x62xf32>
    %cst_137 = arith.constant dense<0.000000e+00> : vector<16x62xf32>
    %209 = tpu.matmul %207, %208, %cst_137 {dimension_numbers = #tpu.dot_dimension_numbers<[1], [0], [0], [1], [0, 0, 1, 1], [], []>} : vector<16x123xf32>, vector<123x62xf32>, vector<16x62xf32> -> vector<16x62xf32>
    %210 = vector.extract_strided_slice %203 {offsets = [0, 124], sizes = [16, 124], strides = [1, 1]} : vector<16x248xf32> to vector<16x124xf32>
    %211 = vector.extract_strided_slice %210 {offsets = [0, 0], sizes = [16, 123], strides = [1, 1]} : vector<16x124xf32> to vector<16x123xf32>
    %212 = vector.extract_strided_slice %210 {offsets = [0, 1], sizes = [16, 123], strides = [1, 1]} : vector<16x124xf32> to vector<16x123xf32>
    %213 = arith.maximumf %211, %212 : vector<16x123xf32>
    %214 = vector.extract_strided_slice %137 {offsets = [0, 0], sizes = [123, 62], strides = [1, 1]} : vector<255x128xf32> to vector<123x62xf32>
    %cst_138 = arith.constant dense<0.000000e+00> : vector<16x62xf32>
    %215 = tpu.matmul %213, %214, %cst_138 {dimension_numbers = #tpu.dot_dimension_numbers<[1], [0], [0], [1], [0, 0, 1, 1], [], []>} : vector<16x123xf32>, vector<123x62xf32>, vector<16x62xf32> -> vector<16x62xf32>
    %216 = tpu.concatenate %209, %215 in 1 : vector<16x62xf32>, vector<16x62xf32> -> vector<16x124xf32>
    %c0_139 = arith.constant 0 : index
    %c0_140 = arith.constant 0 : index
    %217 = vector.load %arg7[%c0_139, %c0_140] : memref<16x1xf32, #tpu.memory_space<vmem>>, vector<16x1xf32>
    %c0_141 = arith.constant 0 : index
    %c0_142 = arith.constant 0 : index
    %218 = vector.load %arg8[%c0_141, %c0_142] : memref<16x1xf32, #tpu.memory_space<vmem>>, vector<16x1xf32>
    %cst_143 = arith.constant dense<0.000000e+00> : vector<124xf32>
    %219 = vector.multi_reduction <add>, %216, %cst_143 [0] : vector<16x124xf32> to vector<124xf32>
    %220 = vector.shape_cast %219 : vector<124xf32> to vector<1x124xf32>
    %cst_144 = arith.constant 1.600000e+01 : f32
    %221 = vector.broadcast %cst_144 : f32 to vector<1x124xf32>
    %222 = arith.divf %220, %221 : vector<1x124xf32>
    %223 = vector.broadcast %222 : vector<1x124xf32> to vector<16x124xf32>
    %224 = arith.subf %216, %223 : vector<16x124xf32>
    %225 = arith.mulf %224, %224 : vector<16x124xf32>
    %cst_145 = arith.constant dense<0.000000e+00> : vector<124xf32>
    %226 = vector.multi_reduction <add>, %225, %cst_145 [0] : vector<16x124xf32> to vector<124xf32>
    %227 = vector.shape_cast %226 : vector<124xf32> to vector<1x124xf32>
    %cst_146 = arith.constant 1.600000e+01 : f32
    %228 = vector.broadcast %cst_146 : f32 to vector<1x124xf32>
    %229 = arith.divf %227, %228 : vector<1x124xf32>
    %230 = vector.broadcast %222 : vector<1x124xf32> to vector<16x124xf32>
    %231 = arith.subf %216, %230 : vector<16x124xf32>
    %cst_147 = arith.constant 9.99999974E-6 : f32
    %232 = vector.broadcast %cst_147 : f32 to vector<1x124xf32>
    %233 = arith.addf %229, %232 : vector<1x124xf32>
    %234 = math.rsqrt %233 : vector<1x124xf32>
    %235 = vector.broadcast %234 : vector<1x124xf32> to vector<16x124xf32>
    %236 = arith.mulf %231, %235 : vector<16x124xf32>
    %237 = vector.broadcast %217 : vector<16x1xf32> to vector<16x124xf32>
    %238 = arith.mulf %236, %237 : vector<16x124xf32>
    %239 = vector.broadcast %218 : vector<16x1xf32> to vector<16x124xf32>
    %240 = arith.addf %238, %239 : vector<16x124xf32>
    %cst_148 = arith.constant 0.000000e+00 : f32
    %241 = vector.broadcast %cst_148 : f32 to vector<16x124xf32>
    %242 = arith.cmpf oge, %240, %241 : vector<16x124xf32>
    %cst_149 = arith.constant 0.00999999977 : f32
    %243 = vector.broadcast %cst_149 : f32 to vector<16x124xf32>
    %244 = arith.mulf %243, %240 : vector<16x124xf32>
    %245 = arith.select %242, %240, %244 : vector<16x124xi1>, vector<16x124xf32>
    %246 = vector.extract_strided_slice %245 {offsets = [0, 0], sizes = [1, 62], strides = [1, 1]} : vector<16x124xf32> to vector<1x62xf32>
    %c0_150 = arith.constant 0 : index
    %c0_151 = arith.constant 0 : index
    %247 = vector.load %arg22[%c0_150, %c0_151] : memref<2x992xf32, #tpu.memory_space<vmem>>, vector<1x62xf32>
    tpu.vector_store %arg22[%c0_150, %c0_151], %246 {strides = array<i32>} : memref<2x992xf32, #tpu.memory_space<vmem>>, vector<1x62xf32>,
    %248 = vector.extract_strided_slice %245 {offsets = [1, 0], sizes = [1, 62], strides = [1, 1]} : vector<16x124xf32> to vector<1x62xf32>
    %c0_152 = arith.constant 0 : index
    %c62 = arith.constant 62 : index
    %249 = vector.load %arg22[%c0_152, %c62] : memref<2x992xf32, #tpu.memory_space<vmem>>, vector<1x62xf32>
    tpu.vector_store %arg22[%c0_152, %c62], %248 {strides = array<i32>} : memref<2x992xf32, #tpu.memory_space<vmem>>, vector<1x62xf32>,
    %250 = vector.extract_strided_slice %245 {offsets = [2, 0], sizes = [1, 62], strides = [1, 1]} : vector<16x124xf32> to vector<1x62xf32>
    %c0_153 = arith.constant 0 : index
    %c124_154 = arith.constant 124 : index
    %251 = vector.load %arg22[%c0_153, %c124_154] : memref<2x992xf32, #tpu.memory_space<vmem>>, vector<1x62xf32>
    tpu.vector_store %arg22[%c0_153, %c124_154], %250 {strides = array<i32>} : memref<2x992xf32, #tpu.memory_space<vmem>>, vector<1x62xf32>,
    %252 = vector.extract_strided_slice %245 {offsets = [3, 0], sizes = [1, 62], strides = [1, 1]} : vector<16x124xf32> to vector<1x62xf32>
    %c0_155 = arith.constant 0 : index
    %c186 = arith.constant 186 : index
    %253 = vector.load %arg22[%c0_155, %c186] : memref<2x992xf32, #tpu.memory_space<vmem>>, vector<1x62xf32>
    tpu.vector_store %arg22[%c0_155, %c186], %252 {strides = array<i32>} : memref<2x992xf32, #tpu.memory_space<vmem>>, vector<1x62xf32>,
    %254 = vector.extract_strided_slice %245 {offsets = [4, 0], sizes = [1, 62], strides = [1, 1]} : vector<16x124xf32> to vector<1x62xf32>
    %c0_156 = arith.constant 0 : index
    %c248 = arith.constant 248 : index
    %255 = vector.load %arg22[%c0_156, %c248] : memref<2x992xf32, #tpu.memory_space<vmem>>, vector<1x62xf32>
    tpu.vector_store %arg22[%c0_156, %c248], %254 {strides = array<i32>} : memref<2x992xf32, #tpu.memory_space<vmem>>, vector<1x62xf32>,
    %256 = vector.extract_strided_slice %245 {offsets = [5, 0], sizes = [1, 62], strides = [1, 1]} : vector<16x124xf32> to vector<1x62xf32>
    %c0_157 = arith.constant 0 : index
    %c310 = arith.constant 310 : index
    %257 = vector.load %arg22[%c0_157, %c310] : memref<2x992xf32, #tpu.memory_space<vmem>>, vector<1x62xf32>
    tpu.vector_store %arg22[%c0_157, %c310], %256 {strides = array<i32>} : memref<2x992xf32, #tpu.memory_space<vmem>>, vector<1x62xf32>,
    %258 = vector.extract_strided_slice %245 {offsets = [6, 0], sizes = [1, 62], strides = [1, 1]} : vector<16x124xf32> to vector<1x62xf32>
    %c0_158 = arith.constant 0 : index
    %c372 = arith.constant 372 : index
    %259 = vector.load %arg22[%c0_158, %c372] : memref<2x992xf32, #tpu.memory_space<vmem>>, vector<1x62xf32>
    tpu.vector_store %arg22[%c0_158, %c372], %258 {strides = array<i32>} : memref<2x992xf32, #tpu.memory_space<vmem>>, vector<1x62xf32>,
    %260 = vector.extract_strided_slice %245 {offsets = [7, 0], sizes = [1, 62], strides = [1, 1]} : vector<16x124xf32> to vector<1x62xf32>
    %c0_159 = arith.constant 0 : index
    %c434 = arith.constant 434 : index
    %261 = vector.load %arg22[%c0_159, %c434] : memref<2x992xf32, #tpu.memory_space<vmem>>, vector<1x62xf32>
    tpu.vector_store %arg22[%c0_159, %c434], %260 {strides = array<i32>} : memref<2x992xf32, #tpu.memory_space<vmem>>, vector<1x62xf32>,
    %262 = vector.extract_strided_slice %245 {offsets = [8, 0], sizes = [1, 62], strides = [1, 1]} : vector<16x124xf32> to vector<1x62xf32>
    %c0_160 = arith.constant 0 : index
    %c496 = arith.constant 496 : index
    %263 = vector.load %arg22[%c0_160, %c496] : memref<2x992xf32, #tpu.memory_space<vmem>>, vector<1x62xf32>
    tpu.vector_store %arg22[%c0_160, %c496], %262 {strides = array<i32>} : memref<2x992xf32, #tpu.memory_space<vmem>>, vector<1x62xf32>,
    %264 = vector.extract_strided_slice %245 {offsets = [9, 0], sizes = [1, 62], strides = [1, 1]} : vector<16x124xf32> to vector<1x62xf32>
    %c0_161 = arith.constant 0 : index
    %c558 = arith.constant 558 : index
    %265 = vector.load %arg22[%c0_161, %c558] : memref<2x992xf32, #tpu.memory_space<vmem>>, vector<1x62xf32>
    tpu.vector_store %arg22[%c0_161, %c558], %264 {strides = array<i32>} : memref<2x992xf32, #tpu.memory_space<vmem>>, vector<1x62xf32>,
    %266 = vector.extract_strided_slice %245 {offsets = [10, 0], sizes = [1, 62], strides = [1, 1]} : vector<16x124xf32> to vector<1x62xf32>
    %c0_162 = arith.constant 0 : index
    %c620 = arith.constant 620 : index
    %267 = vector.load %arg22[%c0_162, %c620] : memref<2x992xf32, #tpu.memory_space<vmem>>, vector<1x62xf32>
    tpu.vector_store %arg22[%c0_162, %c620], %266 {strides = array<i32>} : memref<2x992xf32, #tpu.memory_space<vmem>>, vector<1x62xf32>,
    %268 = vector.extract_strided_slice %245 {offsets = [11, 0], sizes = [1, 62], strides = [1, 1]} : vector<16x124xf32> to vector<1x62xf32>
    %c0_163 = arith.constant 0 : index
    %c682 = arith.constant 682 : index
    %269 = vector.load %arg22[%c0_163, %c682] : memref<2x992xf32, #tpu.memory_space<vmem>>, vector<1x62xf32>
    tpu.vector_store %arg22[%c0_163, %c682], %268 {strides = array<i32>} : memref<2x992xf32, #tpu.memory_space<vmem>>, vector<1x62xf32>,
    %270 = vector.extract_strided_slice %245 {offsets = [12, 0], sizes = [1, 62], strides = [1, 1]} : vector<16x124xf32> to vector<1x62xf32>
    %c0_164 = arith.constant 0 : index
    %c744 = arith.constant 744 : index
    %271 = vector.load %arg22[%c0_164, %c744] : memref<2x992xf32, #tpu.memory_space<vmem>>, vector<1x62xf32>
    tpu.vector_store %arg22[%c0_164, %c744], %270 {strides = array<i32>} : memref<2x992xf32, #tpu.memory_space<vmem>>, vector<1x62xf32>,
    %272 = vector.extract_strided_slice %245 {offsets = [13, 0], sizes = [1, 62], strides = [1, 1]} : vector<16x124xf32> to vector<1x62xf32>
    %c0_165 = arith.constant 0 : index
    %c806 = arith.constant 806 : index
    %273 = vector.load %arg22[%c0_165, %c806] : memref<2x992xf32, #tpu.memory_space<vmem>>, vector<1x62xf32>
    tpu.vector_store %arg22[%c0_165, %c806], %272 {strides = array<i32>} : memref<2x992xf32, #tpu.memory_space<vmem>>, vector<1x62xf32>,
    %274 = vector.extract_strided_slice %245 {offsets = [14, 0], sizes = [1, 62], strides = [1, 1]} : vector<16x124xf32> to vector<1x62xf32>
    %c0_166 = arith.constant 0 : index
    %c868 = arith.constant 868 : index
    %275 = vector.load %arg22[%c0_166, %c868] : memref<2x992xf32, #tpu.memory_space<vmem>>, vector<1x62xf32>
    tpu.vector_store %arg22[%c0_166, %c868], %274 {strides = array<i32>} : memref<2x992xf32, #tpu.memory_space<vmem>>, vector<1x62xf32>,
    %276 = vector.extract_strided_slice %245 {offsets = [15, 0], sizes = [1, 62], strides = [1, 1]} : vector<16x124xf32> to vector<1x62xf32>
    %c0_167 = arith.constant 0 : index
    %c930 = arith.constant 930 : index
    %277 = vector.load %arg22[%c0_167, %c930] : memref<2x992xf32, #tpu.memory_space<vmem>>, vector<1x62xf32>
    tpu.vector_store %arg22[%c0_167, %c930], %276 {strides = array<i32>} : memref<2x992xf32, #tpu.memory_space<vmem>>, vector<1x62xf32>,
    %278 = vector.extract_strided_slice %245 {offsets = [0, 62], sizes = [1, 62], strides = [1, 1]} : vector<16x124xf32> to vector<1x62xf32>
    %c1_168 = arith.constant 1 : index
    %c0_169 = arith.constant 0 : index
    %279 = vector.load %arg22[%c1_168, %c0_169] : memref<2x992xf32, #tpu.memory_space<vmem>>, vector<1x62xf32>
    tpu.vector_store %arg22[%c1_168, %c0_169], %278 {strides = array<i32>} : memref<2x992xf32, #tpu.memory_space<vmem>>, vector<1x62xf32>,
    %280 = vector.extract_strided_slice %245 {offsets = [1, 62], sizes = [1, 62], strides = [1, 1]} : vector<16x124xf32> to vector<1x62xf32>
    %c1_170 = arith.constant 1 : index
    %c62_171 = arith.constant 62 : index
    %281 = vector.load %arg22[%c1_170, %c62_171] : memref<2x992xf32, #tpu.memory_space<vmem>>, vector<1x62xf32>
    tpu.vector_store %arg22[%c1_170, %c62_171], %280 {strides = array<i32>} : memref<2x992xf32, #tpu.memory_space<vmem>>, vector<1x62xf32>,
    %282 = vector.extract_strided_slice %245 {offsets = [2, 62], sizes = [1, 62], strides = [1, 1]} : vector<16x124xf32> to vector<1x62xf32>
    %c1_172 = arith.constant 1 : index
    %c124_173 = arith.constant 124 : index
    %283 = vector.load %arg22[%c1_172, %c124_173] : memref<2x992xf32, #tpu.memory_space<vmem>>, vector<1x62xf32>
    tpu.vector_store %arg22[%c1_172, %c124_173], %282 {strides = array<i32>} : memref<2x992xf32, #tpu.memory_space<vmem>>, vector<1x62xf32>,
    %284 = vector.extract_strided_slice %245 {offsets = [3, 62], sizes = [1, 62], strides = [1, 1]} : vector<16x124xf32> to vector<1x62xf32>
    %c1_174 = arith.constant 1 : index
    %c186_175 = arith.constant 186 : index
    %285 = vector.load %arg22[%c1_174, %c186_175] : memref<2x992xf32, #tpu.memory_space<vmem>>, vector<1x62xf32>
    tpu.vector_store %arg22[%c1_174, %c186_175], %284 {strides = array<i32>} : memref<2x992xf32, #tpu.memory_space<vmem>>, vector<1x62xf32>,
    %286 = vector.extract_strided_slice %245 {offsets = [4, 62], sizes = [1, 62], strides = [1, 1]} : vector<16x124xf32> to vector<1x62xf32>
    %c1_176 = arith.constant 1 : index
    %c248_177 = arith.constant 248 : index
    %287 = vector.load %arg22[%c1_176, %c248_177] : memref<2x992xf32, #tpu.memory_space<vmem>>, vector<1x62xf32>
    tpu.vector_store %arg22[%c1_176, %c248_177], %286 {strides = array<i32>} : memref<2x992xf32, #tpu.memory_space<vmem>>, vector<1x62xf32>,
    %288 = vector.extract_strided_slice %245 {offsets = [5, 62], sizes = [1, 62], strides = [1, 1]} : vector<16x124xf32> to vector<1x62xf32>
    %c1_178 = arith.constant 1 : index
    %c310_179 = arith.constant 310 : index
    %289 = vector.load %arg22[%c1_178, %c310_179] : memref<2x992xf32, #tpu.memory_space<vmem>>, vector<1x62xf32>
    tpu.vector_store %arg22[%c1_178, %c310_179], %288 {strides = array<i32>} : memref<2x992xf32, #tpu.memory_space<vmem>>, vector<1x62xf32>,
    %290 = vector.extract_strided_slice %245 {offsets = [6, 62], sizes = [1, 62], strides = [1, 1]} : vector<16x124xf32> to vector<1x62xf32>
    %c1_180 = arith.constant 1 : index
    %c372_181 = arith.constant 372 : index
    %291 = vector.load %arg22[%c1_180, %c372_181] : memref<2x992xf32, #tpu.memory_space<vmem>>, vector<1x62xf32>
    tpu.vector_store %arg22[%c1_180, %c372_181], %290 {strides = array<i32>} : memref<2x992xf32, #tpu.memory_space<vmem>>, vector<1x62xf32>,
    %292 = vector.extract_strided_slice %245 {offsets = [7, 62], sizes = [1, 62], strides = [1, 1]} : vector<16x124xf32> to vector<1x62xf32>
    %c1_182 = arith.constant 1 : index
    %c434_183 = arith.constant 434 : index
    %293 = vector.load %arg22[%c1_182, %c434_183] : memref<2x992xf32, #tpu.memory_space<vmem>>, vector<1x62xf32>
    tpu.vector_store %arg22[%c1_182, %c434_183], %292 {strides = array<i32>} : memref<2x992xf32, #tpu.memory_space<vmem>>, vector<1x62xf32>,
    %294 = vector.extract_strided_slice %245 {offsets = [8, 62], sizes = [1, 62], strides = [1, 1]} : vector<16x124xf32> to vector<1x62xf32>
    %c1_184 = arith.constant 1 : index
    %c496_185 = arith.constant 496 : index
    %295 = vector.load %arg22[%c1_184, %c496_185] : memref<2x992xf32, #tpu.memory_space<vmem>>, vector<1x62xf32>
    tpu.vector_store %arg22[%c1_184, %c496_185], %294 {strides = array<i32>} : memref<2x992xf32, #tpu.memory_space<vmem>>, vector<1x62xf32>,
    %296 = vector.extract_strided_slice %245 {offsets = [9, 62], sizes = [1, 62], strides = [1, 1]} : vector<16x124xf32> to vector<1x62xf32>
    %c1_186 = arith.constant 1 : index
    %c558_187 = arith.constant 558 : index
    %297 = vector.load %arg22[%c1_186, %c558_187] : memref<2x992xf32, #tpu.memory_space<vmem>>, vector<1x62xf32>
    tpu.vector_store %arg22[%c1_186, %c558_187], %296 {strides = array<i32>} : memref<2x992xf32, #tpu.memory_space<vmem>>, vector<1x62xf32>,
    %298 = vector.extract_strided_slice %245 {offsets = [10, 62], sizes = [1, 62], strides = [1, 1]} : vector<16x124xf32> to vector<1x62xf32>
    %c1_188 = arith.constant 1 : index
    %c620_189 = arith.constant 620 : index
    %299 = vector.load %arg22[%c1_188, %c620_189] : memref<2x992xf32, #tpu.memory_space<vmem>>, vector<1x62xf32>
    tpu.vector_store %arg22[%c1_188, %c620_189], %298 {strides = array<i32>} : memref<2x992xf32, #tpu.memory_space<vmem>>, vector<1x62xf32>,
    %300 = vector.extract_strided_slice %245 {offsets = [11, 62], sizes = [1, 62], strides = [1, 1]} : vector<16x124xf32> to vector<1x62xf32>
    %c1_190 = arith.constant 1 : index
    %c682_191 = arith.constant 682 : index
    %301 = vector.load %arg22[%c1_190, %c682_191] : memref<2x992xf32, #tpu.memory_space<vmem>>, vector<1x62xf32>
    tpu.vector_store %arg22[%c1_190, %c682_191], %300 {strides = array<i32>} : memref<2x992xf32, #tpu.memory_space<vmem>>, vector<1x62xf32>,
    %302 = vector.extract_strided_slice %245 {offsets = [12, 62], sizes = [1, 62], strides = [1, 1]} : vector<16x124xf32> to vector<1x62xf32>
    %c1_192 = arith.constant 1 : index
    %c744_193 = arith.constant 744 : index
    %303 = vector.load %arg22[%c1_192, %c744_193] : memref<2x992xf32, #tpu.memory_space<vmem>>, vector<1x62xf32>
    tpu.vector_store %arg22[%c1_192, %c744_193], %302 {strides = array<i32>} : memref<2x992xf32, #tpu.memory_space<vmem>>, vector<1x62xf32>,
    %304 = vector.extract_strided_slice %245 {offsets = [13, 62], sizes = [1, 62], strides = [1, 1]} : vector<16x124xf32> to vector<1x62xf32>
    %c1_194 = arith.constant 1 : index
    %c806_195 = arith.constant 806 : index
    %305 = vector.load %arg22[%c1_194, %c806_195] : memref<2x992xf32, #tpu.memory_space<vmem>>, vector<1x62xf32>
    tpu.vector_store %arg22[%c1_194, %c806_195], %304 {strides = array<i32>} : memref<2x992xf32, #tpu.memory_space<vmem>>, vector<1x62xf32>,
    %306 = vector.extract_strided_slice %245 {offsets = [14, 62], sizes = [1, 62], strides = [1, 1]} : vector<16x124xf32> to vector<1x62xf32>
    %c1_196 = arith.constant 1 : index
    %c868_197 = arith.constant 868 : index
    %307 = vector.load %arg22[%c1_196, %c868_197] : memref<2x992xf32, #tpu.memory_space<vmem>>, vector<1x62xf32>
    tpu.vector_store %arg22[%c1_196, %c868_197], %306 {strides = array<i32>} : memref<2x992xf32, #tpu.memory_space<vmem>>, vector<1x62xf32>,
    %308 = vector.extract_strided_slice %245 {offsets = [15, 62], sizes = [1, 62], strides = [1, 1]} : vector<16x124xf32> to vector<1x62xf32>
    %c1_198 = arith.constant 1 : index
    %c930_199 = arith.constant 930 : index
    %309 = vector.load %arg22[%c1_198, %c930_199] : memref<2x992xf32, #tpu.memory_space<vmem>>, vector<1x62xf32>
    tpu.vector_store %arg22[%c1_198, %c930_199], %308 {strides = array<i32>} : memref<2x992xf32, #tpu.memory_space<vmem>>, vector<1x62xf32>,
    %c0_200 = arith.constant 0 : index
    %c0_201 = arith.constant 0 : index
    %310 = vector.load %arg22[%c0_200, %c0_201] : memref<2x992xf32, #tpu.memory_space<vmem>>, vector<2x992xf32>
    %c0_202 = arith.constant 0 : index
    %c0_203 = arith.constant 0 : index
    %311 = vector.load %arg9[%c0_202, %c0_203] : memref<992x64xf32, #tpu.memory_space<vmem>>, vector<992x64xf32>
    %cst_204 = arith.constant dense<0.000000e+00> : vector<2x64xf32>
    %312 = tpu.matmul %310, %311, %cst_204 {dimension_numbers = #tpu.dot_dimension_numbers<[1], [0], [0], [1], [0, 0, 1, 1], [], []>} : vector<2x992xf32>, vector<992x64xf32>, vector<2x64xf32> -> vector<2x64xf32>
    %c0_205 = arith.constant 0 : index
    %c0_206 = arith.constant 0 : index
    %313 = vector.load %arg10[%c0_205, %c0_206] : memref<1x64xf32, #tpu.memory_space<vmem>>, vector<1x64xf32>
    %314 = vector.broadcast %313 : vector<1x64xf32> to vector<2x64xf32>
    %315 = arith.addf %312, %314 : vector<2x64xf32>
    %c0_207 = arith.constant 0 : index
    %c0_208 = arith.constant 0 : index
    %316 = vector.load %arg11[%c0_207, %c0_208] : memref<1x64xf32, #tpu.memory_space<vmem>>, vector<1x64xf32>
    %c0_209 = arith.constant 0 : index
    %c0_210 = arith.constant 0 : index
    %317 = vector.load %arg12[%c0_209, %c0_210] : memref<1x64xf32, #tpu.memory_space<vmem>>, vector<1x64xf32>
    %cst_211 = arith.constant dense<0.000000e+00> : vector<2xf32>
    %318 = vector.multi_reduction <add>, %315, %cst_211 [1] : vector<2x64xf32> to vector<2xf32>
    %319 = vector.shape_cast %318 : vector<2xf32> to vector<2x1xf32>
    %cst_212 = arith.constant 6.400000e+01 : f32
    %320 = vector.broadcast %cst_212 : f32 to vector<2x1xf32>
    %321 = arith.divf %319, %320 : vector<2x1xf32>
    %322 = vector.broadcast %321 : vector<2x1xf32> to vector<2x64xf32>
    %323 = arith.subf %315, %322 : vector<2x64xf32>
    %324 = arith.mulf %323, %323 : vector<2x64xf32>
    %cst_213 = arith.constant dense<0.000000e+00> : vector<2xf32>
    %325 = vector.multi_reduction <add>, %324, %cst_213 [1] : vector<2x64xf32> to vector<2xf32>
    %326 = vector.shape_cast %325 : vector<2xf32> to vector<2x1xf32>
    %cst_214 = arith.constant 6.400000e+01 : f32
    %327 = vector.broadcast %cst_214 : f32 to vector<2x1xf32>
    %328 = arith.divf %326, %327 : vector<2x1xf32>
    %329 = vector.broadcast %321 : vector<2x1xf32> to vector<2x64xf32>
    %330 = arith.subf %315, %329 : vector<2x64xf32>
    %cst_215 = arith.constant 9.99999974E-6 : f32
    %331 = vector.broadcast %cst_215 : f32 to vector<2x1xf32>
    %332 = arith.addf %328, %331 : vector<2x1xf32>
    %333 = math.rsqrt %332 : vector<2x1xf32>
    %334 = vector.broadcast %333 : vector<2x1xf32> to vector<2x64xf32>
    %335 = arith.mulf %330, %334 : vector<2x64xf32>
    %336 = vector.broadcast %316 : vector<1x64xf32> to vector<2x64xf32>
    %337 = arith.mulf %335, %336 : vector<2x64xf32>
    %338 = vector.broadcast %317 : vector<1x64xf32> to vector<2x64xf32>
    %339 = arith.addf %337, %338 : vector<2x64xf32>
    %cst_216 = arith.constant 0.000000e+00 : f32
    %340 = vector.broadcast %cst_216 : f32 to vector<2x64xf32>
    %341 = arith.cmpf oge, %339, %340 : vector<2x64xf32>
    %cst_217 = arith.constant 0.00999999977 : f32
    %342 = vector.broadcast %cst_217 : f32 to vector<2x64xf32>
    %343 = arith.mulf %342, %339 : vector<2x64xf32>
    %344 = arith.select %341, %339, %343 : vector<2x64xi1>, vector<2x64xf32>
    %c0_218 = arith.constant 0 : index
    %c0_219 = arith.constant 0 : index
    %345 = vector.load %arg13[%c0_218, %c0_219] : memref<64x64xf32, #tpu.memory_space<vmem>>, vector<64x64xf32>
    %cst_220 = arith.constant dense<0.000000e+00> : vector<2x64xf32>
    %346 = tpu.matmul %344, %345, %cst_220 {dimension_numbers = #tpu.dot_dimension_numbers<[1], [0], [0], [1], [0, 0, 1, 1], [], []>} : vector<2x64xf32>, vector<64x64xf32>, vector<2x64xf32> -> vector<2x64xf32>
    %c0_221 = arith.constant 0 : index
    %c0_222 = arith.constant 0 : index
    %347 = vector.load %arg14[%c0_221, %c0_222] : memref<1x64xf32, #tpu.memory_space<vmem>>, vector<1x64xf32>
    %348 = vector.broadcast %347 : vector<1x64xf32> to vector<2x64xf32>
    %349 = arith.addf %346, %348 : vector<2x64xf32>
    %c0_223 = arith.constant 0 : index
    %c0_224 = arith.constant 0 : index
    %350 = vector.load %arg15[%c0_223, %c0_224] : memref<1x64xf32, #tpu.memory_space<vmem>>, vector<1x64xf32>
    %c0_225 = arith.constant 0 : index
    %c0_226 = arith.constant 0 : index
    %351 = vector.load %arg16[%c0_225, %c0_226] : memref<1x64xf32, #tpu.memory_space<vmem>>, vector<1x64xf32>
    %cst_227 = arith.constant dense<0.000000e+00> : vector<2xf32>
    %352 = vector.multi_reduction <add>, %349, %cst_227 [1] : vector<2x64xf32> to vector<2xf32>
    %353 = vector.shape_cast %352 : vector<2xf32> to vector<2x1xf32>
    %cst_228 = arith.constant 6.400000e+01 : f32
    %354 = vector.broadcast %cst_228 : f32 to vector<2x1xf32>
    %355 = arith.divf %353, %354 : vector<2x1xf32>
    %356 = vector.broadcast %355 : vector<2x1xf32> to vector<2x64xf32>
    %357 = arith.subf %349, %356 : vector<2x64xf32>
    %358 = arith.mulf %357, %357 : vector<2x64xf32>
    %cst_229 = arith.constant dense<0.000000e+00> : vector<2xf32>
    %359 = vector.multi_reduction <add>, %358, %cst_229 [1] : vector<2x64xf32> to vector<2xf32>
    %360 = vector.shape_cast %359 : vector<2xf32> to vector<2x1xf32>
    %cst_230 = arith.constant 6.400000e+01 : f32
    %361 = vector.broadcast %cst_230 : f32 to vector<2x1xf32>
    %362 = arith.divf %360, %361 : vector<2x1xf32>
    %363 = vector.broadcast %355 : vector<2x1xf32> to vector<2x64xf32>
    %364 = arith.subf %349, %363 : vector<2x64xf32>
    %cst_231 = arith.constant 9.99999974E-6 : f32
    %365 = vector.broadcast %cst_231 : f32 to vector<2x1xf32>
    %366 = arith.addf %362, %365 : vector<2x1xf32>
    %367 = math.rsqrt %366 : vector<2x1xf32>
    %368 = vector.broadcast %367 : vector<2x1xf32> to vector<2x64xf32>
    %369 = arith.mulf %364, %368 : vector<2x64xf32>
    %370 = vector.broadcast %350 : vector<1x64xf32> to vector<2x64xf32>
    %371 = arith.mulf %369, %370 : vector<2x64xf32>
    %372 = vector.broadcast %351 : vector<1x64xf32> to vector<2x64xf32>
    %373 = arith.addf %371, %372 : vector<2x64xf32>
    %cst_232 = arith.constant 0.000000e+00 : f32
    %374 = vector.broadcast %cst_232 : f32 to vector<2x64xf32>
    %375 = arith.cmpf oge, %373, %374 : vector<2x64xf32>
    %cst_233 = arith.constant 0.00999999977 : f32
    %376 = vector.broadcast %cst_233 : f32 to vector<2x64xf32>
    %377 = arith.mulf %376, %373 : vector<2x64xf32>
    %378 = arith.select %375, %373, %377 : vector<2x64xi1>, vector<2x64xf32>
    %c0_234 = arith.constant 0 : index
    %c0_235 = arith.constant 0 : index
    %379 = vector.load %arg17[%c0_234, %c0_235] : memref<64x10xf32, #tpu.memory_space<vmem>>, vector<64x10xf32>
    %cst_236 = arith.constant dense<0.000000e+00> : vector<2x10xf32>
    %380 = tpu.matmul %378, %379, %cst_236 {dimension_numbers = #tpu.dot_dimension_numbers<[1], [0], [0], [1], [0, 0, 1, 1], [], []>} : vector<2x64xf32>, vector<64x10xf32>, vector<2x10xf32> -> vector<2x10xf32>
    %c0_237 = arith.constant 0 : index
    %c0_238 = arith.constant 0 : index
    %381 = vector.load %arg18[%c0_237, %c0_238] : memref<1x10xf32, #tpu.memory_space<vmem>>, vector<1x10xf32>
    %382 = vector.broadcast %381 : vector<1x10xf32> to vector<2x10xf32>
    %383 = arith.addf %380, %382 : vector<2x10xf32>
    %c0_239 = arith.constant 0 : index
    %c0_240 = arith.constant 0 : index
    %384 = vector.load %arg19[%c0_239, %c0_240] : memref<2x10xf32, #tpu.memory_space<vmem>>, vector<2x10xf32>
    tpu.vector_store %arg19[%c0_239, %c0_240], %383 {strides = array<i32>} : memref<2x10xf32, #tpu.memory_space<vmem>>, vector<2x10xf32>,
    return
  }
  func.func @transform_0(%arg0: i32) -> (i32, i32) {
    %c0_i32 = arith.constant 0 : i32
    %c0_i32_0 = arith.constant 0 : i32
    %c0_i32_1 = arith.constant 0 : i32
    return %c0_i32, %c0_i32_0 : i32, i32
  }
  func.func @transform_1(%arg0: i32) -> (i32, i32) {
    %c0_i32 = arith.constant 0 : i32
    %c0_i32_0 = arith.constant 0 : i32
    %c0_i32_1 = arith.constant 0 : i32
    return %c0_i32, %c0_i32_0 : i32, i32
  }
  func.func @transform_2(%arg0: i32) -> (i32, i32) {
    %c0_i32 = arith.constant 0 : i32
    %c0_i32_0 = arith.constant 0 : i32
    %c0_i32_1 = arith.constant 0 : i32
    return %c0_i32, %c0_i32_0 : i32, i32
  }
  func.func @transform_3(%arg0: i32) -> (i32, i32) {
    %c0_i32 = arith.constant 0 : i32
    %c0_i32_0 = arith.constant 0 : i32
    %c0_i32_1 = arith.constant 0 : i32
    return %c0_i32, %c0_i32_0 : i32, i32
  }
  func.func @transform_4(%arg0: i32) -> (i32, i32) {
    %c0_i32 = arith.constant 0 : i32
    %c0_i32_0 = arith.constant 0 : i32
    %c0_i32_1 = arith.constant 0 : i32
    return %c0_i32, %c0_i32_0 : i32, i32
  }
  func.func @transform_5(%arg0: i32) -> (i32, i32) {
    %c0_i32 = arith.constant 0 : i32
    %c0_i32_0 = arith.constant 0 : i32
    %c0_i32_1 = arith.constant 0 : i32
    return %c0_i32, %c0_i32_0 : i32, i32
  }
  func.func @transform_6(%arg0: i32) -> (i32, i32) {
    %c0_i32 = arith.constant 0 : i32
    %c0_i32_0 = arith.constant 0 : i32
    %c0_i32_1 = arith.constant 0 : i32
    return %c0_i32, %c0_i32_0 : i32, i32
  }
  func.func @transform_7(%arg0: i32) -> (i32, i32) {
    %c0_i32 = arith.constant 0 : i32
    %c0_i32_0 = arith.constant 0 : i32
    %c0_i32_1 = arith.constant 0 : i32
    return %c0_i32, %c0_i32_0 : i32, i32
  }
  func.func @transform_8(%arg0: i32) -> (i32, i32) {
    %c0_i32 = arith.constant 0 : i32
    %c0_i32_0 = arith.constant 0 : i32
    %c0_i32_1 = arith.constant 0 : i32
    return %c0_i32, %c0_i32_0 : i32, i32
  }
  func.func @transform_9(%arg0: i32) -> (i32, i32) {
    %c0_i32 = arith.constant 0 : i32
    %c0_i32_0 = arith.constant 0 : i32
    %c0_i32_1 = arith.constant 0 : i32
    return %c0_i32, %c0_i32_0 : i32, i32
  }
  func.func @transform_10(%arg0: i32) -> (i32, i32) {
    %c0_i32 = arith.constant 0 : i32
    %c0_i32_0 = arith.constant 0 : i32
    %c0_i32_1 = arith.constant 0 : i32
    return %c0_i32, %c0_i32_0 : i32, i32
  }
  func.func @transform_11(%arg0: i32) -> (i32, i32) {
    %c0_i32 = arith.constant 0 : i32
    %c0_i32_0 = arith.constant 0 : i32
    %c0_i32_1 = arith.constant 0 : i32
    return %c0_i32, %c0_i32_0 : i32, i32
  }
  func.func @transform_12(%arg0: i32) -> (i32, i32) {
    %c0_i32 = arith.constant 0 : i32
    %c0_i32_0 = arith.constant 0 : i32
    %c0_i32_1 = arith.constant 0 : i32
    return %c0_i32, %c0_i32_0 : i32, i32
  }
  func.func @transform_13(%arg0: i32) -> (i32, i32) {
    %c0_i32 = arith.constant 0 : i32
    %c0_i32_0 = arith.constant 0 : i32
    %c0_i32_1 = arith.constant 0 : i32
    return %c0_i32, %c0_i32_0 : i32, i32
  }
  func.func @transform_14(%arg0: i32) -> (i32, i32) {
    %c0_i32 = arith.constant 0 : i32
    %c0_i32_0 = arith.constant 0 : i32
    %c0_i32_1 = arith.constant 0 : i32
    return %c0_i32, %c0_i32_0 : i32, i32
  }
  func.func @transform_15(%arg0: i32) -> (i32, i32) {
    %c0_i32 = arith.constant 0 : i32
    %c0_i32_0 = arith.constant 0 : i32
    %c0_i32_1 = arith.constant 0 : i32
    return %c0_i32, %c0_i32_0 : i32, i32
  }
  func.func @transform_16(%arg0: i32) -> (i32, i32) {
    %c0_i32 = arith.constant 0 : i32
    %c0_i32_0 = arith.constant 0 : i32
    %c0_i32_1 = arith.constant 0 : i32
    return %c0_i32, %c0_i32_0 : i32, i32
  }
  func.func @transform_17(%arg0: i32) -> (i32, i32) {
    %c0_i32 = arith.constant 0 : i32
    %c0_i32_0 = arith.constant 0 : i32
    %c0_i32_1 = arith.constant 0 : i32
    return %c0_i32, %c0_i32_0 : i32, i32
  }
  func.func @transform_18(%arg0: i32) -> (i32, i32) {
    %c0_i32 = arith.constant 0 : i32
    %c0_i32_0 = arith.constant 0 : i32
    %c0_i32_1 = arith.constant 0 : i32
    return %c0_i32, %c0_i32_0 : i32, i32
  }
}

</mosaic_0001>

<llo_original>
// kernel: sincnet_forward.1
$region0: #{sincnet_forward.1}
  #allocation0 [shape = 'u32[]', space=smem, size = 0x4, offset = 0x4, fixed_abs, tag = 'smem constant byte address 0x4 - core index']
  #allocation1 [shape = 'u32[144,128]{1,0:T(1,128)}', space=vmem, size = 0x12000, scoped, tag = 'internal scratch']
  #allocation2 [shape = 'f32[31,512]{1,0:T(8,128)}', space=vmem, size = 0x10000, scoped, tag = 'scratch operand']
  #allocation3 [shape = 'f32[80,248]{1,0:T(8,128)}', space=vmem, size = 0x14000, scoped, tag = 'scratch operand']
  #allocation4 [shape = 'f32[2,992]{1,0:T(2,128)}', space=vmem, size = 0x2000, scoped, tag = 'scratch operand']
  %s0 = inlined_call_operand.vmem [shape: f32[2,256], index: 0, kind: input, shape index: {}]
  %s1 = inlined_call_operand.vmem [shape: f32[16,31], index: 1, kind: input, shape index: {}]
  %s2 = inlined_call_operand.vmem [shape: f32[16,1], index: 2, kind: input, shape index: {}]
  %s3 = inlined_call_operand.vmem [shape: f32[16,1], index: 3, kind: input, shape index: {}]
  %s4 = inlined_call_operand.vmem [shape: f32[16,80], index: 4, kind: input, shape index: {}]
  %s5 = inlined_call_operand.vmem [shape: f32[16,1], index: 5, kind: input, shape index: {}]
  %s6 = inlined_call_operand.vmem [shape: f32[16,1], index: 6, kind: input, shape index: {}]
  %s7 = inlined_call_operand.vmem [shape: f32[16,1], index: 7, kind: input, shape index: {}]
  %s8 = inlined_call_operand.vmem [shape: f32[992,64], index: 8, kind: input, shape index: {}]
  %s9 = inlined_call_operand.vmem [shape: f32[1,64], index: 9, kind: input, shape index: {}]
  %s10 = inlined_call_operand.vmem [shape: f32[1,64], index: 10, kind: input, shape index: {}]
  %s11 = inlined_call_operand.vmem [shape: f32[1,64], index: 11, kind: input, shape index: {}]
  %s12 = inlined_call_operand.vmem [shape: f32[64,64], index: 12, kind: input, shape index: {}]
  %s13 = inlined_call_operand.vmem [shape: f32[1,64], index: 13, kind: input, shape index: {}]
  %s14 = inlined_call_operand.vmem [shape: f32[1,64], index: 14, kind: input, shape index: {}]
  %s15 = inlined_call_operand.vmem [shape: f32[1,64], index: 15, kind: input, shape index: {}]
  %s16 = inlined_call_operand.vmem [shape: f32[64,10], index: 16, kind: input, shape index: {}]
  %s17 = inlined_call_operand.vmem [shape: f32[1,10], index: 17, kind: input, shape index: {}]
  %s18 = inlined_call_operand.hbm [shape: f32[2,10], index: 18, kind: output, shape index: {}]
  %s19 = sld [smem:[#allocation0]]
  $region82: #{sincnet_forward.1} parent=0
    _
  %s21 = ssub.s32 1, %s19
  %s22 = scalar_select 0, %s21, %s19
  $region1: #{sincnet_forward.1} parent=0
    #allocation5 [shape = 'u8[1024]{0}', space=vmem, size = 0x400, scoped, tag = 'output window, operand 0, single buffered']
    #allocation6 [shape = 's32[1]{0}', space=sflag, size = 0x4, scoped, tag = 'scoped memory for sincnet_forward.1']
    %23 = vsyncpa [#allocation6], 0
    // Predicated region
    $region2: #{sincnet_forward.1} parent=1 // pred_check
      _
    $region3: #{sincnet_forward.1} parent=1 // pred_check_branch
      %25 = sbr.rel (0) target = $region5
    $region4: #{sincnet_forward.1} parent=1 // pred_region
      _
    $region5: #{sincnet_forward.1} parent=1 // pred_fallthru
      _
    // Predicated region
    $region6: #{sincnet_forward.1} parent=1 // pred_check
      _
    $region7: #{sincnet_forward.1} parent=1 // pred_check_branch
      %27 = sbr.rel (0) target = $region9
    $region8: #{sincnet_forward.1} parent=1 // pred_region
      _
    $region9: #{sincnet_forward.1} parent=1 // pred_fallthru
      _
    // Predicated region
    $region10: #{sincnet_forward.1} parent=1 // pred_check
      _
    $region11: #{sincnet_forward.1} parent=1 // pred_check_branch
      %29 = sbr.rel (0) target = $region13
    $region12: #{sincnet_forward.1} parent=1 // pred_region
      _
    $region13: #{sincnet_forward.1} parent=1 // pred_fallthru
      _
    // Predicated region
    $region14: #{sincnet_forward.1} parent=1 // pred_check
      _
    $region15: #{sincnet_forward.1} parent=1 // pred_check_branch
      %31 = sbr.rel (0) target = $region17
    $region16: #{sincnet_forward.1} parent=1 // pred_region
      _
    $region17: #{sincnet_forward.1} parent=1 // pred_fallthru
      _
    // Predicated region
    $region18: #{sincnet_forward.1} parent=1 // pred_check
      _
    $region19: #{sincnet_forward.1} parent=1 // pred_check_branch
      %33 = sbr.rel (0) target = $region21
    $region20: #{sincnet_forward.1} parent=1 // pred_region
      _
    $region21: #{sincnet_forward.1} parent=1 // pred_fallthru
      _
    // Predicated region
    $region22: #{sincnet_forward.1} parent=1 // pred_check
      _
    $region23: #{sincnet_forward.1} parent=1 // pred_check_branch
      %35 = sbr.rel (0) target = $region25
    $region24: #{sincnet_forward.1} parent=1 // pred_region
      _
    $region25: #{sincnet_forward.1} parent=1 // pred_fallthru
      _
    // Predicated region
    $region26: #{sincnet_forward.1} parent=1 // pred_check
      _
    $region27: #{sincnet_forward.1} parent=1 // pred_check_branch
      %37 = sbr.rel (0) target = $region29
    $region28: #{sincnet_forward.1} parent=1 // pred_region
      _
    $region29: #{sincnet_forward.1} parent=1 // pred_fallthru
      _
    // Predicated region
    $region30: #{sincnet_forward.1} parent=1 // pred_check
      _
    $region31: #{sincnet_forward.1} parent=1 // pred_check_branch
      %39 = sbr.rel (0) target = $region33
    $region32: #{sincnet_forward.1} parent=1 // pred_region
      _
    $region33: #{sincnet_forward.1} parent=1 // pred_fallthru
      _
    // Predicated region
    $region34: #{sincnet_forward.1} parent=1 // pred_check
      _
    $region35: #{sincnet_forward.1} parent=1 // pred_check_branch
      %41 = sbr.rel (0) target = $region37
    $region36: #{sincnet_forward.1} parent=1 // pred_region
      _
    $region37: #{sincnet_forward.1} parent=1 // pred_fallthru
      _
    // Predicated region
    $region38: #{sincnet_forward.1} parent=1 // pred_check
      _
    $region39: #{sincnet_forward.1} parent=1 // pred_check_branch
      %43 = sbr.rel (0) target = $region41
    $region40: #{sincnet_forward.1} parent=1 // pred_region
      _
    $region41: #{sincnet_forward.1} parent=1 // pred_fallthru
      _
    // Predicated region
    $region42: #{sincnet_forward.1} parent=1 // pred_check
      _
    $region43: #{sincnet_forward.1} parent=1 // pred_check_branch
      %45 = sbr.rel (0) target = $region45
    $region44: #{sincnet_forward.1} parent=1 // pred_region
      _
    $region45: #{sincnet_forward.1} parent=1 // pred_fallthru
      _
    // Predicated region
    $region46: #{sincnet_forward.1} parent=1 // pred_check
      _
    $region47: #{sincnet_forward.1} parent=1 // pred_check_branch
      %47 = sbr.rel (0) target = $region49
    $region48: #{sincnet_forward.1} parent=1 // pred_region
      _
    $region49: #{sincnet_forward.1} parent=1 // pred_fallthru
      _
    // Predicated region
    $region50: #{sincnet_forward.1} parent=1 // pred_check
      _
    $region51: #{sincnet_forward.1} parent=1 // pred_check_branch
      %49 = sbr.rel (0) target = $region53
    $region52: #{sincnet_forward.1} parent=1 // pred_region
      _
    $region53: #{sincnet_forward.1} parent=1 // pred_fallthru
      _
    // Predicated region
    $region54: #{sincnet_forward.1} parent=1 // pred_check
      _
    $region55: #{sincnet_forward.1} parent=1 // pred_check_branch
      %51 = sbr.rel (0) target = $region57
    $region56: #{sincnet_forward.1} parent=1 // pred_region
      _
    $region57: #{sincnet_forward.1} parent=1 // pred_fallthru
      _
    // Predicated region
    $region58: #{sincnet_forward.1} parent=1 // pred_check
      _
    $region59: #{sincnet_forward.1} parent=1 // pred_check_branch
      %53 = sbr.rel (0) target = $region61
    $region60: #{sincnet_forward.1} parent=1 // pred_region
      _
    $region61: #{sincnet_forward.1} parent=1 // pred_fallthru
      _
    // Predicated region
    $region62: #{sincnet_forward.1} parent=1 // pred_check
      _
    $region63: #{sincnet_forward.1} parent=1 // pred_check_branch
      %55 = sbr.rel (0) target = $region65
    $region64: #{sincnet_forward.1} parent=1 // pred_region
      _
    $region65: #{sincnet_forward.1} parent=1 // pred_fallthru
      _
    // Predicated region
    $region66: #{sincnet_forward.1} parent=1 // pred_check
      _
    $region67: #{sincnet_forward.1} parent=1 // pred_check_branch
      %57 = sbr.rel (0) target = $region69
    $region68: #{sincnet_forward.1} parent=1 // pred_region
      _
    $region69: #{sincnet_forward.1} parent=1 // pred_fallthru
      _
    // Predicated region
    $region70: #{sincnet_forward.1} parent=1 // pred_check
      _
    $region71: #{sincnet_forward.1} parent=1 // pred_check_branch
      %59 = sbr.rel (0) target = $region73
    $region72: #{sincnet_forward.1} parent=1 // pred_region
      _
    $region73: #{sincnet_forward.1} parent=1 // pred_fallthru
      _
    %v60 = vld [vmem:[%s0] sm:$0xf]
    %v63 = vunpack.c.l.s4 1983009808
    %v64 = vunpack.c.0.s8 %v63
    %v65 = vlaneseq
    %v66 = vshrl.u32 %v65, 7
    %v67 = vsub.s32 %v64, %v66
    %v68 = vrot.slane %v60, %v67
    %v69 = vcombine.high %v68, %v68
    %70 = vrot.lane.b32.xlu0 %v68, 15
    %v71 = vpop.permute.xlu0 %70
    %72 = vrot.lane.b32.xlu0 %v69, 15
    %v73 = vpop.permute.xlu0 %72
    %vm74 = vcmask 121856
    %v75 = vsel %vm74, %v71, %v73
    %v78 = vsel %vm74, 0.0, %v71
    %v79 = vsel %vm74, %v73, 0.0
    %v81 = vcombine.low %v78, %v75
    %v83 = vunpack.c.l.s4 1966171168
    %v84 = vunpack.c.0.s8 %v83
    %v85 = vlaneseq
    %v86 = vshrl.u32 %v85, 7
    %v87 = vsub.s32 %v84, %v86
    %v88 = vrot.slane %v81, %v87
    %v90 = vunpack.c.l.s4 1966171168
    %v91 = vunpack.c.0.s8 %v90
    %v92 = vlaneseq
    %v93 = vshrl.u32 %v92, 7
    %v94 = vsub.s32 %v91, %v93
    %v95 = vrot.slane %v88, %v94
    %v97 = vlaneseq
    %vm98 = vcmp.ge.s32.totalorder %v97, 0
    %vm99 = vcmp.lt.s32.totalorder %v97, 256
    %vm100 = vmand %vm98, %vm99
    %101 = vst.msk [vmem:[#allocation2] ss:$8 sm:$0x3] %vm100, %v95
    %102 = vst.msk [vmem:[#allocation2] ss:$8 sm:$0x0] %vm100, %v95
    %v103 = vcombine.high %v88, %v88
    %v105 = vunpack.c.l.s4 1966171168
    %v106 = vunpack.c.0.s8 %v105
    %v107 = vlaneseq
    %v108 = vshrl.u32 %v107, 7
    %v109 = vsub.s32 %v106, %v108
    %v110 = vrot.slane %v103, %v109
    %s112 = scalar_lea.vmem [#allocation2], 16
    %113 = vst.msk [vmem:[%s112] ss:$8 sm:$0x3] %vm100, %v110
    %114 = vst.msk [vmem:[%s112] ss:$8 sm:$0x0] %vm100, %v110
    %v117 = vunpack.c.l.s4 1966171168
    %v118 = vunpack.c.0.s8 %v117
    %v119 = vlaneseq
    %v120 = vshrl.u32 %v119, 7
    %v121 = vsub.s32 %v118, %v120
    %v122 = vrot.slane %v79, %v121
    %v123 = vcombine.low %v88, %v122
    %v125 = vunpack.c.l.s4 1966171168
    %v126 = vunpack.c.0.s8 %v125
    %v127 = vlaneseq
    %v128 = vshrl.u32 %v127, 7
    %v129 = vsub.s32 %v126, %v128
    %v130 = vrot.slane %v123, %v129
    %131 = vrot.lane.b32.xlu0 %v130, 127
    %v132 = vpop.permute.xlu0 %131
    %v133 = vrot.slane %v132, 1
    %vm134 = vcmask 1039360
    %v135 = vsel %vm134, %v132, %v133
    %s137 = scalar_lea.vmem [#allocation2], 1
    %138 = vst.msk [vmem:[%s137] ss:$8 sm:$0x3] %vm100, %v135
    %139 = vst.msk [vmem:[%s137] ss:$8 sm:$0x0] %vm100, %v135
    %v140 = vcombine.high %v88, %v122
    %v142 = vunpack.c.l.s4 1966171168
    %v143 = vunpack.c.0.s8 %v142
    %v144 = vlaneseq
    %v145 = vshrl.u32 %v144, 7
    %v146 = vsub.s32 %v143, %v145
    %v147 = vrot.slane %v140, %v146
    %148 = vrot.lane.b32.xlu0 %v147, 127
    %v149 = vpop.permute.xlu0 %148
    %v150 = vrot.slane %v149, 1
    %v151 = vsel %vm134, %v149, %v150
    %s153 = scalar_lea.vmem [#allocation2], 17
    %154 = vst.msk [vmem:[%s153] ss:$8 sm:$0x3] %vm100, %v151
    %155 = vst.msk [vmem:[%s153] ss:$8 sm:$0x0] %vm100, %v151
    %156 = vrot.lane.b32.xlu0 %v130, 126
    %v157 = vpop.permute.xlu0 %156
    %v158 = vrot.slane %v157, 1
    %vm159 = vcmask 1031168
    %v160 = vsel %vm159, %v157, %v158
    %s162 = scalar_lea.vmem [#allocation2], 2
    %163 = vst.msk [vmem:[%s162] ss:$8 sm:$0x3] %vm100, %v160
    %164 = vst.msk [vmem:[%s162] ss:$8 sm:$0x0] %vm100, %v160
    %165 = vrot.lane.b32.xlu0 %v147, 126
    %v166 = vpop.permute.xlu0 %165
    %v167 = vrot.slane %v166, 1
    %v168 = vsel %vm159, %v166, %v167
    %s170 = scalar_lea.vmem [#allocation2], 18
    %171 = vst.msk [vmem:[%s170] ss:$8 sm:$0x3] %vm100, %v168
    %172 = vst.msk [vmem:[%s170] ss:$8 sm:$0x0] %vm100, %v168
    %173 = vrot.lane.b32.xlu0 %v130, 125
    %v174 = vpop.permute.xlu0 %173
    %v175 = vrot.slane %v174, 1
    %vm176 = vcmask 1022976
    %v177 = vsel %vm176, %v174, %v175
    %s179 = scalar_lea.vmem [#allocation2], 3
    %180 = vst.msk [vmem:[%s179] ss:$8 sm:$0x3] %vm100, %v177
    %181 = vst.msk [vmem:[%s179] ss:$8 sm:$0x0] %vm100, %v177
    %182 = vrot.lane.b32.xlu0 %v147, 125
    %v183 = vpop.permute.xlu0 %182
    %v184 = vrot.slane %v183, 1
    %v185 = vsel %vm176, %v183, %v184
    %s187 = scalar_lea.vmem [#allocation2], 19
    %188 = vst.msk [vmem:[%s187] ss:$8 sm:$0x3] %vm100, %v185
    %189 = vst.msk [vmem:[%s187] ss:$8 sm:$0x0] %vm100, %v185
    %190 = vrot.lane.b32.xlu0 %v130, 124
    %v191 = vpop.permute.xlu0 %190
    %v192 = vrot.slane %v191, 1
    %vm193 = vcmask 1014784
    %v194 = vsel %vm193, %v191, %v192
    %s196 = scalar_lea.vmem [#allocation2], 4
    %197 = vst.msk [vmem:[%s196] ss:$8 sm:$0x3] %vm100, %v194
    %198 = vst.msk [vmem:[%s196] ss:$8 sm:$0x0] %vm100, %v194
    %199 = vrot.lane.b32.xlu0 %v147, 124
    %v200 = vpop.permute.xlu0 %199
    %v201 = vrot.slane %v200, 1
    %v202 = vsel %vm193, %v200, %v201
    %s204 = scalar_lea.vmem [#allocation2], 20
    %205 = vst.msk [vmem:[%s204] ss:$8 sm:$0x3] %vm100, %v202
    %206 = vst.msk [vmem:[%s204] ss:$8 sm:$0x0] %vm100, %v202
    %207 = vrot.lane.b32.xlu0 %v130, 123
    %v208 = vpop.permute.xlu0 %207
    %v209 = vrot.slane %v208, 1
    %vm210 = vcmask 1006592
    %v211 = vsel %vm210, %v208, %v209
    %s213 = scalar_lea.vmem [#allocation2], 5
    %214 = vst.msk [vmem:[%s213] ss:$8 sm:$0x3] %vm100, %v211
    %215 = vst.msk [vmem:[%s213] ss:$8 sm:$0x0] %vm100, %v211
    %216 = vrot.lane.b32.xlu0 %v147, 123
    %v217 = vpop.permute.xlu0 %216
    %v218 = vrot.slane %v217, 1
    %v219 = vsel %vm210, %v217, %v218
    %s221 = scalar_lea.vmem [#allocation2], 21
    %222 = vst.msk [vmem:[%s221] ss:$8 sm:$0x3] %vm100, %v219
    %223 = vst.msk [vmem:[%s221] ss:$8 sm:$0x0] %vm100, %v219
    %224 = vrot.lane.b32.xlu0 %v130, 122
    %v225 = vpop.permute.xlu0 %224
    %v226 = vrot.slane %v225, 1
    %vm227 = vcmask 998400
    %v228 = vsel %vm227, %v225, %v226
    %s230 = scalar_lea.vmem [#allocation2], 6
    %231 = vst.msk [vmem:[%s230] ss:$8 sm:$0x3] %vm100, %v228
    %232 = vst.msk [vmem:[%s230] ss:$8 sm:$0x0] %vm100, %v228
    %233 = vrot.lane.b32.xlu0 %v147, 122
    %v234 = vpop.permute.xlu0 %233
    %v235 = vrot.slane %v234, 1
    %v236 = vsel %vm227, %v234, %v235
    %s238 = scalar_lea.vmem [#allocation2], 22
    %239 = vst.msk [vmem:[%s238] ss:$8 sm:$0x3] %vm100, %v236
    %240 = vst.msk [vmem:[%s238] ss:$8 sm:$0x0] %vm100, %v236
    %241 = vrot.lane.b32.xlu0 %v130, 121
    %v242 = vpop.permute.xlu0 %241
    %v243 = vrot.slane %v242, 1
    %vm244 = vcmask 990208
    %v245 = vsel %vm244, %v242, %v243
    %s247 = scalar_lea.vmem [#allocation2], 7
    %248 = vst.msk [vmem:[%s247] ss:$8 sm:$0x3] %vm100, %v245
    %249 = vst.msk [vmem:[%s247] ss:$8 sm:$0x0] %vm100, %v245
    %250 = vrot.lane.b32.xlu0 %v147, 121
    %v251 = vpop.permute.xlu0 %250
    %v252 = vrot.slane %v251, 1
    %v253 = vsel %vm244, %v251, %v252
    %s255 = scalar_lea.vmem [#allocation2], 23
    %256 = vst.msk [vmem:[%s255] ss:$8 sm:$0x3] %vm100, %v253
    %257 = vst.msk [vmem:[%s255] ss:$8 sm:$0x0] %vm100, %v253
    %258 = vrot.lane.b32.xlu0 %v130, 120
    %v259 = vpop.permute.xlu0 %258
    %v260 = vrot.slane %v259, 1
    %vm261 = vcmask 982016
    %v262 = vsel %vm261, %v259, %v260
    %s264 = scalar_lea.vmem [#allocation2], 32
    %265 = vst.msk [vmem:[%s264] ss:$8 sm:$0x3] %vm100, %v262
    %266 = vst.msk [vmem:[%s264] ss:$8 sm:$0x0] %vm100, %v262
    %267 = vrot.lane.b32.xlu0 %v147, 120
    %v268 = vpop.permute.xlu0 %267
    %v269 = vrot.slane %v268, 1
    %v270 = vsel %vm261, %v268, %v269
    %s272 = scalar_lea.vmem [#allocation2], 48
    %273 = vst.msk [vmem:[%s272] ss:$8 sm:$0x3] %vm100, %v270
    %274 = vst.msk [vmem:[%s272] ss:$8 sm:$0x0] %vm100, %v270
    %275 = vrot.lane.b32.xlu0 %v130, 119
    %v276 = vpop.permute.xlu0 %275
    %v277 = vrot.slane %v276, 1
    %vm278 = vcmask 973824
    %v279 = vsel %vm278, %v276, %v277
    %s281 = scalar_lea.vmem [#allocation2], 33
    %282 = vst.msk [vmem:[%s281] ss:$8 sm:$0x3] %vm100, %v279
    %283 = vst.msk [vmem:[%s281] ss:$8 sm:$0x0] %vm100, %v279
    %284 = vrot.lane.b32.xlu0 %v147, 119
    %v285 = vpop.permute.xlu0 %284
    %v286 = vrot.slane %v285, 1
    %v287 = vsel %vm278, %v285, %v286
    %s289 = scalar_lea.vmem [#allocation2], 49
    %290 = vst.msk [vmem:[%s289] ss:$8 sm:$0x3] %vm100, %v287
    %291 = vst.msk [vmem:[%s289] ss:$8 sm:$0x0] %vm100, %v287
    %292 = vrot.lane.b32.xlu0 %v130, 118
    %v293 = vpop.permute.xlu0 %292
    %v294 = vrot.slane %v293, 1
    %vm295 = vcmask 965632
    %v296 = vsel %vm295, %v293, %v294
    %s298 = scalar_lea.vmem [#allocation2], 34
    %299 = vst.msk [vmem:[%s298] ss:$8 sm:$0x3] %vm100, %v296
    %300 = vst.msk [vmem:[%s298] ss:$8 sm:$0x0] %vm100, %v296
    %301 = vrot.lane.b32.xlu0 %v147, 118
    %v302 = vpop.permute.xlu0 %301
    %v303 = vrot.slane %v302, 1
    %v304 = vsel %vm295, %v302, %v303
    %s306 = scalar_lea.vmem [#allocation2], 50
    %307 = vst.msk [vmem:[%s306] ss:$8 sm:$0x3] %vm100, %v304
    %308 = vst.msk [vmem:[%s306] ss:$8 sm:$0x0] %vm100, %v304
    %309 = vrot.lane.b32.xlu0 %v130, 117
    %v310 = vpop.permute.xlu0 %309
    %v311 = vrot.slane %v310, 1
    %vm312 = vcmask 957440
    %v313 = vsel %vm312, %v310, %v311
    %s315 = scalar_lea.vmem [#allocation2], 35
    %316 = vst.msk [vmem:[%s315] ss:$8 sm:$0x3] %vm100, %v313
    %317 = vst.msk [vmem:[%s315] ss:$8 sm:$0x0] %vm100, %v313
    %318 = vrot.lane.b32.xlu0 %v147, 117
    %v319 = vpop.permute.xlu0 %318
    %v320 = vrot.slane %v319, 1
    %v321 = vsel %vm312, %v319, %v320
    %s323 = scalar_lea.vmem [#allocation2], 51
    %324 = vst.msk [vmem:[%s323] ss:$8 sm:$0x3] %vm100, %v321
    %325 = vst.msk [vmem:[%s323] ss:$8 sm:$0x0] %vm100, %v321
    %326 = vrot.lane.b32.xlu0 %v130, 116
    %v327 = vpop.permute.xlu0 %326
    %v328 = vrot.slane %v327, 1
    %vm329 = vcmask 949248
    %v330 = vsel %vm329, %v327, %v328
    %s332 = scalar_lea.vmem [#allocation2], 36
    %333 = vst.msk [vmem:[%s332] ss:$8 sm:$0x3] %vm100, %v330
    %334 = vst.msk [vmem:[%s332] ss:$8 sm:$0x0] %vm100, %v330
    %335 = vrot.lane.b32.xlu0 %v147, 116
    %v336 = vpop.permute.xlu0 %335
    %v337 = vrot.slane %v336, 1
    %v338 = vsel %vm329, %v336, %v337
    %s340 = scalar_lea.vmem [#allocation2], 52
    %341 = vst.msk [vmem:[%s340] ss:$8 sm:$0x3] %vm100, %v338
    %342 = vst.msk [vmem:[%s340] ss:$8 sm:$0x0] %vm100, %v338
    %343 = vrot.lane.b32.xlu0 %v130, 115
    %v344 = vpop.permute.xlu0 %343
    %v345 = vrot.slane %v344, 1
    %vm346 = vcmask 941056
    %v347 = vsel %vm346, %v344, %v345
    %s349 = scalar_lea.vmem [#allocation2], 37
    %350 = vst.msk [vmem:[%s349] ss:$8 sm:$0x3] %vm100, %v347
    %351 = vst.msk [vmem:[%s349] ss:$8 sm:$0x0] %vm100, %v347
    %352 = vrot.lane.b32.xlu0 %v147, 115
    %v353 = vpop.permute.xlu0 %352
    %v354 = vrot.slane %v353, 1
    %v355 = vsel %vm346, %v353, %v354
    %s357 = scalar_lea.vmem [#allocation2], 53
    %358 = vst.msk [vmem:[%s357] ss:$8 sm:$0x3] %vm100, %v355
    %359 = vst.msk [vmem:[%s357] ss:$8 sm:$0x0] %vm100, %v355
    %360 = vrot.lane.b32.xlu0 %v130, 114
    %v361 = vpop.permute.xlu0 %360
    %v362 = vrot.slane %v361, 1
    %vm363 = vcmask 932864
    %v364 = vsel %vm363, %v361, %v362
    %s366 = scalar_lea.vmem [#allocation2], 38
    %367 = vst.msk [vmem:[%s366] ss:$8 sm:$0x3] %vm100, %v364
    %368 = vst.msk [vmem:[%s366] ss:$8 sm:$0x0] %vm100, %v364
    %369 = vrot.lane.b32.xlu0 %v147, 114
    %v370 = vpop.permute.xlu0 %369
    %v371 = vrot.slane %v370, 1
    %v372 = vsel %vm363, %v370, %v371
    %s374 = scalar_lea.vmem [#allocation2], 54
    %375 = vst.msk [vmem:[%s374] ss:$8 sm:$0x3] %vm100, %v372
    %376 = vst.msk [vmem:[%s374] ss:$8 sm:$0x0] %vm100, %v372
    %377 = vrot.lane.b32.xlu0 %v130, 113
    %v378 = vpop.permute.xlu0 %377
    %v379 = vrot.slane %v378, 1
    %vm380 = vcmask 924672
    %v381 = vsel %vm380, %v378, %v379
    %s383 = scalar_lea.vmem [#allocation2], 39
    %384 = vst.msk [vmem:[%s383] ss:$8 sm:$0x3] %vm100, %v381
    %385 = vst.msk [vmem:[%s383] ss:$8 sm:$0x0] %vm100, %v381
    %386 = vrot.lane.b32.xlu0 %v147, 113
    %v387 = vpop.permute.xlu0 %386
    %v388 = vrot.slane %v387, 1
    %v389 = vsel %vm380, %v387, %v388
    %s391 = scalar_lea.vmem [#allocation2], 55
    %392 = vst.msk [vmem:[%s391] ss:$8 sm:$0x3] %vm100, %v389
    %393 = vst.msk [vmem:[%s391] ss:$8 sm:$0x0] %vm100, %v389
    %394 = vrot.lane.b32.xlu0 %v130, 112
    %v395 = vpop.permute.xlu0 %394
    %v396 = vrot.slane %v395, 1
    %vm397 = vcmask 916480
    %v398 = vsel %vm397, %v395, %v396
    %s400 = scalar_lea.vmem [#allocation2], 64
    %401 = vst.msk [vmem:[%s400] ss:$8 sm:$0x3] %vm100, %v398
    %402 = vst.msk [vmem:[%s400] ss:$8 sm:$0x0] %vm100, %v398
    %403 = vrot.lane.b32.xlu0 %v147, 112
    %v404 = vpop.permute.xlu0 %403
    %v405 = vrot.slane %v404, 1
    %v406 = vsel %vm397, %v404, %v405
    %s408 = scalar_lea.vmem [#allocation2], 80
    %409 = vst.msk [vmem:[%s408] ss:$8 sm:$0x3] %vm100, %v406
    %410 = vst.msk [vmem:[%s408] ss:$8 sm:$0x0] %vm100, %v406
    %411 = vrot.lane.b32.xlu0 %v130, 111
    %v412 = vpop.permute.xlu0 %411
    %v413 = vrot.slane %v412, 1
    %vm414 = vcmask 908288
    %v415 = vsel %vm414, %v412, %v413
    %s417 = scalar_lea.vmem [#allocation2], 65
    %418 = vst.msk [vmem:[%s417] ss:$8 sm:$0x3] %vm100, %v415
    %419 = vst.msk [vmem:[%s417] ss:$8 sm:$0x0] %vm100, %v415
    %420 = vrot.lane.b32.xlu0 %v147, 111
    %v421 = vpop.permute.xlu0 %420
    %v422 = vrot.slane %v421, 1
    %v423 = vsel %vm414, %v421, %v422
    %s425 = scalar_lea.vmem [#allocation2], 81
    %426 = vst.msk [vmem:[%s425] ss:$8 sm:$0x3] %vm100, %v423
    %427 = vst.msk [vmem:[%s425] ss:$8 sm:$0x0] %vm100, %v423
    %428 = vrot.lane.b32.xlu0 %v130, 110
    %v429 = vpop.permute.xlu0 %428
    %v430 = vrot.slane %v429, 1
    %vm431 = vcmask 900096
    %v432 = vsel %vm431, %v429, %v430
    %s434 = scalar_lea.vmem [#allocation2], 66
    %435 = vst.msk [vmem:[%s434] ss:$8 sm:$0x3] %vm100, %v432
    %436 = vst.msk [vmem:[%s434] ss:$8 sm:$0x0] %vm100, %v432
    %437 = vrot.lane.b32.xlu0 %v147, 110
    %v438 = vpop.permute.xlu0 %437
    %v439 = vrot.slane %v438, 1
    %v440 = vsel %vm431, %v438, %v439
    %s442 = scalar_lea.vmem [#allocation2], 82
    %443 = vst.msk [vmem:[%s442] ss:$8 sm:$0x3] %vm100, %v440
    %444 = vst.msk [vmem:[%s442] ss:$8 sm:$0x0] %vm100, %v440
    %445 = vrot.lane.b32.xlu0 %v130, 109
    %v446 = vpop.permute.xlu0 %445
    %v447 = vrot.slane %v446, 1
    %vm448 = vcmask 891904
    %v449 = vsel %vm448, %v446, %v447
    %s451 = scalar_lea.vmem [#allocation2], 67
    %452 = vst.msk [vmem:[%s451] ss:$8 sm:$0x3] %vm100, %v449
    %453 = vst.msk [vmem:[%s451] ss:$8 sm:$0x0] %vm100, %v449
    %454 = vrot.lane.b32.xlu0 %v147, 109
    %v455 = vpop.permute.xlu0 %454
    %v456 = vrot.slane %v455, 1
    %v457 = vsel %vm448, %v455, %v456
    %s459 = scalar_lea.vmem [#allocation2], 83
    %460 = vst.msk [vmem:[%s459] ss:$8 sm:$0x3] %vm100, %v457
    %461 = vst.msk [vmem:[%s459] ss:$8 sm:$0x0] %vm100, %v457
    %462 = vrot.lane.b32.xlu0 %v130, 108
    %v463 = vpop.permute.xlu0 %462
    %v464 = vrot.slane %v463, 1
    %vm465 = vcmask 883712
    %v466 = vsel %vm465, %v463, %v464
    %s468 = scalar_lea.vmem [#allocation2], 68
    %469 = vst.msk [vmem:[%s468] ss:$8 sm:$0x3] %vm100, %v466
    %470 = vst.msk [vmem:[%s468] ss:$8 sm:$0x0] %vm100, %v466
    %471 = vrot.lane.b32.xlu0 %v147, 108
    %v472 = vpop.permute.xlu0 %471
    %v473 = vrot.slane %v472, 1
    %v474 = vsel %vm465, %v472, %v473
    %s476 = scalar_lea.vmem [#allocation2], 84
    %477 = vst.msk [vmem:[%s476] ss:$8 sm:$0x3] %vm100, %v474
    %478 = vst.msk [vmem:[%s476] ss:$8 sm:$0x0] %vm100, %v474
    %479 = vrot.lane.b32.xlu0 %v130, 107
    %v480 = vpop.permute.xlu0 %479
    %v481 = vrot.slane %v480, 1
    %vm482 = vcmask 875520
    %v483 = vsel %vm482, %v480, %v481
    %s485 = scalar_lea.vmem [#allocation2], 69
    %486 = vst.msk [vmem:[%s485] ss:$8 sm:$0x3] %vm100, %v483
    %487 = vst.msk [vmem:[%s485] ss:$8 sm:$0x0] %vm100, %v483
    %488 = vrot.lane.b32.xlu0 %v147, 107
    %v489 = vpop.permute.xlu0 %488
    %v490 = vrot.slane %v489, 1
    %v491 = vsel %vm482, %v489, %v490
    %s493 = scalar_lea.vmem [#allocation2], 85
    %494 = vst.msk [vmem:[%s493] ss:$8 sm:$0x3] %vm100, %v491
    %495 = vst.msk [vmem:[%s493] ss:$8 sm:$0x0] %vm100, %v491
    %496 = vrot.lane.b32.xlu0 %v130, 106
    %v497 = vpop.permute.xlu0 %496
    %v498 = vrot.slane %v497, 1
    %vm499 = vcmask 867328
    %v500 = vsel %vm499, %v497, %v498
    %s502 = scalar_lea.vmem [#allocation2], 70
    %503 = vst.msk [vmem:[%s502] ss:$8 sm:$0x3] %vm100, %v500
    %504 = vst.msk [vmem:[%s502] ss:$8 sm:$0x0] %vm100, %v500
    %505 = vrot.lane.b32.xlu0 %v147, 106
    %v506 = vpop.permute.xlu0 %505
    %v507 = vrot.slane %v506, 1
    %v508 = vsel %vm499, %v506, %v507
    %s510 = scalar_lea.vmem [#allocation2], 86
    %511 = vst.msk [vmem:[%s510] ss:$8 sm:$0x3] %vm100, %v508
    %512 = vst.msk [vmem:[%s510] ss:$8 sm:$0x0] %vm100, %v508
    %513 = vrot.lane.b32.xlu0 %v130, 105
    %v514 = vpop.permute.xlu0 %513
    %v515 = vrot.slane %v514, 1
    %vm516 = vcmask 859136
    %v517 = vsel %vm516, %v514, %v515
    %s519 = scalar_lea.vmem [#allocation2], 71
    %520 = vst.msk [vmem:[%s519] ss:$8 sm:$0x3] %vm100, %v517
    %521 = vst.msk [vmem:[%s519] ss:$8 sm:$0x0] %vm100, %v517
    %522 = vrot.lane.b32.xlu0 %v147, 105
    %v523 = vpop.permute.xlu0 %522
    %v524 = vrot.slane %v523, 1
    %v525 = vsel %vm516, %v523, %v524
    %s527 = scalar_lea.vmem [#allocation2], 87
    %528 = vst.msk [vmem:[%s527] ss:$8 sm:$0x3] %vm100, %v525
    %529 = vst.msk [vmem:[%s527] ss:$8 sm:$0x0] %vm100, %v525
    %530 = vrot.lane.b32.xlu0 %v130, 104
    %v531 = vpop.permute.xlu0 %530
    %v532 = vrot.slane %v531, 1
    %vm533 = vcmask 850944
    %v534 = vsel %vm533, %v531, %v532
    %s536 = scalar_lea.vmem [#allocation2], 96
    %537 = vst.msk [vmem:[%s536] ss:$8 sm:$0x3] %vm100, %v534
    %538 = vst.msk [vmem:[%s536] ss:$8 sm:$0x0] %vm100, %v534
    %539 = vrot.lane.b32.xlu0 %v147, 104
    %v540 = vpop.permute.xlu0 %539
    %v541 = vrot.slane %v540, 1
    %v542 = vsel %vm533, %v540, %v541
    %s544 = scalar_lea.vmem [#allocation2], 112
    %545 = vst.msk [vmem:[%s544] ss:$8 sm:$0x3] %vm100, %v542
    %546 = vst.msk [vmem:[%s544] ss:$8 sm:$0x0] %vm100, %v542
    %547 = vrot.lane.b32.xlu0 %v130, 103
    %v548 = vpop.permute.xlu0 %547
    %v549 = vrot.slane %v548, 1
    %vm550 = vcmask 842752
    %v551 = vsel %vm550, %v548, %v549
    %s553 = scalar_lea.vmem [#allocation2], 97
    %554 = vst.msk [vmem:[%s553] ss:$8 sm:$0x3] %vm100, %v551
    %555 = vst.msk [vmem:[%s553] ss:$8 sm:$0x0] %vm100, %v551
    %556 = vrot.lane.b32.xlu0 %v147, 103
    %v557 = vpop.permute.xlu0 %556
    %v558 = vrot.slane %v557, 1
    %v559 = vsel %vm550, %v557, %v558
    %s561 = scalar_lea.vmem [#allocation2], 113
    %562 = vst.msk [vmem:[%s561] ss:$8 sm:$0x3] %vm100, %v559
    %563 = vst.msk [vmem:[%s561] ss:$8 sm:$0x0] %vm100, %v559
    %564 = vrot.lane.b32.xlu0 %v130, 102
    %v565 = vpop.permute.xlu0 %564
    %v566 = vrot.slane %v565, 1
    %vm567 = vcmask 834560
    %v568 = vsel %vm567, %v565, %v566
    %s570 = scalar_lea.vmem [#allocation2], 98
    %571 = vst.msk [vmem:[%s570] ss:$8 sm:$0x3] %vm100, %v568
    %572 = vst.msk [vmem:[%s570] ss:$8 sm:$0x0] %vm100, %v568
    %573 = vrot.lane.b32.xlu0 %v147, 102
    %v574 = vpop.permute.xlu0 %573
    %v575 = vrot.slane %v574, 1
    %v576 = vsel %vm567, %v574, %v575
    %s578 = scalar_lea.vmem [#allocation2], 114
    %579 = vst.msk [vmem:[%s578] ss:$8 sm:$0x3] %vm100, %v576
    %580 = vst.msk [vmem:[%s578] ss:$8 sm:$0x0] %vm100, %v576
    %581 = vrot.lane.b32.xlu0 %v130, 101
    %v582 = vpop.permute.xlu0 %581
    %v583 = vrot.slane %v582, 1
    %vm584 = vcmask 826368
    %v585 = vsel %vm584, %v582, %v583
    %s587 = scalar_lea.vmem [#allocation2], 99
    %588 = vst.msk [vmem:[%s587] ss:$8 sm:$0x3] %vm100, %v585
    %589 = vst.msk [vmem:[%s587] ss:$8 sm:$0x0] %vm100, %v585
    %590 = vrot.lane.b32.xlu0 %v147, 101
    %v591 = vpop.permute.xlu0 %590
    %v592 = vrot.slane %v591, 1
    %v593 = vsel %vm584, %v591, %v592
    %s595 = scalar_lea.vmem [#allocation2], 115
    %596 = vst.msk [vmem:[%s595] ss:$8 sm:$0x3] %vm100, %v593
    %597 = vst.msk [vmem:[%s595] ss:$8 sm:$0x0] %vm100, %v593
    %598 = vrot.lane.b32.xlu0 %v130, 100
    %v599 = vpop.permute.xlu0 %598
    %v600 = vrot.slane %v599, 1
    %vm601 = vcmask 818176
    %v602 = vsel %vm601, %v599, %v600
    %s604 = scalar_lea.vmem [#allocation2], 100
    %605 = vst.msk [vmem:[%s604] ss:$8 sm:$0x3] %vm100, %v602
    %606 = vst.msk [vmem:[%s604] ss:$8 sm:$0x0] %vm100, %v602
    %607 = vrot.lane.b32.xlu0 %v147, 100
    %v608 = vpop.permute.xlu0 %607
    %v609 = vrot.slane %v608, 1
    %v610 = vsel %vm601, %v608, %v609
    %s612 = scalar_lea.vmem [#allocation2], 116
    %613 = vst.msk [vmem:[%s612] ss:$8 sm:$0x3] %vm100, %v610
    %614 = vst.msk [vmem:[%s612] ss:$8 sm:$0x0] %vm100, %v610
    %615 = vrot.lane.b32.xlu0 %v130, 99
    %v616 = vpop.permute.xlu0 %615
    %v617 = vrot.slane %v616, 1
    %vm618 = vcmask 809984
    %v619 = vsel %vm618, %v616, %v617
    %s621 = scalar_lea.vmem [#allocation2], 101
    %622 = vst.msk [vmem:[%s621] ss:$8 sm:$0x3] %vm100, %v619
    %623 = vst.msk [vmem:[%s621] ss:$8 sm:$0x0] %vm100, %v619
    %624 = vrot.lane.b32.xlu0 %v147, 99
    %v625 = vpop.permute.xlu0 %624
    %v626 = vrot.slane %v625, 1
    %v627 = vsel %vm618, %v625, %v626
    %s629 = scalar_lea.vmem [#allocation2], 117
    %630 = vst.msk [vmem:[%s629] ss:$8 sm:$0x3] %vm100, %v627
    %631 = vst.msk [vmem:[%s629] ss:$8 sm:$0x0] %vm100, %v627
    %632 = vrot.lane.b32.xlu0 %v130, 98
    %v633 = vpop.permute.xlu0 %632
    %v634 = vrot.slane %v633, 1
    %vm635 = vcmask 801792
    %v636 = vsel %vm635, %v633, %v634
    %s638 = scalar_lea.vmem [#allocation2], 102
    %639 = vst.msk [vmem:[%s638] ss:$8 sm:$0x3] %vm100, %v636
    %640 = vst.msk [vmem:[%s638] ss:$8 sm:$0x0] %vm100, %v636
    %641 = vrot.lane.b32.xlu0 %v147, 98
    %v642 = vpop.permute.xlu0 %641
    %v643 = vrot.slane %v642, 1
    %v644 = vsel %vm635, %v642, %v643
    %s646 = scalar_lea.vmem [#allocation2], 118
    %647 = vst.msk [vmem:[%s646] ss:$8 sm:$0x3] %vm100, %v644
    %648 = vst.msk [vmem:[%s646] ss:$8 sm:$0x0] %vm100, %v644
    %v649 = vld [vmem:[%s1] sm:$0xff]
    %v650 = vld [vmem:[%s1 + $0x8] sm:$0xff]
    %v651 = vld [vmem:[#allocation2] sm:$0xff]
    %v652 = vld [vmem:[#allocation2 + $0x8] sm:$0xff]
    %v653 = vld [vmem:[#allocation2 + $0x10] sm:$0xff]
    %v654 = vld [vmem:[#allocation2 + $0x18] sm:$0xff]
    %v655 = vld [vmem:[#allocation2 + $0x20] sm:$0xff]
    %v656 = vld [vmem:[#allocation2 + $0x28] sm:$0xff]
    %v657 = vld [vmem:[#allocation2 + $0x30] sm:$0xff]
    %v658 = vld [vmem:[#allocation2 + $0x38] sm:$0xff]
    %v659 = vld [vmem:[#allocation2 + $0x40] sm:$0xff]
    %v660 = vld [vmem:[#allocation2 + $0x48] sm:$0xff]
    %v661 = vld [vmem:[#allocation2 + $0x50] sm:$0xff]
    %v662 = vld [vmem:[#allocation2 + $0x58] sm:$0xff]
    %v663 = vld [vmem:[#allocation2 + $0x60] sm:$0x7f]
    %v664 = vld [vmem:[#allocation2 + $0x68] sm:$0x7f]
    %v665 = vld [vmem:[#allocation2 + $0x70] sm:$0x7f]
    %v666 = vld [vmem:[#allocation2 + $0x78] sm:$0x7f]
    %vm667 = vcmask 252928
    %v669 = vsel %vm667, %v649, 0
    %v672 = vsel %vm667, %v650, 0
    %vm674 = vcmask 1046528
    %v676 = vsel %vm674, %v663, 0
    %v679 = vsel %vm674, %v664, 0
    %v682 = vsel %vm674, %v665, 0
    %v685 = vsel %vm674, %v666, 0
    %687 = vmatprep.subr.mxu0 %v652
    %688 = vmatpush1.msra.mxu0 %v651
    %689 = vmatprep.subr.mxu0 %v656
    %690 = vmatpush1.msra.mxu0 %v655
    %691 = vmatprep.subr.mxu0 %v660
    %692 = vmatpush1.msra.mxu0 %v659
    %693 = vmatprep.subr.mxu0 %v679
    %694 = vmatpush1.msra.mxu0 %v676
    %695 = vmatprep.subr.mxu0 0.0
    %696 = vmatpush1.msra.mxu0 0.0
    %697 = vmatprep.subr.mxu0 0.0
    %698 = vmatpush1.msra.mxu0 0.0
    %699 = vmatprep.subr.mxu0 0.0
    %700 = vmatpush1.msra.mxu0 0.0
    %701 = vmatprep.subr.mxu0 0.0
    %702 = vmatpush1.msra.mxu0 0.0
    %703 = vmatprep.subr.mxu0 0.0
    %704 = vmatpush1.msra.mxu0 0.0
    %705 = vmatprep.subr.mxu0 0.0
    %706 = vmatpush1.msra.mxu0 0.0
    %707 = vmatprep.subr.mxu0 0.0
    %708 = vmatpush1.msra.mxu0 0.0
    %709 = vmatprep.subr.mxu0 0.0
    %710 = vmatpush1.msra.mxu0 0.0
    %711 = vmatprep.subr.mxu0 0.0
    %712 = vmatpush1.msra.mxu0 0.0
    %713 = vmatprep.subr.mxu0 0.0
    %714 = vmatpush1.msra.mxu0 0.0
    %715 = vmatprep.subr.mxu0 0.0
    %716 = vmatpush1.msra.mxu0 0.0
    %717 = vmatprep.subr.mxu0 0.0
    %718 = vmatpush1.msra.mxu0 0.0
    %719 = vmatprep.subr.mxu0 0.0
    %720 = vmatpush1.msra.mxu0 0.0
    %721 = vmatprep.subr.mxu0 0.0
    %722 = vmatpush1.msra.mxu0 0.0
    %723 = vmatprep.subr.mxu0 0.0
    %724 = vmatpush1.msra.mxu0 0.0
    %725 = vmatprep.subr.mxu0 0.0
    %726 = vmatpush1.msra.mxu0 0.0
    %727 = vmatprep.subr.mxu0 0.0
    %728 = vmatpush1.msra.mxu0 0.0
    %729 = vmatprep.subr.mxu0 0.0
    %730 = vmatpush1.msra.mxu0 0.0
    %731 = vmatprep.subr.mxu0 0.0
    %732 = vmatpush1.msra.mxu0 0.0
    %733 = vmatprep.subr.mxu0 0.0
    %734 = vmatpush1.msra.mxu0 0.0
    %735 = vmatprep.subr.mxu0 0.0
    %736 = vmatpush1.msra.mxu0 0.0
    %737 = vmatprep.subr.mxu0 0.0
    %738 = vmatpush1.msra.mxu0 0.0
    %739 = vmatprep.subr.mxu0 0.0
    %740 = vmatpush1.msra.mxu0 0.0
    %741 = vmatprep.subr.mxu0 0.0
    %742 = vmatpush1.msra.mxu0 0.0
    %743 = vmatprep.subr.mxu0 0.0
    %744 = vmatpush1.msra.mxu0 0.0
    %745 = vmatprep.subr.mxu0 0.0
    %746 = vmatpush1.msra.mxu0 0.0
    %747 = vmatprep.subr.mxu0 0.0
    %748 = vmatpush1.msra.mxu0 0.0
    %749 = vmatprep.subr.mxu0 0.0
    %750 = vmatpush1.msra.mxu0 0.0
    %751 = vmatprep.mubr.f32.mxu0 0.0
    %752 = vmatmul.mubr.f32.gmra.mrb[0].mxu0 %v669
    %v753 = vpop.f32.mrb[0].mxu0
    %v754 = vadd.f32 0.0, %v753
    %v755 = vpop.f32.mrb[0].mxu0
    %v756 = vadd.f32 0.0, %v755
    %757 = vmatprep.mubr.f32.mxu0 0.0
    %758 = vmatmul.mubr.f32.gmra.mrb[0].mxu0 %v672
    %v759 = vpop.f32.mrb[0].mxu0
    %v760 = vadd.f32 0.0, %v759
    %v761 = vpop.f32.mrb[0].mxu0
    %v762 = vadd.f32 0.0, %v761
    %763 = vdwg.mxu0
    %764 = vmatprep.subr.mxu0 %v654
    %765 = vmatpush1.msra.mxu0 %v653
    %766 = vmatprep.subr.mxu0 %v658
    %767 = vmatpush1.msra.mxu0 %v657
    %768 = vmatprep.subr.mxu0 %v662
    %769 = vmatpush1.msra.mxu0 %v661
    %770 = vmatprep.subr.mxu0 %v685
    %771 = vmatpush1.msra.mxu0 %v682
    %772 = vmatprep.subr.mxu0 0.0
    %773 = vmatpush1.msra.mxu0 0.0
    %774 = vmatprep.subr.mxu0 0.0
    %775 = vmatpush1.msra.mxu0 0.0
    %776 = vmatprep.subr.mxu0 0.0
    %777 = vmatpush1.msra.mxu0 0.0
    %778 = vmatprep.subr.mxu0 0.0
    %779 = vmatpush1.msra.mxu0 0.0
    %780 = vmatprep.subr.mxu0 0.0
    %781 = vmatpush1.msra.mxu0 0.0
    %782 = vmatprep.subr.mxu0 0.0
    %783 = vmatpush1.msra.mxu0 0.0
    %784 = vmatprep.subr.mxu0 0.0
    %785 = vmatpush1.msra.mxu0 0.0
    %786 = vmatprep.subr.mxu0 0.0
    %787 = vmatpush1.msra.mxu0 0.0
    %788 = vmatprep.subr.mxu0 0.0
    %789 = vmatpush1.msra.mxu0 0.0
    %790 = vmatprep.subr.mxu0 0.0
    %791 = vmatpush1.msra.mxu0 0.0
    %792 = vmatprep.subr.mxu0 0.0
    %793 = vmatpush1.msra.mxu0 0.0
    %794 = vmatprep.subr.mxu0 0.0
    %795 = vmatpush1.msra.mxu0 0.0
    %796 = vmatprep.subr.mxu0 0.0
    %797 = vmatpush1.msra.mxu0 0.0
    %798 = vmatprep.subr.mxu0 0.0
    %799 = vmatpush1.msra.mxu0 0.0
    %800 = vmatprep.subr.mxu0 0.0
    %801 = vmatpush1.msra.mxu0 0.0
    %802 = vmatprep.subr.mxu0 0.0
    %803 = vmatpush1.msra.mxu0 0.0
    %804 = vmatprep.subr.mxu0 0.0
    %805 = vmatpush1.msra.mxu0 0.0
    %806 = vmatprep.subr.mxu0 0.0
    %807 = vmatpush1.msra.mxu0 0.0
    %808 = vmatprep.subr.mxu0 0.0
    %809 = vmatpush1.msra.mxu0 0.0
    %810 = vmatprep.subr.mxu0 0.0
    %811 = vmatpush1.msra.mxu0 0.0
    %812 = vmatprep.subr.mxu0 0.0
    %813 = vmatpush1.msra.mxu0 0.0
    %814 = vmatprep.subr.mxu0 0.0
    %815 = vmatpush1.msra.mxu0 0.0
    %816 = vmatprep.subr.mxu0 0.0
    %817 = vmatpush1.msra.mxu0 0.0
    %818 = vmatprep.subr.mxu0 0.0
    %819 = vmatpush1.msra.mxu0 0.0
    %820 = vmatprep.subr.mxu0 0.0
    %821 = vmatpush1.msra.mxu0 0.0
    %822 = vmatprep.subr.mxu0 0.0
    %823 = vmatpush1.msra.mxu0 0.0
    %824 = vmatprep.subr.mxu0 0.0
    %825 = vmatpush1.msra.mxu0 0.0
    %826 = vmatprep.subr.mxu0 0.0
    %827 = vmatpush1.msra.mxu0 0.0
    %828 = vmatprep.mubr.f32.mxu0 0.0
    %829 = vmatmul.mubr.f32.gmra.mrb[0].mxu0 %v669
    %v830 = vpop.f32.mrb[0].mxu0
    %v831 = vadd.f32 0.0, %v830
    %v832 = vpop.f32.mrb[0].mxu0
    %v833 = vadd.f32 0.0, %v832
    %834 = vmatprep.mubr.f32.mxu0 0.0
    %835 = vmatmul.mubr.f32.gmra.mrb[0].mxu0 %v672
    %v836 = vpop.f32.mrb[0].mxu0
    %v837 = vadd.f32 0.0, %v836
    %v838 = vpop.f32.mrb[0].mxu0
    %v839 = vadd.f32 0.0, %v838
    %840 = vdwg.mxu0
    %v841 = vlaneseq
    %v842 = vshrl.u32 %v841, 7
    %v843 = vadd.s32 %v842, 8
    %v844 = vadd.s32 %v842, 16
    %v845 = vadd.s32 %v842, 24
    %v846 = vadd.s32 %v842, 32
    %v847 = vadd.s32 %v842, 40
    %v848 = vadd.s32 %v842, 48
    %v849 = vadd.s32 %v842, 56
    %v850 = vadd.s32 %v842, 64
    %v851 = vadd.s32 %v842, 72
    %v852 = vadd.s32 %v842, 80
    %v853 = vadd.s32 %v842, 88
    %v854 = vadd.s32 %v842, 96
    %v855 = vadd.s32 %v842, 104
    %v856 = vadd.s32 %v842, 112
    %v857 = vadd.s32 %v842, 120
    %v858 = vadd.s32 %v842, 128
    %v859 = vadd.s32 %v842, 136
    %v860 = vadd.s32 %v842, 144
    %v861 = vadd.s32 %v842, 152
    %v862 = vadd.s32 %v842, 160
    %v863 = vadd.s32 %v842, 168
    %v864 = vadd.s32 %v842, 176
    %v865 = vadd.s32 %v842, 184
    %v866 = vadd.s32 %v842, 192
    %v867 = vadd.s32 %v842, 200
    %v868 = vadd.s32 %v842, 208
    %v869 = vadd.s32 %v842, 216
    %v870 = vadd.s32 %v842, 224
    %v871 = vadd.s32 %v842, 232
    %v872 = vadd.s32 %v842, 240
    %v873 = vadd.s32 %v842, 248
    %v874 = vlaneseq
    %v875 = vand.u32 %v874, 127
    %v876 = vmul.u32 %v875, 2
    %vm877 = vcmp.eq.s32.totalorder %v842, %v876
    %vm878 = vcmp.eq.s32.totalorder %v843, %v876
    %vm879 = vcmp.eq.s32.totalorder %v844, %v876
    %vm880 = vcmp.eq.s32.totalorder %v845, %v876
    %vm881 = vcmp.eq.s32.totalorder %v846, %v876
    %vm882 = vcmp.eq.s32.totalorder %v847, %v876
    %vm883 = vcmp.eq.s32.totalorder %v848, %v876
    %vm884 = vcmp.eq.s32.totalorder %v849, %v876
    %vm885 = vcmp.eq.s32.totalorder %v850, %v876
    %vm886 = vcmp.eq.s32.totalorder %v851, %v876
    %vm887 = vcmp.eq.s32.totalorder %v852, %v876
    %vm888 = vcmp.eq.s32.totalorder %v853, %v876
    %vm889 = vcmp.eq.s32.totalorder %v854, %v876
    %vm890 = vcmp.eq.s32.totalorder %v855, %v876
    %vm891 = vcmp.eq.s32.totalorder %v856, %v876
    %vm892 = vcmp.eq.s32.totalorder %v857, %v876
    %vm893 = vcmp.eq.s32.totalorder %v858, %v876
    %vm894 = vcmp.eq.s32.totalorder %v859, %v876
    %vm895 = vcmp.eq.s32.totalorder %v860, %v876
    %vm896 = vcmp.eq.s32.totalorder %v861, %v876
    %vm897 = vcmp.eq.s32.totalorder %v862, %v876
    %vm898 = vcmp.eq.s32.totalorder %v863, %v876
    %vm899 = vcmp.eq.s32.totalorder %v864, %v876
    %vm900 = vcmp.eq.s32.totalorder %v865, %v876
    %vm901 = vcmp.eq.s32.totalorder %v866, %v876
    %vm902 = vcmp.eq.s32.totalorder %v867, %v876
    %vm903 = vcmp.eq.s32.totalorder %v868, %v876
    %vm904 = vcmp.eq.s32.totalorder %v869, %v876
    %vm905 = vcmp.eq.s32.totalorder %v870, %v876
    %vm906 = vcmp.eq.s32.totalorder %v871, %v876
    %vm907 = vcmp.eq.s32.totalorder %v872, %v876
    %vm908 = vcmp.eq.s32.totalorder %v873, %v876
    %v909 = vsel %vm877, 1.0, 0.0
    %v910 = vsel %vm878, 1.0, 0.0
    %v911 = vsel %vm879, 1.0, 0.0
    %v912 = vsel %vm880, 1.0, 0.0
    %v913 = vsel %vm881, 1.0, 0.0
    %v914 = vsel %vm882, 1.0, 0.0
    %v915 = vsel %vm883, 1.0, 0.0
    %v916 = vsel %vm884, 1.0, 0.0
    %v917 = vsel %vm885, 1.0, 0.0
    %v918 = vsel %vm886, 1.0, 0.0
    %v919 = vsel %vm887, 1.0, 0.0
    %v920 = vsel %vm888, 1.0, 0.0
    %v921 = vsel %vm889, 1.0, 0.0
    %v922 = vsel %vm890, 1.0, 0.0
    %v923 = vsel %vm891, 1.0, 0.0
    %v924 = vsel %vm892, 1.0, 0.0
    %v925 = vsel %vm893, 1.0, 0.0
    %v926 = vsel %vm894, 1.0, 0.0
    %v927 = vsel %vm895, 1.0, 0.0
    %v928 = vsel %vm896, 1.0, 0.0
    %v929 = vsel %vm897, 1.0, 0.0
    %v930 = vsel %vm898, 1.0, 0.0
    %v931 = vsel %vm899, 1.0, 0.0
    %v932 = vsel %vm900, 1.0, 0.0
    %v933 = vsel %vm901, 1.0, 0.0
    %v934 = vsel %vm902, 1.0, 0.0
    %v935 = vsel %vm903, 1.0, 0.0
    %v936 = vsel %vm904, 1.0, 0.0
    %v937 = vsel %vm905, 1.0, 0.0
    %v938 = vsel %vm906, 1.0, 0.0
    %v939 = vsel %vm907, 1.0, 0.0
    %v940 = vsel %vm908, 1.0, 0.0
    %945 = vrot.lane.b32.xlu0 %v754, 127
    %v946 = vpop.permute.xlu0 %945
    %947 = vrot.lane.b32.xlu0 %v756, 127
    %v948 = vpop.permute.xlu0 %947
    %949 = vrot.lane.b32.xlu0 %v760, 127
    %v950 = vpop.permute.xlu0 %949
    %951 = vrot.lane.b32.xlu0 %v762, 127
    %v952 = vpop.permute.xlu0 %951
    %v953 = vsel %vm134, %v946, %v948
    %v954 = vsel %vm134, %v950, %v952
    %v959 = vmax.f32 %v754, %v953
    %v960 = vmax.f32 %v756, %v948
    %v961 = vmax.f32 %v760, %v954
    %v962 = vmax.f32 %v762, %v952
    %v964 = vsel %vm134, %v960, 0
    %v967 = vsel %vm134, %v962, 0
    %v970 = vsel %vm674, %v940, 0
    %972 = vmatprep.subr.mxu0 0.0
    %973 = vmatpush1.msra.mxu0 %v909
    %974 = vmatprep.subr.mxu0 0.0
    %975 = vmatpush1.msra.mxu0 %v910
    %976 = vmatprep.subr.mxu0 0.0
    %977 = vmatpush1.msra.mxu0 %v911
    %978 = vmatprep.subr.mxu0 0.0
    %979 = vmatpush1.msra.mxu0 %v912
    %980 = vmatprep.subr.mxu0 0.0
    %981 = vmatpush1.msra.mxu0 %v913
    %982 = vmatprep.subr.mxu0 0.0
    %983 = vmatpush1.msra.mxu0 %v914
    %984 = vmatprep.subr.mxu0 0.0
    %985 = vmatpush1.msra.mxu0 %v915
    %986 = vmatprep.subr.mxu0 0.0
    %987 = vmatpush1.msra.mxu0 %v916
    %988 = vmatprep.subr.mxu0 0.0
    %989 = vmatpush1.msra.mxu0 %v917
    %990 = vmatprep.subr.mxu0 0.0
    %991 = vmatpush1.msra.mxu0 %v918
    %992 = vmatprep.subr.mxu0 0.0
    %993 = vmatpush1.msra.mxu0 %v919
    %994 = vmatprep.subr.mxu0 0.0
    %995 = vmatpush1.msra.mxu0 %v920
    %996 = vmatprep.subr.mxu0 0.0
    %997 = vmatpush1.msra.mxu0 %v921
    %998 = vmatprep.subr.mxu0 0.0
    %999 = vmatpush1.msra.mxu0 %v922
    %1000 = vmatprep.subr.mxu0 0.0
    %1001 = vmatpush1.msra.mxu0 %v923
    %1002 = vmatprep.subr.mxu0 0.0
    %1003 = vmatpush1.msra.mxu0 %v924
    %1004 = vmatprep.subr.mxu0 0.0
    %1005 = vmatpush1.msra.mxu0 %v925
    %1006 = vmatprep.subr.mxu0 0.0
    %1007 = vmatpush1.msra.mxu0 %v926
    %1008 = vmatprep.subr.mxu0 0.0
    %1009 = vmatpush1.msra.mxu0 %v927
    %1010 = vmatprep.subr.mxu0 0.0
    %1011 = vmatpush1.msra.mxu0 %v928
    %1012 = vmatprep.subr.mxu0 0.0
    %1013 = vmatpush1.msra.mxu0 %v929
    %1014 = vmatprep.subr.mxu0 0.0
    %1015 = vmatpush1.msra.mxu0 %v930
    %1016 = vmatprep.subr.mxu0 0.0
    %1017 = vmatpush1.msra.mxu0 %v931
    %1018 = vmatprep.subr.mxu0 0.0
    %1019 = vmatpush1.msra.mxu0 %v932
    %1020 = vmatprep.subr.mxu0 0.0
    %1021 = vmatpush1.msra.mxu0 %v933
    %1022 = vmatprep.subr.mxu0 0.0
    %1023 = vmatpush1.msra.mxu0 %v934
    %1024 = vmatprep.subr.mxu0 0.0
    %1025 = vmatpush1.msra.mxu0 %v935
    %1026 = vmatprep.subr.mxu0 0.0
    %1027 = vmatpush1.msra.mxu0 %v936
    %1028 = vmatprep.subr.mxu0 0.0
    %1029 = vmatpush1.msra.mxu0 %v937
    %1030 = vmatprep.subr.mxu0 0.0
    %1031 = vmatpush1.msra.mxu0 %v938
    %1032 = vmatprep.subr.mxu0 0.0
    %1033 = vmatpush1.msra.mxu0 %v939
    %1034 = vmatprep.subr.mxu0 0.0
    %1035 = vmatpush1.msra.mxu0 %v970
    %1036 = vmatprep.mubr.f32.mxu0 %v964
    %1037 = vmatmul.mubr.f32.gmra.mrb[0].mxu0 %v959
    %v1038 = vpop.f32.mrb[0].mxu0
    %v1039 = vadd.f32 0.0, %v1038
    %v1040 = vpop.f32.mrb[0].mxu0
    %1041 = vmatprep.mubr.f32.mxu0 %v967
    %1042 = vmatmul.mubr.f32.gmra.mrb[0].mxu0 %v961
    %v1043 = vpop.f32.mrb[0].mxu0
    %v1044 = vadd.f32 0.0, %v1043
    %v1045 = vpop.f32.mrb[0].mxu0
    %1046 = vdwg.mxu0
    %1051 = vrot.lane.b32.xlu0 %v831, 127
    %v1052 = vpop.permute.xlu0 %1051
    %1053 = vrot.lane.b32.xlu0 %v833, 127
    %v1054 = vpop.permute.xlu0 %1053
    %1055 = vrot.lane.b32.xlu0 %v837, 127
    %v1056 = vpop.permute.xlu0 %1055
    %1057 = vrot.lane.b32.xlu0 %v839, 127
    %v1058 = vpop.permute.xlu0 %1057
    %v1059 = vsel %vm134, %v1052, %v1054
    %v1060 = vsel %vm134, %v1056, %v1058
    %v1065 = vmax.f32 %v831, %v1059
    %v1066 = vmax.f32 %v833, %v1054
    %v1067 = vmax.f32 %v837, %v1060
    %v1068 = vmax.f32 %v839, %v1058
    %v1070 = vsel %vm134, %v1066, 0
    %v1073 = vsel %vm134, %v1068, 0
    %1075 = vmatprep.subr.mxu0 0.0
    %1076 = vmatpush1.msra.mxu0 %v909
    %1077 = vmatprep.subr.mxu0 0.0
    %1078 = vmatpush1.msra.mxu0 %v910
    %1079 = vmatprep.subr.mxu0 0.0
    %1080 = vmatpush1.msra.mxu0 %v911
    %1081 = vmatprep.subr.mxu0 0.0
    %1082 = vmatpush1.msra.mxu0 %v912
    %1083 = vmatprep.subr.mxu0 0.0
    %1084 = vmatpush1.msra.mxu0 %v913
    %1085 = vmatprep.subr.mxu0 0.0
    %1086 = vmatpush1.msra.mxu0 %v914
    %1087 = vmatprep.subr.mxu0 0.0
    %1088 = vmatpush1.msra.mxu0 %v915
    %1089 = vmatprep.subr.mxu0 0.0
    %1090 = vmatpush1.msra.mxu0 %v916
    %1091 = vmatprep.subr.mxu0 0.0
    %1092 = vmatpush1.msra.mxu0 %v917
    %1093 = vmatprep.subr.mxu0 0.0
    %1094 = vmatpush1.msra.mxu0 %v918
    %1095 = vmatprep.subr.mxu0 0.0
    %1096 = vmatpush1.msra.mxu0 %v919
    %1097 = vmatprep.subr.mxu0 0.0
    %1098 = vmatpush1.msra.mxu0 %v920
    %1099 = vmatprep.subr.mxu0 0.0
    %1100 = vmatpush1.msra.mxu0 %v921
    %1101 = vmatprep.subr.mxu0 0.0
    %1102 = vmatpush1.msra.mxu0 %v922
    %1103 = vmatprep.subr.mxu0 0.0
    %1104 = vmatpush1.msra.mxu0 %v923
    %1105 = vmatprep.subr.mxu0 0.0
    %1106 = vmatpush1.msra.mxu0 %v924
    %1107 = vmatprep.subr.mxu0 0.0
    %1108 = vmatpush1.msra.mxu0 %v925
    %1109 = vmatprep.subr.mxu0 0.0
    %1110 = vmatpush1.msra.mxu0 %v926
    %1111 = vmatprep.subr.mxu0 0.0
    %1112 = vmatpush1.msra.mxu0 %v927
    %1113 = vmatprep.subr.mxu0 0.0
    %1114 = vmatpush1.msra.mxu0 %v928
    %1115 = vmatprep.subr.mxu0 0.0
    %1116 = vmatpush1.msra.mxu0 %v929
    %1117 = vmatprep.subr.mxu0 0.0
    %1118 = vmatpush1.msra.mxu0 %v930
    %1119 = vmatprep.subr.mxu0 0.0
    %1120 = vmatpush1.msra.mxu0 %v931
    %1121 = vmatprep.subr.mxu0 0.0
    %1122 = vmatpush1.msra.mxu0 %v932
    %1123 = vmatprep.subr.mxu0 0.0
    %1124 = vmatpush1.msra.mxu0 %v933
    %1125 = vmatprep.subr.mxu0 0.0
    %1126 = vmatpush1.msra.mxu0 %v934
    %1127 = vmatprep.subr.mxu0 0.0
    %1128 = vmatpush1.msra.mxu0 %v935
    %1129 = vmatprep.subr.mxu0 0.0
    %1130 = vmatpush1.msra.mxu0 %v936
    %1131 = vmatprep.subr.mxu0 0.0
    %1132 = vmatpush1.msra.mxu0 %v937
    %1133 = vmatprep.subr.mxu0 0.0
    %1134 = vmatpush1.msra.mxu0 %v938
    %1135 = vmatprep.subr.mxu0 0.0
    %1136 = vmatpush1.msra.mxu0 %v939
    %1137 = vmatprep.subr.mxu0 0.0
    %1138 = vmatpush1.msra.mxu0 %v970
    %1139 = vmatprep.mubr.f32.mxu0 %v1070
    %1140 = vmatmul.mubr.f32.gmra.mrb[0].mxu0 %v1065
    %v1141 = vpop.f32.mrb[0].mxu0
    %v1142 = vadd.f32 0.0, %v1141
    %v1143 = vpop.f32.mrb[0].mxu0
    %1144 = vmatprep.mubr.f32.mxu0 %v1073
    %1145 = vmatmul.mubr.f32.gmra.mrb[0].mxu0 %v1067
    %v1146 = vpop.f32.mrb[0].mxu0
    %v1147 = vadd.f32 0.0, %v1146
    %v1148 = vpop.f32.mrb[0].mxu0
    %1149 = vdwg.mxu0
    %v1150 = vld [vmem:[%s2] sm:$0xff]
    %v1151 = vld [vmem:[%s2 + $0x8] sm:$0xff]
    %v1152 = vld [vmem:[%s3] sm:$0xff]
    %v1153 = vld [vmem:[%s3 + $0x8] sm:$0xff]
    %v1154 = vadd.f32 %v1039, %v1044
    %v1155 = vrot.slane %v1154, 4
    %v1156 = vadd.f32 %v1154, %v1155
    %v1157 = vrot.slane %v1156, 2
    %v1158 = vadd.f32 %v1156, %v1157
    %v1159 = vrot.slane %v1158, 1
    %v1160 = vadd.f32 %v1158, %v1159
    %v1161 = vadd.f32 %v1142, %v1147
    %v1162 = vrot.slane %v1161, 4
    %v1163 = vadd.f32 %v1161, %v1162
    %v1164 = vrot.slane %v1163, 2
    %v1165 = vadd.f32 %v1163, %v1164
    %v1166 = vrot.slane %v1165, 1
    %v1167 = vadd.f32 %v1165, %v1166
    %v1168 = vrcp.pop 16.0
    %v1169 = vmul.f32 %v1160, %v1168
    %v1170 = vmul.f32 %v1167, %v1168
    %v1171 = vsub.f32 %v1039, %v1169
    %v1172 = vsub.f32 %v1142, %v1170
    %v1173 = vsub.f32 %v1044, %v1169
    %v1174 = vsub.f32 %v1147, %v1170
    %v1175 = vmul.f32 %v1171, %v1171
    %v1176 = vmul.f32 %v1172, %v1172
    %v1177 = vmul.f32 %v1173, %v1173
    %v1178 = vmul.f32 %v1174, %v1174
    %v1179 = vadd.f32 %v1175, %v1177
    %v1180 = vrot.slane %v1179, 4
    %v1181 = vadd.f32 %v1179, %v1180
    %v1182 = vrot.slane %v1181, 2
    %v1183 = vadd.f32 %v1181, %v1182
    %v1184 = vrot.slane %v1183, 1
    %v1185 = vadd.f32 %v1183, %v1184
    %v1186 = vadd.f32 %v1176, %v1178
    %v1187 = vrot.slane %v1186, 4
    %v1188 = vadd.f32 %v1186, %v1187
    %v1189 = vrot.slane %v1188, 2
    %v1190 = vadd.f32 %v1188, %v1189
    %v1191 = vrot.slane %v1190, 1
    %v1192 = vadd.f32 %v1190, %v1191
    %v1193 = vmul.f32 %v1185, %v1168
    %v1194 = vmul.f32 %v1192, %v1168
    %v1195 = vadd.f32 %v1193, 1e-05
    %v1196 = vadd.f32 %v1194, 1e-05
    %v1197 = vrsqrt.pop %v1195
    %v1198 = vrsqrt.pop %v1196
    %v1199 = vmul.f32 %v1171, %v1197
    %v1200 = vmul.f32 %v1172, %v1198
    %v1201 = vmul.f32 %v1173, %v1197
    %v1202 = vmul.f32 %v1174, %v1198
    %1204 = vset.pattern.permute.xlu0 0
    %1205 = vperm.xlu0 %1204, %v1150
    %v1206 = vpop.permute.xlu0 %1205
    %1209 = vset.pattern.permute.xlu0 0
    %1210 = vperm.xlu0 %1209, %v1151
    %v1211 = vpop.permute.xlu0 %1210
    %v1213 = vmul.f32 %v1199, %v1206
    %v1214 = vmul.f32 %v1200, %v1206
    %v1215 = vmul.f32 %v1201, %v1211
    %v1216 = vmul.f32 %v1202, %v1211
    %1218 = vset.pattern.permute.xlu0 0
    %1219 = vperm.xlu0 %1218, %v1152
    %v1220 = vpop.permute.xlu0 %1219
    %1223 = vset.pattern.permute.xlu0 0
    %1224 = vperm.xlu0 %1223, %v1153
    %v1225 = vpop.permute.xlu0 %1224
    %v1227 = vadd.f32 %v1213, %v1220
    %v1228 = vadd.f32 %v1214, %v1220
    %v1229 = vadd.f32 %v1215, %v1225
    %v1230 = vadd.f32 %v1216, %v1225
    %vm1231 = vcmp.ge.f32.partialorder %v1227, 0.0
    %vm1232 = vcmp.ge.f32.partialorder %v1228, 0.0
    %vm1233 = vcmp.ge.f32.partialorder %v1229, 0.0
    %vm1234 = vcmp.ge.f32.partialorder %v1230, 0.0
    %v1235 = vmul.f32 %v1227, 0.01
    %v1236 = vmul.f32 %v1228, 0.01
    %v1237 = vmul.f32 %v1229, 0.01
    %v1238 = vmul.f32 %v1230, 0.01
    %v1239 = vsel %vm1231, %v1227, %v1235
    %v1240 = vsel %vm1232, %v1228, %v1236
    %v1241 = vsel %vm1233, %v1229, %v1237
    %v1242 = vsel %vm1234, %v1230, %v1238
    %1243 = vst.msk [vmem:[#allocation3] sm:$0xff] %vm193, %v1239
    %1244 = vst.msk [vmem:[#allocation3 + $0x10] sm:$0xff] %vm193, %v1241
    %1247 = vrot.lane.b32.xlu0 %v1240, 124
    %v1248 = vpop.permute.xlu0 %1247
    %1249 = vrot.lane.b32.xlu0 %v1242, 124
    %v1250 = vpop.permute.xlu0 %1249
    %vm1253 = vcmask 1048544
    %1254 = vst.msk [vmem:[#allocation3] sm:$0xff] %vm1253, %v1248
    %1255 = vst.msk [vmem:[#allocation3 + $0x8] sm:$0xff] %vm261, %v1248
    %1256 = vst.msk [vmem:[#allocation3 + $0x10] sm:$0xff] %vm1253, %v1250
    %1257 = vst.msk [vmem:[#allocation3 + $0x18] sm:$0xff] %vm261, %v1250
    %1260 = vrot.lane.b32.xlu0 %v1239, 127
    %v1261 = vpop.permute.xlu0 %1260
    %1262 = vrot.lane.b32.xlu0 %v1241, 127
    %v1263 = vpop.permute.xlu0 %1262
    %1266 = vst.msk [vmem:[#allocation3 + $0x20] sm:$0xff] %vm193, %v1261
    %1267 = vst.msk [vmem:[#allocation3 + $0x30] sm:$0xff] %vm193, %v1263
    %1268 = vrot.lane.b32.xlu0 %v1240, 123
    %v1269 = vpop.permute.xlu0 %1268
    %1270 = vrot.lane.b32.xlu0 %v1242, 123
    %v1271 = vpop.permute.xlu0 %1270
    %1274 = vst.msk [vmem:[#allocation3 + $0x20] sm:$0xff] %vm1253, %v1269
    %1275 = vst.msk [vmem:[#allocation3 + $0x28] sm:$0xff] %vm261, %v1269
    %1276 = vst.msk [vmem:[#allocation3 + $0x30] sm:$0xff] %vm1253, %v1271
    %1277 = vst.msk [vmem:[#allocation3 + $0x38] sm:$0xff] %vm261, %v1271
    %1278 = vrot.lane.b32.xlu0 %v1239, 126
    %v1279 = vpop.permute.xlu0 %1278
    %1280 = vrot.lane.b32.xlu0 %v1241, 126
    %v1281 = vpop.permute.xlu0 %1280
    %1284 = vst.msk [vmem:[#allocation3 + $0x40] sm:$0xff] %vm193, %v1279
    %1285 = vst.msk [vmem:[#allocation3 + $0x50] sm:$0xff] %vm193, %v1281
    %1286 = vrot.lane.b32.xlu0 %v1240, 122
    %v1287 = vpop.permute.xlu0 %1286
    %1288 = vrot.lane.b32.xlu0 %v1242, 122
    %v1289 = vpop.permute.xlu0 %1288
    %1292 = vst.msk [vmem:[#allocation3 + $0x40] sm:$0xff] %vm1253, %v1287
    %1293 = vst.msk [vmem:[#allocation3 + $0x48] sm:$0xff] %vm261, %v1287
    %1294 = vst.msk [vmem:[#allocation3 + $0x50] sm:$0xff] %vm1253, %v1289
    %1295 = vst.msk [vmem:[#allocation3 + $0x58] sm:$0xff] %vm261, %v1289
    %1296 = vrot.lane.b32.xlu0 %v1239, 125
    %v1297 = vpop.permute.xlu0 %1296
    %1298 = vrot.lane.b32.xlu0 %v1241, 125
    %v1299 = vpop.permute.xlu0 %1298
    %1302 = vst.msk [vmem:[#allocation3 + $0x60] sm:$0xff] %vm193, %v1297
    %1303 = vst.msk [vmem:[#allocation3 + $0x70] sm:$0xff] %vm193, %v1299
    %1304 = vrot.lane.b32.xlu0 %v1240, 121
    %v1305 = vpop.permute.xlu0 %1304
    %1306 = vrot.lane.b32.xlu0 %v1242, 121
    %v1307 = vpop.permute.xlu0 %1306
    %1310 = vst.msk [vmem:[#allocation3 + $0x60] sm:$0xff] %vm1253, %v1305
    %1311 = vst.msk [vmem:[#allocation3 + $0x68] sm:$0xff] %vm261, %v1305
    %1312 = vst.msk [vmem:[#allocation3 + $0x70] sm:$0xff] %vm1253, %v1307
    %1313 = vst.msk [vmem:[#allocation3 + $0x78] sm:$0xff] %vm261, %v1307
    %1314 = vrot.lane.b32.xlu0 %v1239, 124
    %v1315 = vpop.permute.xlu0 %1314
    %1316 = vrot.lane.b32.xlu0 %v1241, 124
    %v1317 = vpop.permute.xlu0 %1316
    %1320 = vst.msk [vmem:[#allocation3 + $0x80] sm:$0xff] %vm193, %v1315
    %1321 = vst.msk [vmem:[#allocation3 + $0x90] sm:$0xff] %vm193, %v1317
    %1322 = vrot.lane.b32.xlu0 %v1240, 120
    %v1323 = vpop.permute.xlu0 %1322
    %1324 = vrot.lane.b32.xlu0 %v1242, 120
    %v1325 = vpop.permute.xlu0 %1324
    %1328 = vst.msk [vmem:[#allocation3 + $0x80] sm:$0xff] %vm1253, %v1323
    %1329 = vst.msk [vmem:[#allocation3 + $0x88] sm:$0xff] %vm261, %v1323
    %1330 = vst.msk [vmem:[#allocation3 + $0x90] sm:$0xff] %vm1253, %v1325
    %1331 = vst.msk [vmem:[#allocation3 + $0x98] sm:$0xff] %vm261, %v1325
    %v1332 = vld [vmem:[%s4] sm:$0xff]
    %v1333 = vld [vmem:[%s4 + $0x8] sm:$0xff]
    %v1334 = vld [vmem:[#allocation3] sm:$0xff]
    %v1335 = vld [vmem:[#allocation3 + $0x8] sm:$0xff]
    %v1336 = vld [vmem:[#allocation3 + $0x10] sm:$0xff]
    %v1337 = vld [vmem:[#allocation3 + $0x18] sm:$0xff]
    %v1338 = vld [vmem:[#allocation3 + $0x20] sm:$0xff]
    %v1339 = vld [vmem:[#allocation3 + $0x28] sm:$0xff]
    %v1340 = vld [vmem:[#allocation3 + $0x30] sm:$0xff]
    %v1341 = vld [vmem:[#allocation3 + $0x38] sm:$0xff]
    %v1342 = vld [vmem:[#allocation3 + $0x40] sm:$0xff]
    %v1343 = vld [vmem:[#allocation3 + $0x48] sm:$0xff]
    %v1344 = vld [vmem:[#allocation3 + $0x50] sm:$0xff]
    %v1345 = vld [vmem:[#allocation3 + $0x58] sm:$0xff]
    %v1346 = vld [vmem:[#allocation3 + $0x60] sm:$0xff]
    %v1347 = vld [vmem:[#allocation3 + $0x68] sm:$0xff]
    %v1348 = vld [vmem:[#allocation3 + $0x70] sm:$0xff]
    %v1349 = vld [vmem:[#allocation3 + $0x78] sm:$0xff]
    %v1350 = vld [vmem:[#allocation3 + $0x80] sm:$0xff]
    %v1351 = vld [vmem:[#allocation3 + $0x88] sm:$0xff]
    %v1352 = vld [vmem:[#allocation3 + $0x90] sm:$0xff]
    %v1353 = vld [vmem:[#allocation3 + $0x98] sm:$0xff]
    %v1354 = vld [vmem:[%s5] sm:$0xff]
    %v1355 = vld [vmem:[%s5 + $0x8] sm:$0xff]
    %1357 = vset.pattern.permute.xlu0 0
    %1358 = vperm.xlu0 %1357, %v1354
    %v1359 = vpop.permute.xlu0 %1358
    %1362 = vset.pattern.permute.xlu0 0
    %1363 = vperm.xlu0 %1362, %v1355
    %v1364 = vpop.permute.xlu0 %1363
    %vm1366 = vcmask 654336
    %v1368 = vsel %vm1366, %v1332, 0
    %v1371 = vsel %vm1366, %v1333, 0
    %1373 = vmatprep.subr.mxu0 %v1335
    %1374 = vmatpush1.msra.mxu0 %v1334
    %1375 = vmatprep.subr.mxu0 %v1337
    %1376 = vmatpush1.msra.mxu0 %v1336
    %1377 = vmatprep.subr.mxu0 %v1339
    %1378 = vmatpush1.msra.mxu0 %v1338
    %1379 = vmatprep.subr.mxu0 %v1341
    %1380 = vmatpush1.msra.mxu0 %v1340
    %1381 = vmatprep.subr.mxu0 %v1343
    %1382 = vmatpush1.msra.mxu0 %v1342
    %1383 = vmatprep.subr.mxu0 %v1345
    %1384 = vmatpush1.msra.mxu0 %v1344
    %1385 = vmatprep.subr.mxu0 %v1347
    %1386 = vmatpush1.msra.mxu0 %v1346
    %1387 = vmatprep.subr.mxu0 %v1349
    %1388 = vmatpush1.msra.mxu0 %v1348
    %1389 = vmatprep.subr.mxu0 %v1351
    %1390 = vmatpush1.msra.mxu0 %v1350
    %1391 = vmatprep.subr.mxu0 %v1353
    %1392 = vmatpush1.msra.mxu0 %v1352
    %1393 = vmatprep.subr.mxu0 0.0
    %1394 = vmatpush1.msra.mxu0 0.0
    %1395 = vmatprep.subr.mxu0 0.0
    %1396 = vmatpush1.msra.mxu0 0.0
    %1397 = vmatprep.subr.mxu0 0.0
    %1398 = vmatpush1.msra.mxu0 0.0
    %1399 = vmatprep.subr.mxu0 0.0
    %1400 = vmatpush1.msra.mxu0 0.0
    %1401 = vmatprep.subr.mxu0 0.0
    %1402 = vmatpush1.msra.mxu0 0.0
    %1403 = vmatprep.subr.mxu0 0.0
    %1404 = vmatpush1.msra.mxu0 0.0
    %1405 = vmatprep.subr.mxu0 0.0
    %1406 = vmatpush1.msra.mxu0 0.0
    %1407 = vmatprep.subr.mxu0 0.0
    %1408 = vmatpush1.msra.mxu0 0.0
    %1409 = vmatprep.subr.mxu0 0.0
    %1410 = vmatpush1.msra.mxu0 0.0
    %1411 = vmatprep.subr.mxu0 0.0
    %1412 = vmatpush1.msra.mxu0 0.0
    %1413 = vmatprep.subr.mxu0 0.0
    %1414 = vmatpush1.msra.mxu0 0.0
    %1415 = vmatprep.subr.mxu0 0.0
    %1416 = vmatpush1.msra.mxu0 0.0
    %1417 = vmatprep.subr.mxu0 0.0
    %1418 = vmatpush1.msra.mxu0 0.0
    %1419 = vmatprep.subr.mxu0 0.0
    %1420 = vmatpush1.msra.mxu0 0.0
    %1421 = vmatprep.subr.mxu0 0.0
    %1422 = vmatpush1.msra.mxu0 0.0
    %1423 = vmatprep.subr.mxu0 0.0
    %1424 = vmatpush1.msra.mxu0 0.0
    %1425 = vmatprep.subr.mxu0 0.0
    %1426 = vmatpush1.msra.mxu0 0.0
    %1427 = vmatprep.subr.mxu0 0.0
    %1428 = vmatpush1.msra.mxu0 0.0
    %1429 = vmatprep.subr.mxu0 0.0
    %1430 = vmatpush1.msra.mxu0 0.0
    %1431 = vmatprep.subr.mxu0 0.0
    %1432 = vmatpush1.msra.mxu0 0.0
    %1433 = vmatprep.subr.mxu0 0.0
    %1434 = vmatpush1.msra.mxu0 0.0
    %1435 = vmatprep.subr.mxu0 0.0
    %1436 = vmatpush1.msra.mxu0 0.0
    %1437 = vmatprep.mubr.f32.mxu0 0.0
    %1438 = vmatmul.mubr.f32.gmra.mrb[0].mxu0 %v1368
    %v1439 = vpop.f32.mrb[0].mxu0
    %v1440 = vadd.f32 %v1359, %v1439
    %v1441 = vpop.f32.mrb[0].mxu0
    %v1442 = vadd.f32 %v1359, %v1441
    %1443 = vmatprep.mubr.f32.mxu0 0.0
    %1444 = vmatmul.mubr.f32.gmra.mrb[0].mxu0 %v1371
    %v1445 = vpop.f32.mrb[0].mxu0
    %v1446 = vadd.f32 %v1364, %v1445
    %v1447 = vpop.f32.mrb[0].mxu0
    %v1448 = vadd.f32 %v1364, %v1447
    %1449 = vdwg.mxu0
    %1452 = vrot.lane.b32.xlu0 %v1440, 127
    %v1453 = vpop.permute.xlu0 %1452
    %1454 = vrot.lane.b32.xlu0 %v1446, 127
    %v1455 = vpop.permute.xlu0 %1454
    %v1458 = vmax.f32 %v1440, %v1453
    %v1459 = vmax.f32 %v1446, %v1455
    %v1461 = vsel %vm210, %v1458, 0
    %v1464 = vsel %vm210, %v1459, 0
    %vm1466 = vcmask 1042432
    %v1468 = vsel %vm1466, %v924, 0
    %1470 = vmatprep.subr.mxu0 0.0
    %1471 = vmatpush1.msra.mxu0 %v909
    %1472 = vmatprep.subr.mxu0 0.0
    %1473 = vmatpush1.msra.mxu0 %v910
    %1474 = vmatprep.subr.mxu0 0.0
    %1475 = vmatpush1.msra.mxu0 %v911
    %1476 = vmatprep.subr.mxu0 0.0
    %1477 = vmatpush1.msra.mxu0 %v912
    %1478 = vmatprep.subr.mxu0 0.0
    %1479 = vmatpush1.msra.mxu0 %v913
    %1480 = vmatprep.subr.mxu0 0.0
    %1481 = vmatpush1.msra.mxu0 %v914
    %1482 = vmatprep.subr.mxu0 0.0
    %1483 = vmatpush1.msra.mxu0 %v915
    %1484 = vmatprep.subr.mxu0 0.0
    %1485 = vmatpush1.msra.mxu0 %v916
    %1486 = vmatprep.subr.mxu0 0.0
    %1487 = vmatpush1.msra.mxu0 %v917
    %1488 = vmatprep.subr.mxu0 0.0
    %1489 = vmatpush1.msra.mxu0 %v918
    %1490 = vmatprep.subr.mxu0 0.0
    %1491 = vmatpush1.msra.mxu0 %v919
    %1492 = vmatprep.subr.mxu0 0.0
    %1493 = vmatpush1.msra.mxu0 %v920
    %1494 = vmatprep.subr.mxu0 0.0
    %1495 = vmatpush1.msra.mxu0 %v921
    %1496 = vmatprep.subr.mxu0 0.0
    %1497 = vmatpush1.msra.mxu0 %v922
    %1498 = vmatprep.subr.mxu0 0.0
    %1499 = vmatpush1.msra.mxu0 %v923
    %1500 = vmatprep.subr.mxu0 0.0
    %1501 = vmatpush1.msra.mxu0 %v1468
    %1502 = vmatprep.subr.mxu0 0.0
    %1503 = vmatpush1.msra.mxu0 0.0
    %1504 = vmatprep.subr.mxu0 0.0
    %1505 = vmatpush1.msra.mxu0 0.0
    %1506 = vmatprep.subr.mxu0 0.0
    %1507 = vmatpush1.msra.mxu0 0.0
    %1508 = vmatprep.subr.mxu0 0.0
    %1509 = vmatpush1.msra.mxu0 0.0
    %1510 = vmatprep.subr.mxu0 0.0
    %1511 = vmatpush1.msra.mxu0 0.0
    %1512 = vmatprep.subr.mxu0 0.0
    %1513 = vmatpush1.msra.mxu0 0.0
    %1514 = vmatprep.subr.mxu0 0.0
    %1515 = vmatpush1.msra.mxu0 0.0
    %1516 = vmatprep.subr.mxu0 0.0
    %1517 = vmatpush1.msra.mxu0 0.0
    %1518 = vmatprep.subr.mxu0 0.0
    %1519 = vmatpush1.msra.mxu0 0.0
    %1520 = vmatprep.subr.mxu0 0.0
    %1521 = vmatpush1.msra.mxu0 0.0
    %1522 = vmatprep.subr.mxu0 0.0
    %1523 = vmatpush1.msra.mxu0 0.0
    %1524 = vmatprep.subr.mxu0 0.0
    %1525 = vmatpush1.msra.mxu0 0.0
    %1526 = vmatprep.subr.mxu0 0.0
    %1527 = vmatpush1.msra.mxu0 0.0
    %1528 = vmatprep.subr.mxu0 0.0
    %1529 = vmatpush1.msra.mxu0 0.0
    %1530 = vmatprep.subr.mxu0 0.0
    %1531 = vmatpush1.msra.mxu0 0.0
    %1532 = vmatprep.subr.mxu0 0.0
    %1533 = vmatpush1.msra.mxu0 0.0
    %1534 = vmatprep.mubr.f32.mxu0 0.0
    %1535 = vmatmul.mubr.f32.gmra.mrb[0].mxu0 %v1461
    %v1536 = vpop.f32.mrb[0].mxu0
    %v1537 = vadd.f32 0.0, %v1536
    %v1538 = vpop.f32.mrb[0].mxu0
    %1539 = vmatprep.mubr.f32.mxu0 0.0
    %1540 = vmatmul.mubr.f32.gmra.mrb[0].mxu0 %v1464
    %v1541 = vpop.f32.mrb[0].mxu0
    %v1542 = vadd.f32 0.0, %v1541
    %v1543 = vpop.f32.mrb[0].mxu0
    %1544 = vdwg.mxu0
    %1547 = vrot.lane.b32.xlu0 %v1442, 127
    %v1548 = vpop.permute.xlu0 %1547
    %1549 = vrot.lane.b32.xlu0 %v1448, 127
    %v1550 = vpop.permute.xlu0 %1549
    %v1551 = vsel %vm134, %v1453, %v1548
    %v1552 = vsel %vm134, %v1455, %v1550
    %v1557 = vmax.f32 %v1440, %v1551
    %v1558 = vmax.f32 %v1442, %v1548
    %v1559 = vmax.f32 %v1446, %v1552
    %v1560 = vmax.f32 %v1448, %v1550
    %1565 = vrot.lane.b32.xlu0 %v1557, 4
    %v1566 = vpop.permute.xlu0 %1565
    %1567 = vrot.lane.b32.xlu0 %v1558, 4
    %v1568 = vpop.permute.xlu0 %1567
    %1569 = vrot.lane.b32.xlu0 %v1559, 4
    %v1570 = vpop.permute.xlu0 %1569
    %1571 = vrot.lane.b32.xlu0 %v1560, 4
    %v1572 = vpop.permute.xlu0 %1571
    %vm1573 = vcmask 31744
    %v1574 = vsel %vm1573, %v1566, %v1568
    %v1575 = vsel %vm1573, %v1570, %v1572
    %v1576 = vsel %vm210, %v1574, 0
    %v1578 = vsel %vm210, %v1575, 0
    %1580 = vmatprep.subr.mxu0 0.0
    %1581 = vmatpush1.msra.mxu0 %v909
    %1582 = vmatprep.subr.mxu0 0.0
    %1583 = vmatpush1.msra.mxu0 %v910
    %1584 = vmatprep.subr.mxu0 0.0
    %1585 = vmatpush1.msra.mxu0 %v911
    %1586 = vmatprep.subr.mxu0 0.0
    %1587 = vmatpush1.msra.mxu0 %v912
    %1588 = vmatprep.subr.mxu0 0.0
    %1589 = vmatpush1.msra.mxu0 %v913
    %1590 = vmatprep.subr.mxu0 0.0
    %1591 = vmatpush1.msra.mxu0 %v914
    %1592 = vmatprep.subr.mxu0 0.0
    %1593 = vmatpush1.msra.mxu0 %v915
    %1594 = vmatprep.subr.mxu0 0.0
    %1595 = vmatpush1.msra.mxu0 %v916
    %1596 = vmatprep.subr.mxu0 0.0
    %1597 = vmatpush1.msra.mxu0 %v917
    %1598 = vmatprep.subr.mxu0 0.0
    %1599 = vmatpush1.msra.mxu0 %v918
    %1600 = vmatprep.subr.mxu0 0.0
    %1601 = vmatpush1.msra.mxu0 %v919
    %1602 = vmatprep.subr.mxu0 0.0
    %1603 = vmatpush1.msra.mxu0 %v920
    %1604 = vmatprep.subr.mxu0 0.0
    %1605 = vmatpush1.msra.mxu0 %v921
    %1606 = vmatprep.subr.mxu0 0.0
    %1607 = vmatpush1.msra.mxu0 %v922
    %1608 = vmatprep.subr.mxu0 0.0
    %1609 = vmatpush1.msra.mxu0 %v923
    %1610 = vmatprep.subr.mxu0 0.0
    %1611 = vmatpush1.msra.mxu0 %v1468
    %1612 = vmatprep.subr.mxu0 0.0
    %1613 = vmatpush1.msra.mxu0 0.0
    %1614 = vmatprep.subr.mxu0 0.0
    %1615 = vmatpush1.msra.mxu0 0.0
    %1616 = vmatprep.subr.mxu0 0.0
    %1617 = vmatpush1.msra.mxu0 0.0
    %1618 = vmatprep.subr.mxu0 0.0
    %1619 = vmatpush1.msra.mxu0 0.0
    %1620 = vmatprep.subr.mxu0 0.0
    %1621 = vmatpush1.msra.mxu0 0.0
    %1622 = vmatprep.subr.mxu0 0.0
    %1623 = vmatpush1.msra.mxu0 0.0
    %1624 = vmatprep.subr.mxu0 0.0
    %1625 = vmatpush1.msra.mxu0 0.0
    %1626 = vmatprep.subr.mxu0 0.0
    %1627 = vmatpush1.msra.mxu0 0.0
    %1628 = vmatprep.subr.mxu0 0.0
    %1629 = vmatpush1.msra.mxu0 0.0
    %1630 = vmatprep.subr.mxu0 0.0
    %1631 = vmatpush1.msra.mxu0 0.0
    %1632 = vmatprep.subr.mxu0 0.0
    %1633 = vmatpush1.msra.mxu0 0.0
    %1634 = vmatprep.subr.mxu0 0.0
    %1635 = vmatpush1.msra.mxu0 0.0
    %1636 = vmatprep.subr.mxu0 0.0
    %1637 = vmatpush1.msra.mxu0 0.0
    %1638 = vmatprep.subr.mxu0 0.0
    %1639 = vmatpush1.msra.mxu0 0.0
    %1640 = vmatprep.subr.mxu0 0.0
    %1641 = vmatpush1.msra.mxu0 0.0
    %1642 = vmatprep.subr.mxu0 0.0
    %1643 = vmatpush1.msra.mxu0 0.0
    %1644 = vmatprep.mubr.f32.mxu0 0.0
    %1645 = vmatmul.mubr.f32.gmra.mrb[0].mxu0 %v1576
    %v1646 = vpop.f32.mrb[0].mxu0
    %v1647 = vadd.f32 0.0, %v1646
    %v1648 = vpop.f32.mrb[0].mxu0
    %1649 = vmatprep.mubr.f32.mxu0 0.0
    %1650 = vmatmul.mubr.f32.gmra.mrb[0].mxu0 %v1578
    %v1651 = vpop.f32.mrb[0].mxu0
    %v1652 = vadd.f32 0.0, %v1651
    %v1653 = vpop.f32.mrb[0].mxu0
    %1654 = vdwg.mxu0
    %1657 = vrot.lane.b32.xlu0 %v1647, 62
    %v1658 = vpop.permute.xlu0 %1657
    %1659 = vrot.lane.b32.xlu0 %v1652, 62
    %v1660 = vpop.permute.xlu0 %1659
    %vm1663 = vcmask 506880
    %v1664 = vsel %vm1663, %v1537, %v1658
    %v1665 = vsel %vm1663, %v1542, %v1660
    %v1666 = vld [vmem:[%s6] sm:$0xff]
    %v1667 = vld [vmem:[%s6 + $0x8] sm:$0xff]
    %v1668 = vld [vmem:[%s7] sm:$0xff]
    %v1669 = vld [vmem:[%s7 + $0x8] sm:$0xff]
    %v1670 = vsel %vm193, %v1664, 0.0
    %v1671 = vsel %vm193, %v1665, 0.0
    %v1672 = vadd.f32 %v1670, %v1671
    %v1673 = vrot.slane %v1672, 4
    %v1674 = vadd.f32 %v1672, %v1673
    %v1675 = vrot.slane %v1674, 2
    %v1676 = vadd.f32 %v1674, %v1675
    %v1677 = vrot.slane %v1676, 1
    %v1678 = vadd.f32 %v1676, %v1677
    %v1679 = vmul.f32 %v1678, %v1168
    %v1680 = vsub.f32 %v1664, %v1679
    %v1681 = vsub.f32 %v1665, %v1679
    %v1682 = vmul.f32 %v1680, %v1680
    %v1683 = vmul.f32 %v1681, %v1681
    %v1684 = vsel %vm193, %v1682, 0.0
    %v1685 = vsel %vm193, %v1683, 0.0
    %v1686 = vadd.f32 %v1684, %v1685
    %v1687 = vrot.slane %v1686, 4
    %v1688 = vadd.f32 %v1686, %v1687
    %v1689 = vrot.slane %v1688, 2
    %v1690 = vadd.f32 %v1688, %v1689
    %v1691 = vrot.slane %v1690, 1
    %v1692 = vadd.f32 %v1690, %v1691
    %v1693 = vmul.f32 %v1692, %v1168
    %v1694 = vadd.f32 %v1693, 1e-05
    %v1695 = vrsqrt.pop %v1694
    %v1696 = vmul.f32 %v1680, %v1695
    %v1697 = vmul.f32 %v1681, %v1695
    %1699 = vset.pattern.permute.xlu0 0
    %1700 = vperm.xlu0 %1699, %v1666
    %v1701 = vpop.permute.xlu0 %1700
    %1704 = vset.pattern.permute.xlu0 0
    %1705 = vperm.xlu0 %1704, %v1667
    %v1706 = vpop.permute.xlu0 %1705
    %v1708 = vmul.f32 %v1696, %v1701
    %v1709 = vmul.f32 %v1697, %v1706
    %1711 = vset.pattern.permute.xlu0 0
    %1712 = vperm.xlu0 %1711, %v1668
    %v1713 = vpop.permute.xlu0 %1712
    %1716 = vset.pattern.permute.xlu0 0
    %1717 = vperm.xlu0 %1716, %v1669
    %v1718 = vpop.permute.xlu0 %1717
    %v1720 = vadd.f32 %v1708, %v1713
    %v1721 = vadd.f32 %v1709, %v1718
    %vm1722 = vcmp.ge.f32.partialorder %v1720, 0.0
    %vm1723 = vcmp.ge.f32.partialorder %v1721, 0.0
    %v1724 = vmul.f32 %v1720, 0.01
    %v1725 = vmul.f32 %v1721, 0.01
    %v1726 = vsel %vm1722, %v1720, %v1724
    %v1727 = vsel %vm1723, %v1721, %v1725
    %vm1728 = vcmask 499712
    %1729 = vst.msk [vmem:[#allocation4] sm:$0x1] %vm1728, %v1726
    %v1732 = vunpack.c.l.s4 1983009808
    %v1733 = vunpack.c.0.s8 %v1732
    %v1734 = vlaneseq
    %v1735 = vshrl.u32 %v1734, 7
    %v1736 = vsub.s32 %v1733, %v1735
    %v1737 = vrot.slane %v1726, %v1736
    %v1738 = vrot.slane %v1737, 7
    %v1739 = vrot.slane %v1738, 2
    %1740 = vrot.lane.b32.xlu0 %v1739, 62
    %v1741 = vpop.permute.xlu0 %1740
    %vm1743 = vcmask 1008112
    %1744 = vst.msk [vmem:[#allocation4] sm:$0x1] %vm1743, %v1741
    %v1745 = vcombine.high %v1737, %v1737
    %1746 = vrot.lane.b32.xlu0 %v1745, 124
    %v1747 = vpop.permute.xlu0 %1746
    %v1748 = vrot.slane %v1747, 6
    %v1749 = vsel %vm193, %v1748, %v1747
    %vm1751 = vcmask 1041376
    %vm1752 = vcmask 468994
    %vm1753 = vmor %vm1752, %vm1751
    %1754 = vst.msk [vmem:[#allocation4] sm:$0x5] %vm1753, %v1749
    %v1755 = vrot.slane %v1745, 7
    %v1756 = vrot.slane %v1755, 2
    %1757 = vrot.lane.b32.xlu0 %v1756, 58
    %v1758 = vpop.permute.xlu0 %1757
    %vm1760 = vcmask 975312
    %1761 = vst.msk [vmem:[#allocation4 + $0x2] sm:$0x1] %vm1760, %v1758
    %v1762 = vcombine.high %v1726, %v1726
    %v1764 = vunpack.c.l.s4 1983009808
    %v1765 = vunpack.c.0.s8 %v1764
    %v1766 = vlaneseq
    %v1767 = vshrl.u32 %v1766, 7
    %v1768 = vsub.s32 %v1765, %v1767
    %v1769 = vrot.slane %v1762, %v1768
    %1770 = vrot.lane.b32.xlu0 %v1769, 120
    %v1771 = vpop.permute.xlu0 %1770
    %v1772 = vrot.slane %v1771, 6
    %v1773 = vsel %vm261, %v1772, %v1771
    %vm1775 = vcmask 1041344
    %vm1776 = vcmask 436226
    %vm1777 = vmor %vm1776, %vm1775
    %1778 = vst.msk [vmem:[#allocation4 + $0x2] sm:$0x5] %vm1777, %v1773
    %v1779 = vrot.slane %v1769, 7
    %v1780 = vrot.slane %v1779, 2
    %1781 = vrot.lane.b32.xlu0 %v1780, 54
    %v1782 = vpop.permute.xlu0 %1781
    %vm1784 = vcmask 942512
    %1785 = vst.msk [vmem:[#allocation4 + $0x4] sm:$0x1] %vm1784, %v1782
    %v1786 = vcombine.high %v1769, %v1769
    %1787 = vrot.lane.b32.xlu0 %v1786, 116
    %v1788 = vpop.permute.xlu0 %1787
    %v1789 = vrot.slane %v1788, 6
    %v1790 = vsel %vm329, %v1789, %v1788
    %vm1792 = vcmask 1041312
    %vm1793 = vcmask 403458
    %vm1794 = vmor %vm1793, %vm1792
    %1795 = vst.msk [vmem:[#allocation4 + $0x4] sm:$0x5] %vm1794, %v1790
    %v1796 = vrot.slane %v1786, 7
    %v1797 = vrot.slane %v1796, 2
    %1798 = vrot.lane.b32.xlu0 %v1797, 50
    %v1799 = vpop.permute.xlu0 %1798
    %vm1801 = vcmask 909712
    %1802 = vst.msk [vmem:[#allocation4 + $0x6] sm:$0x1] %vm1801, %v1799
    %v1805 = vunpack.c.l.s4 1983009808
    %v1806 = vunpack.c.0.s8 %v1805
    %v1807 = vlaneseq
    %v1808 = vshrl.u32 %v1807, 7
    %v1809 = vsub.s32 %v1806, %v1808
    %v1810 = vrot.slane %v1727, %v1809
    %1811 = vrot.lane.b32.xlu0 %v1810, 112
    %v1812 = vpop.permute.xlu0 %1811
    %v1813 = vrot.slane %v1812, 6
    %v1814 = vsel %vm397, %v1813, %v1812
    %vm1816 = vcmask 1041280
    %vm1817 = vcmask 370690
    %vm1818 = vmor %vm1817, %vm1816
    %1819 = vst.msk [vmem:[#allocation4 + $0x6] sm:$0x5] %vm1818, %v1814
    %v1820 = vrot.slane %v1810, 7
    %v1821 = vrot.slane %v1820, 2
    %1822 = vrot.lane.b32.xlu0 %v1821, 46
    %v1823 = vpop.permute.xlu0 %1822
    %vm1825 = vcmask 876912
    %1826 = vst.msk [vmem:[#allocation4 + $0x8] sm:$0x1] %vm1825, %v1823
    %v1827 = vcombine.high %v1810, %v1810
    %1828 = vrot.lane.b32.xlu0 %v1827, 108
    %v1829 = vpop.permute.xlu0 %1828
    %v1830 = vrot.slane %v1829, 6
    %v1831 = vsel %vm465, %v1830, %v1829
    %vm1833 = vcmask 1041248
    %vm1834 = vcmask 337922
    %vm1835 = vmor %vm1834, %vm1833
    %1836 = vst.msk [vmem:[#allocation4 + $0x8] sm:$0x5] %vm1835, %v1831
    %v1837 = vrot.slane %v1827, 7
    %v1838 = vrot.slane %v1837, 2
    %1839 = vrot.lane.b32.xlu0 %v1838, 42
    %v1840 = vpop.permute.xlu0 %1839
    %vm1842 = vcmask 844112
    %1843 = vst.msk [vmem:[#allocation4 + $0xa] sm:$0x1] %vm1842, %v1840
    %v1844 = vcombine.high %v1727, %v1727
    %v1846 = vunpack.c.l.s4 1983009808
    %v1847 = vunpack.c.0.s8 %v1846
    %v1848 = vlaneseq
    %v1849 = vshrl.u32 %v1848, 7
    %v1850 = vsub.s32 %v1847, %v1849
    %v1851 = vrot.slane %v1844, %v1850
    %1852 = vrot.lane.b32.xlu0 %v1851, 104
    %v1853 = vpop.permute.xlu0 %1852
    %v1854 = vrot.slane %v1853, 6
    %v1855 = vsel %vm533, %v1854, %v1853
    %vm1857 = vcmask 1041216
    %vm1858 = vcmask 305154
    %vm1859 = vmor %vm1858, %vm1857
    %1860 = vst.msk [vmem:[#allocation4 + $0xa] sm:$0x5] %vm1859, %v1855
    %v1861 = vrot.slane %v1851, 7
    %v1862 = vrot.slane %v1861, 2
    %1863 = vrot.lane.b32.xlu0 %v1862, 38
    %v1864 = vpop.permute.xlu0 %1863
    %vm1866 = vcmask 811312
    %1867 = vst.msk [vmem:[#allocation4 + $0xc] sm:$0x1] %vm1866, %v1864
    %v1868 = vcombine.high %v1851, %v1851
    %1869 = vrot.lane.b32.xlu0 %v1868, 100
    %v1870 = vpop.permute.xlu0 %1869
    %v1871 = vrot.slane %v1870, 6
    %v1872 = vsel %vm601, %v1871, %v1870
    %vm1874 = vcmask 1041184
    %vm1875 = vcmask 272386
    %vm1876 = vmor %vm1875, %vm1874
    %1877 = vst.msk [vmem:[#allocation4 + $0xc] sm:$0x5] %vm1876, %v1872
    %v1878 = vrot.slane %v1868, 7
    %v1879 = vrot.slane %v1878, 2
    %1880 = vrot.lane.b32.xlu0 %v1879, 34
    %v1881 = vpop.permute.xlu0 %1880
    %vm1883 = vcmask 778512
    %1884 = vst.msk [vmem:[#allocation4 + $0xe] sm:$0x1] %vm1883, %v1881
    %1885 = vrot.lane.b32.xlu0 %v1737, 66
    %v1886 = vpop.permute.xlu0 %1885
    %1888 = vst.msk [vmem:[#allocation4 + $0x1] sm:$0x1] %vm1728, %v1886
    %1890 = vst.msk [vmem:[#allocation4 + $0x1] sm:$0x1] %vm1743, %v1739
    %1891 = vrot.lane.b32.xlu0 %v1745, 62
    %v1892 = vpop.permute.xlu0 %1891
    %v1893 = vrot.slane %v1892, 6
    %v1894 = vsel %vm1663, %v1893, %v1892
    %1896 = vst.msk [vmem:[#allocation4 + $0x1] sm:$0x5] %vm1753, %v1894
    %1897 = vrot.lane.b32.xlu0 %v1756, 124
    %v1898 = vpop.permute.xlu0 %1897
    %1900 = vst.msk [vmem:[#allocation4 + $0x3] sm:$0x1] %vm1760, %v1898
    %1901 = vrot.lane.b32.xlu0 %v1769, 58
    %v1902 = vpop.permute.xlu0 %1901
    %v1903 = vrot.slane %v1902, 6
    %vm1904 = vcmask 474112
    %v1905 = vsel %vm1904, %v1903, %v1902
    %1907 = vst.msk [vmem:[#allocation4 + $0x3] sm:$0x5] %vm1777, %v1905
    %1908 = vrot.lane.b32.xlu0 %v1780, 120
    %v1909 = vpop.permute.xlu0 %1908
    %1911 = vst.msk [vmem:[#allocation4 + $0x5] sm:$0x1] %vm1784, %v1909
    %1912 = vrot.lane.b32.xlu0 %v1786, 54
    %v1913 = vpop.permute.xlu0 %1912
    %v1914 = vrot.slane %v1913, 6
    %vm1915 = vcmask 441344
    %v1916 = vsel %vm1915, %v1914, %v1913
    %1918 = vst.msk [vmem:[#allocation4 + $0x5] sm:$0x5] %vm1794, %v1916
    %1919 = vrot.lane.b32.xlu0 %v1797, 116
    %v1920 = vpop.permute.xlu0 %1919
    %1922 = vst.msk [vmem:[#allocation4 + $0x7] sm:$0x1] %vm1801, %v1920
    %1923 = vrot.lane.b32.xlu0 %v1810, 50
    %v1924 = vpop.permute.xlu0 %1923
    %v1925 = vrot.slane %v1924, 6
    %vm1926 = vcmask 408576
    %v1927 = vsel %vm1926, %v1925, %v1924
    %1929 = vst.msk [vmem:[#allocation4 + $0x7] sm:$0x5] %vm1818, %v1927
    %1930 = vrot.lane.b32.xlu0 %v1821, 112
    %v1931 = vpop.permute.xlu0 %1930
    %1933 = vst.msk [vmem:[#allocation4 + $0x9] sm:$0x1] %vm1825, %v1931
    %1934 = vrot.lane.b32.xlu0 %v1827, 46
    %v1935 = vpop.permute.xlu0 %1934
    %v1936 = vrot.slane %v1935, 6
    %vm1937 = vcmask 375808
    %v1938 = vsel %vm1937, %v1936, %v1935
    %1940 = vst.msk [vmem:[#allocation4 + $0x9] sm:$0x5] %vm1835, %v1938
    %1941 = vrot.lane.b32.xlu0 %v1838, 108
    %v1942 = vpop.permute.xlu0 %1941
    %1944 = vst.msk [vmem:[#allocation4 + $0xb] sm:$0x1] %vm1842, %v1942
    %1945 = vrot.lane.b32.xlu0 %v1851, 42
    %v1946 = vpop.permute.xlu0 %1945
    %v1947 = vrot.slane %v1946, 6
    %vm1948 = vcmask 343040
    %v1949 = vsel %vm1948, %v1947, %v1946
    %1951 = vst.msk [vmem:[#allocation4 + $0xb] sm:$0x5] %vm1859, %v1949
    %1952 = vrot.lane.b32.xlu0 %v1862, 104
    %v1953 = vpop.permute.xlu0 %1952
    %1955 = vst.msk [vmem:[#allocation4 + $0xd] sm:$0x1] %vm1866, %v1953
    %1956 = vrot.lane.b32.xlu0 %v1868, 38
    %v1957 = vpop.permute.xlu0 %1956
    %v1958 = vrot.slane %v1957, 6
    %vm1959 = vcmask 310272
    %v1960 = vsel %vm1959, %v1958, %v1957
    %1962 = vst.msk [vmem:[#allocation4 + $0xd] sm:$0x5] %vm1876, %v1960
    %1963 = vrot.lane.b32.xlu0 %v1879, 100
    %v1964 = vpop.permute.xlu0 %1963
    %1966 = vst.msk [vmem:[#allocation4 + $0xf] sm:$0x1] %vm1883, %v1964
    %v1967 = vld [vmem:[#allocation4] sm:$0xff]
    %v1968 = vld [vmem:[#allocation4 + $0x8] sm:$0xff]
    %v1969 = vld [vmem:[%s8] sm:$0xff]
    %v1970 = vld [vmem:[%s8 + $0x8] sm:$0xff]
    %v1971 = vld [vmem:[%s8 + $0x10] sm:$0xff]
    %v1972 = vld [vmem:[%s8 + $0x18] sm:$0xff]
    %v1973 = vld [vmem:[%s8 + $0x20] sm:$0xff]
    %v1974 = vld [vmem:[%s8 + $0x28] sm:$0xff]
    %v1975 = vld [vmem:[%s8 + $0x30] sm:$0xff]
    %v1976 = vld [vmem:[%s8 + $0x38] sm:$0xff]
    %v1977 = vld [vmem:[%s8 + $0x40] sm:$0xff]
    %v1978 = vld [vmem:[%s8 + $0x48] sm:$0xff]
    %v1979 = vld [vmem:[%s8 + $0x50] sm:$0xff]
    %v1980 = vld [vmem:[%s8 + $0x58] sm:$0xff]
    %v1981 = vld [vmem:[%s8 + $0x60] sm:$0xff]
    %v1982 = vld [vmem:[%s8 + $0x68] sm:$0xff]
    %v1983 = vld [vmem:[%s8 + $0x70] sm:$0xff]
    %v1984 = vld [vmem:[%s8 + $0x78] sm:$0xff]
    %v1985 = vld [vmem:[%s8 + $0x80] sm:$0xff]
    %v1986 = vld [vmem:[%s8 + $0x88] sm:$0xff]
    %v1987 = vld [vmem:[%s8 + $0x90] sm:$0xff]
    %v1988 = vld [vmem:[%s8 + $0x98] sm:$0xff]
    %v1989 = vld [vmem:[%s8 + $0xa0] sm:$0xff]
    %v1990 = vld [vmem:[%s8 + $0xa8] sm:$0xff]
    %v1991 = vld [vmem:[%s8 + $0xb0] sm:$0xff]
    %v1992 = vld [vmem:[%s8 + $0xb8] sm:$0xff]
    %v1993 = vld [vmem:[%s8 + $0xc0] sm:$0xff]
    %v1994 = vld [vmem:[%s8 + $0xc8] sm:$0xff]
    %v1995 = vld [vmem:[%s8 + $0xd0] sm:$0xff]
    %v1996 = vld [vmem:[%s8 + $0xd8] sm:$0xff]
    %v1997 = vld [vmem:[%s8 + $0xe0] sm:$0xff]
    %v1998 = vld [vmem:[%s8 + $0xe8] sm:$0xff]
    %v1999 = vld [vmem:[%s8 + $0xf0] sm:$0xff]
    %v2000 = vld [vmem:[%s8 + $0xf8] sm:$0xff]
    %v2001 = vld [vmem:[%s8 + $0x100] sm:$0xff]
    %v2002 = vld [vmem:[%s8 + $0x108] sm:$0xff]
    %v2003 = vld [vmem:[%s8 + $0x110] sm:$0xff]
    %v2004 = vld [vmem:[%s8 + $0x118] sm:$0xff]
    %v2005 = vld [vmem:[%s8 + $0x120] sm:$0xff]
    %v2006 = vld [vmem:[%s8 + $0x128] sm:$0xff]
    %v2007 = vld [vmem:[%s8 + $0x130] sm:$0xff]
    %v2008 = vld [vmem:[%s8 + $0x138] sm:$0xff]
    %v2009 = vld [vmem:[%s8 + $0x140] sm:$0xff]
    %v2010 = vld [vmem:[%s8 + $0x148] sm:$0xff]
    %v2011 = vld [vmem:[%s8 + $0x150] sm:$0xff]
    %v2012 = vld [vmem:[%s8 + $0x158] sm:$0xff]
    %v2013 = vld [vmem:[%s8 + $0x160] sm:$0xff]
    %v2014 = vld [vmem:[%s8 + $0x168] sm:$0xff]
    %v2015 = vld [vmem:[%s8 + $0x170] sm:$0xff]
    %v2016 = vld [vmem:[%s8 + $0x178] sm:$0xff]
    %v2017 = vld [vmem:[%s8 + $0x180] sm:$0xff]
    %v2018 = vld [vmem:[%s8 + $0x188] sm:$0xff]
    %v2019 = vld [vmem:[%s8 + $0x190] sm:$0xff]
    %v2020 = vld [vmem:[%s8 + $0x198] sm:$0xff]
    %v2021 = vld [vmem:[%s8 + $0x1a0] sm:$0xff]
    %v2022 = vld [vmem:[%s8 + $0x1a8] sm:$0xff]
    %v2023 = vld [vmem:[%s8 + $0x1b0] sm:$0xff]
    %v2024 = vld [vmem:[%s8 + $0x1b8] sm:$0xff]
    %v2025 = vld [vmem:[%s8 + $0x1c0] sm:$0xff]
    %v2026 = vld [vmem:[%s8 + $0x1c8] sm:$0xff]
    %v2027 = vld [vmem:[%s8 + $0x1d0] sm:$0xff]
    %v2028 = vld [vmem:[%s8 + $0x1d8] sm:$0xff]
    %v2029 = vld [vmem:[%s8 + $0x1e0] sm:$0xff]
    %v2030 = vld [vmem:[%s8 + $0x1e8] sm:$0xff]
    %v2031 = vld [vmem:[%s8 + $0x1f0] sm:$0xff]
    %v2032 = vld [vmem:[%s8 + $0x1f8] sm:$0xff]
    %v2033 = vld [vmem:[%s8 + $0x200] sm:$0xff]
    %v2034 = vld [vmem:[%s8 + $0x208] sm:$0xff]
    %v2035 = vld [vmem:[%s8 + $0x210] sm:$0xff]
    %v2036 = vld [vmem:[%s8 + $0x218] sm:$0xff]
    %v2037 = vld [vmem:[%s8 + $0x220] sm:$0xff]
    %v2038 = vld [vmem:[%s8 + $0x228] sm:$0xff]
    %v2039 = vld [vmem:[%s8 + $0x230] sm:$0xff]
    %v2040 = vld [vmem:[%s8 + $0x238] sm:$0xff]
    %v2041 = vld [vmem:[%s8 + $0x240] sm:$0xff]
    %v2042 = vld [vmem:[%s8 + $0x248] sm:$0xff]
    %v2043 = vld [vmem:[%s8 + $0x250] sm:$0xff]
    %v2044 = vld [vmem:[%s8 + $0x258] sm:$0xff]
    %v2045 = vld [vmem:[%s8 + $0x260] sm:$0xff]
    %v2046 = vld [vmem:[%s8 + $0x268] sm:$0xff]
    %v2047 = vld [vmem:[%s8 + $0x270] sm:$0xff]
    %v2048 = vld [vmem:[%s8 + $0x278] sm:$0xff]
    %v2049 = vld [vmem:[%s8 + $0x280] sm:$0xff]
    %v2050 = vld [vmem:[%s8 + $0x288] sm:$0xff]
    %v2051 = vld [vmem:[%s8 + $0x290] sm:$0xff]
    %v2052 = vld [vmem:[%s8 + $0x298] sm:$0xff]
    %v2053 = vld [vmem:[%s8 + $0x2a0] sm:$0xff]
    %v2054 = vld [vmem:[%s8 + $0x2a8] sm:$0xff]
    %v2055 = vld [vmem:[%s8 + $0x2b0] sm:$0xff]
    %v2056 = vld [vmem:[%s8 + $0x2b8] sm:$0xff]
    %v2057 = vld [vmem:[%s8 + $0x2c0] sm:$0xff]
    %v2058 = vld [vmem:[%s8 + $0x2c8] sm:$0xff]
    %v2059 = vld [vmem:[%s8 + $0x2d0] sm:$0xff]
    %v2060 = vld [vmem:[%s8 + $0x2d8] sm:$0xff]
    %v2061 = vld [vmem:[%s8 + $0x2e0] sm:$0xff]
    %v2062 = vld [vmem:[%s8 + $0x2e8] sm:$0xff]
    %v2063 = vld [vmem:[%s8 + $0x2f0] sm:$0xff]
    %v2064 = vld [vmem:[%s8 + $0x2f8] sm:$0xff]
    %v2065 = vld [vmem:[%s8 + $0x300] sm:$0xff]
    %v2066 = vld [vmem:[%s8 + $0x308] sm:$0xff]
    %v2067 = vld [vmem:[%s8 + $0x310] sm:$0xff]
    %v2068 = vld [vmem:[%s8 + $0x318] sm:$0xff]
    %v2069 = vld [vmem:[%s8 + $0x320] sm:$0xff]
    %v2070 = vld [vmem:[%s8 + $0x328] sm:$0xff]
    %v2071 = vld [vmem:[%s8 + $0x330] sm:$0xff]
    %v2072 = vld [vmem:[%s8 + $0x338] sm:$0xff]
    %v2073 = vld [vmem:[%s8 + $0x340] sm:$0xff]
    %v2074 = vld [vmem:[%s8 + $0x348] sm:$0xff]
    %v2075 = vld [vmem:[%s8 + $0x350] sm:$0xff]
    %v2076 = vld [vmem:[%s8 + $0x358] sm:$0xff]
    %v2077 = vld [vmem:[%s8 + $0x360] sm:$0xff]
    %v2078 = vld [vmem:[%s8 + $0x368] sm:$0xff]
    %v2079 = vld [vmem:[%s8 + $0x370] sm:$0xff]
    %v2080 = vld [vmem:[%s8 + $0x378] sm:$0xff]
    %v2081 = vld [vmem:[%s8 + $0x380] sm:$0xff]
    %v2082 = vld [vmem:[%s8 + $0x388] sm:$0xff]
    %v2083 = vld [vmem:[%s8 + $0x390] sm:$0xff]
    %v2084 = vld [vmem:[%s8 + $0x398] sm:$0xff]
    %v2085 = vld [vmem:[%s8 + $0x3a0] sm:$0xff]
    %v2086 = vld [vmem:[%s8 + $0x3a8] sm:$0xff]
    %v2087 = vld [vmem:[%s8 + $0x3b0] sm:$0xff]
    %v2088 = vld [vmem:[%s8 + $0x3b8] sm:$0xff]
    %v2089 = vld [vmem:[%s8 + $0x3c0] sm:$0xff]
    %v2090 = vld [vmem:[%s8 + $0x3c8] sm:$0xff]
    %v2091 = vld [vmem:[%s8 + $0x3d0] sm:$0xff]
    %v2092 = vld [vmem:[%s8 + $0x3d8] sm:$0xff]
    %v2093 = vld [vmem:[%s9] sm:$0x1]
    %v2095 = vlaneseq
    %v2096 = vshrl.u32 %v2095, 7
    %v2097 = vsub.s32 0, %v2096
    %v2098 = vrot.slane %v2093, %v2097
    %v2102 = vcombine.high %v1967, %v1967
    %v2104 = vunpack.c.l.s4 1983009808
    %v2105 = vunpack.c.0.s8 %v2104
    %v2106 = vlaneseq
    %v2107 = vshrl.u32 %v2106, 7
    %v2108 = vsub.s32 %v2105, %v2107
    %v2109 = vrot.slane %v1967, %v2108
    %v2111 = vunpack.c.l.s4 1983009808
    %v2112 = vunpack.c.0.s8 %v2111
    %v2113 = vlaneseq
    %v2114 = vshrl.u32 %v2113, 7
    %v2115 = vsub.s32 %v2112, %v2114
    %v2116 = vrot.slane %v2102, %v2115
    %v2117 = vcombine.high %v2109, %v2109
    %v2118 = vcombine.high %v2116, %v2116
    %v2119 = vcombine.high %v1968, %v1968
    %v2121 = vunpack.c.l.s4 1983009808
    %v2122 = vunpack.c.0.s8 %v2121
    %v2123 = vlaneseq
    %v2124 = vshrl.u32 %v2123, 7
    %v2125 = vsub.s32 %v2122, %v2124
    %v2126 = vrot.slane %v1968, %v2125
    %v2128 = vunpack.c.l.s4 1983009808
    %v2129 = vunpack.c.0.s8 %v2128
    %v2130 = vlaneseq
    %v2131 = vshrl.u32 %v2130, 7
    %v2132 = vsub.s32 %v2129, %v2131
    %v2133 = vrot.slane %v2119, %v2132
    %v2134 = vcombine.high %v2126, %v2126
    %v2135 = vcombine.high %v2133, %v2133
    %vm2143 = vcmask 785408
    %v2144 = vsel %vm2143, %v2135, 0
    %2146 = vmatprep.subr.mxu0 0.0
    %2147 = vmatpush1.msra.mxu0 %v1969
    %2148 = vmatprep.subr.mxu0 0.0
    %2149 = vmatpush1.msra.mxu0 %v1970
    %2150 = vmatprep.subr.mxu0 0.0
    %2151 = vmatpush1.msra.mxu0 %v1971
    %2152 = vmatprep.subr.mxu0 0.0
    %2153 = vmatpush1.msra.mxu0 %v1972
    %2154 = vmatprep.subr.mxu0 0.0
    %2155 = vmatpush1.msra.mxu0 %v1973
    %2156 = vmatprep.subr.mxu0 0.0
    %2157 = vmatpush1.msra.mxu0 %v1974
    %2158 = vmatprep.subr.mxu0 0.0
    %2159 = vmatpush1.msra.mxu0 %v1975
    %2160 = vmatprep.subr.mxu0 0.0
    %2161 = vmatpush1.msra.mxu0 %v1976
    %2162 = vmatprep.subr.mxu0 0.0
    %2163 = vmatpush1.msra.mxu0 %v1977
    %2164 = vmatprep.subr.mxu0 0.0
    %2165 = vmatpush1.msra.mxu0 %v1978
    %2166 = vmatprep.subr.mxu0 0.0
    %2167 = vmatpush1.msra.mxu0 %v1979
    %2168 = vmatprep.subr.mxu0 0.0
    %2169 = vmatpush1.msra.mxu0 %v1980
    %2170 = vmatprep.subr.mxu0 0.0
    %2171 = vmatpush1.msra.mxu0 %v1981
    %2172 = vmatprep.subr.mxu0 0.0
    %2173 = vmatpush1.msra.mxu0 %v1982
    %2174 = vmatprep.subr.mxu0 0.0
    %2175 = vmatpush1.msra.mxu0 %v1983
    %2176 = vmatprep.subr.mxu0 0.0
    %2177 = vmatpush1.msra.mxu0 %v1984
    %2178 = vmatprep.subr.mxu0 0.0
    %2179 = vmatpush1.msra.mxu0 %v1985
    %2180 = vmatprep.subr.mxu0 0.0
    %2181 = vmatpush1.msra.mxu0 %v1986
    %2182 = vmatprep.subr.mxu0 0.0
    %2183 = vmatpush1.msra.mxu0 %v1987
    %2184 = vmatprep.subr.mxu0 0.0
    %2185 = vmatpush1.msra.mxu0 %v1988
    %2186 = vmatprep.subr.mxu0 0.0
    %2187 = vmatpush1.msra.mxu0 %v1989
    %2188 = vmatprep.subr.mxu0 0.0
    %2189 = vmatpush1.msra.mxu0 %v1990
    %2190 = vmatprep.subr.mxu0 0.0
    %2191 = vmatpush1.msra.mxu0 %v1991
    %2192 = vmatprep.subr.mxu0 0.0
    %2193 = vmatpush1.msra.mxu0 %v1992
    %2194 = vmatprep.subr.mxu0 0.0
    %2195 = vmatpush1.msra.mxu0 %v1993
    %2196 = vmatprep.subr.mxu0 0.0
    %2197 = vmatpush1.msra.mxu0 %v1994
    %2198 = vmatprep.subr.mxu0 0.0
    %2199 = vmatpush1.msra.mxu0 %v1995
    %2200 = vmatprep.subr.mxu0 0.0
    %2201 = vmatpush1.msra.mxu0 %v1996
    %2202 = vmatprep.subr.mxu0 0.0
    %2203 = vmatpush1.msra.mxu0 %v1997
    %2204 = vmatprep.subr.mxu0 0.0
    %2205 = vmatpush1.msra.mxu0 %v1998
    %2206 = vmatprep.subr.mxu0 0.0
    %2207 = vmatpush1.msra.mxu0 %v1999
    %2208 = vmatprep.subr.mxu0 0.0
    %2209 = vmatpush1.msra.mxu0 %v2000
    %2210 = vmatprep.mubr.f32.mxu0 %v2117
    %2211 = vmatmul.mubr.f32.gmra.mrb[0].mxu0 %v2109
    %v2212 = vpop.f32.mrb[0].mxu0
    %v2213 = vadd.f32 %v2098, %v2212
    %v2214 = vpop.f32.mrb[0].mxu0
    %2215 = vdwg.mxu0
    %2216 = vmatprep.subr.mxu0 0.0
    %2217 = vmatpush1.msra.mxu0 %v2001
    %2218 = vmatprep.subr.mxu0 0.0
    %2219 = vmatpush1.msra.mxu0 %v2002
    %2220 = vmatprep.subr.mxu0 0.0
    %2221 = vmatpush1.msra.mxu0 %v2003
    %2222 = vmatprep.subr.mxu0 0.0
    %2223 = vmatpush1.msra.mxu0 %v2004
    %2224 = vmatprep.subr.mxu0 0.0
    %2225 = vmatpush1.msra.mxu0 %v2005
    %2226 = vmatprep.subr.mxu0 0.0
    %2227 = vmatpush1.msra.mxu0 %v2006
    %2228 = vmatprep.subr.mxu0 0.0
    %2229 = vmatpush1.msra.mxu0 %v2007
    %2230 = vmatprep.subr.mxu0 0.0
    %2231 = vmatpush1.msra.mxu0 %v2008
    %2232 = vmatprep.subr.mxu0 0.0
    %2233 = vmatpush1.msra.mxu0 %v2009
    %2234 = vmatprep.subr.mxu0 0.0
    %2235 = vmatpush1.msra.mxu0 %v2010
    %2236 = vmatprep.subr.mxu0 0.0
    %2237 = vmatpush1.msra.mxu0 %v2011
    %2238 = vmatprep.subr.mxu0 0.0
    %2239 = vmatpush1.msra.mxu0 %v2012
    %2240 = vmatprep.subr.mxu0 0.0
    %2241 = vmatpush1.msra.mxu0 %v2013
    %2242 = vmatprep.subr.mxu0 0.0
    %2243 = vmatpush1.msra.mxu0 %v2014
    %2244 = vmatprep.subr.mxu0 0.0
    %2245 = vmatpush1.msra.mxu0 %v2015
    %2246 = vmatprep.subr.mxu0 0.0
    %2247 = vmatpush1.msra.mxu0 %v2016
    %2248 = vmatprep.subr.mxu0 0.0
    %2249 = vmatpush1.msra.mxu0 %v2017
    %2250 = vmatprep.subr.mxu0 0.0
    %2251 = vmatpush1.msra.mxu0 %v2018
    %2252 = vmatprep.subr.mxu0 0.0
    %2253 = vmatpush1.msra.mxu0 %v2019
    %2254 = vmatprep.subr.mxu0 0.0
    %2255 = vmatpush1.msra.mxu0 %v2020
    %2256 = vmatprep.subr.mxu0 0.0
    %2257 = vmatpush1.msra.mxu0 %v2021
    %2258 = vmatprep.subr.mxu0 0.0
    %2259 = vmatpush1.msra.mxu0 %v2022
    %2260 = vmatprep.subr.mxu0 0.0
    %2261 = vmatpush1.msra.mxu0 %v2023
    %2262 = vmatprep.subr.mxu0 0.0
    %2263 = vmatpush1.msra.mxu0 %v2024
    %2264 = vmatprep.subr.mxu0 0.0
    %2265 = vmatpush1.msra.mxu0 %v2025
    %2266 = vmatprep.subr.mxu0 0.0
    %2267 = vmatpush1.msra.mxu0 %v2026
    %2268 = vmatprep.subr.mxu0 0.0
    %2269 = vmatpush1.msra.mxu0 %v2027
    %2270 = vmatprep.subr.mxu0 0.0
    %2271 = vmatpush1.msra.mxu0 %v2028
    %2272 = vmatprep.subr.mxu0 0.0
    %2273 = vmatpush1.msra.mxu0 %v2029
    %2274 = vmatprep.subr.mxu0 0.0
    %2275 = vmatpush1.msra.mxu0 %v2030
    %2276 = vmatprep.subr.mxu0 0.0
    %2277 = vmatpush1.msra.mxu0 %v2031
    %2278 = vmatprep.subr.mxu0 0.0
    %2279 = vmatpush1.msra.mxu0 %v2032
    %2280 = vmatprep.mubr.f32.mxu0 %v2118
    %2281 = vmatmul.mubr.f32.gmra.mrb[0].mxu0 %v2116
    %v2282 = vpop.f32.mrb[0].mxu0
    %v2283 = vadd.f32 %v2213, %v2282
    %v2284 = vpop.f32.mrb[0].mxu0
    %2285 = vdwg.mxu0
    %2286 = vmatprep.subr.mxu0 0.0
    %2287 = vmatpush1.msra.mxu0 %v2033
    %2288 = vmatprep.subr.mxu0 0.0
    %2289 = vmatpush1.msra.mxu0 %v2034
    %2290 = vmatprep.subr.mxu0 0.0
    %2291 = vmatpush1.msra.mxu0 %v2035
    %2292 = vmatprep.subr.mxu0 0.0
    %2293 = vmatpush1.msra.mxu0 %v2036
    %2294 = vmatprep.subr.mxu0 0.0
    %2295 = vmatpush1.msra.mxu0 %v2037
    %2296 = vmatprep.subr.mxu0 0.0
    %2297 = vmatpush1.msra.mxu0 %v2038
    %2298 = vmatprep.subr.mxu0 0.0
    %2299 = vmatpush1.msra.mxu0 %v2039
    %2300 = vmatprep.subr.mxu0 0.0
    %2301 = vmatpush1.msra.mxu0 %v2040
    %2302 = vmatprep.subr.mxu0 0.0
    %2303 = vmatpush1.msra.mxu0 %v2041
    %2304 = vmatprep.subr.mxu0 0.0
    %2305 = vmatpush1.msra.mxu0 %v2042
    %2306 = vmatprep.subr.mxu0 0.0
    %2307 = vmatpush1.msra.mxu0 %v2043
    %2308 = vmatprep.subr.mxu0 0.0
    %2309 = vmatpush1.msra.mxu0 %v2044
    %2310 = vmatprep.subr.mxu0 0.0
    %2311 = vmatpush1.msra.mxu0 %v2045
    %2312 = vmatprep.subr.mxu0 0.0
    %2313 = vmatpush1.msra.mxu0 %v2046
    %2314 = vmatprep.subr.mxu0 0.0
    %2315 = vmatpush1.msra.mxu0 %v2047
    %2316 = vmatprep.subr.mxu0 0.0
    %2317 = vmatpush1.msra.mxu0 %v2048
    %2318 = vmatprep.subr.mxu0 0.0
    %2319 = vmatpush1.msra.mxu0 %v2049
    %2320 = vmatprep.subr.mxu0 0.0
    %2321 = vmatpush1.msra.mxu0 %v2050
    %2322 = vmatprep.subr.mxu0 0.0
    %2323 = vmatpush1.msra.mxu0 %v2051
    %2324 = vmatprep.subr.mxu0 0.0
    %2325 = vmatpush1.msra.mxu0 %v2052
    %2326 = vmatprep.subr.mxu0 0.0
    %2327 = vmatpush1.msra.mxu0 %v2053
    %2328 = vmatprep.subr.mxu0 0.0
    %2329 = vmatpush1.msra.mxu0 %v2054
    %2330 = vmatprep.subr.mxu0 0.0
    %2331 = vmatpush1.msra.mxu0 %v2055
    %2332 = vmatprep.subr.mxu0 0.0
    %2333 = vmatpush1.msra.mxu0 %v2056
    %2334 = vmatprep.subr.mxu0 0.0
    %2335 = vmatpush1.msra.mxu0 %v2057
    %2336 = vmatprep.subr.mxu0 0.0
    %2337 = vmatpush1.msra.mxu0 %v2058
    %2338 = vmatprep.subr.mxu0 0.0
    %2339 = vmatpush1.msra.mxu0 %v2059
    %2340 = vmatprep.subr.mxu0 0.0
    %2341 = vmatpush1.msra.mxu0 %v2060
    %2342 = vmatprep.subr.mxu0 0.0
    %2343 = vmatpush1.msra.mxu0 %v2061
    %2344 = vmatprep.subr.mxu0 0.0
    %2345 = vmatpush1.msra.mxu0 %v2062
    %2346 = vmatprep.subr.mxu0 0.0
    %2347 = vmatpush1.msra.mxu0 %v2063
    %2348 = vmatprep.subr.mxu0 0.0
    %2349 = vmatpush1.msra.mxu0 %v2064
    %2350 = vmatprep.mubr.f32.mxu0 %v2134
    %2351 = vmatmul.mubr.f32.gmra.mrb[0].mxu0 %v2126
    %v2352 = vpop.f32.mrb[0].mxu0
    %v2353 = vadd.f32 %v2283, %v2352
    %v2354 = vpop.f32.mrb[0].mxu0
    %2355 = vdwg.mxu0
    %2356 = vmatprep.subr.mxu0 0.0
    %2357 = vmatpush1.msra.mxu0 %v2065
    %2358 = vmatprep.subr.mxu0 0.0
    %2359 = vmatpush1.msra.mxu0 %v2066
    %2360 = vmatprep.subr.mxu0 0.0
    %2361 = vmatpush1.msra.mxu0 %v2067
    %2362 = vmatprep.subr.mxu0 0.0
    %2363 = vmatpush1.msra.mxu0 %v2068
    %2364 = vmatprep.subr.mxu0 0.0
    %2365 = vmatpush1.msra.mxu0 %v2069
    %2366 = vmatprep.subr.mxu0 0.0
    %2367 = vmatpush1.msra.mxu0 %v2070
    %2368 = vmatprep.subr.mxu0 0.0
    %2369 = vmatpush1.msra.mxu0 %v2071
    %2370 = vmatprep.subr.mxu0 0.0
    %2371 = vmatpush1.msra.mxu0 %v2072
    %2372 = vmatprep.subr.mxu0 0.0
    %2373 = vmatpush1.msra.mxu0 %v2073
    %2374 = vmatprep.subr.mxu0 0.0
    %2375 = vmatpush1.msra.mxu0 %v2074
    %2376 = vmatprep.subr.mxu0 0.0
    %2377 = vmatpush1.msra.mxu0 %v2075
    %2378 = vmatprep.subr.mxu0 0.0
    %2379 = vmatpush1.msra.mxu0 %v2076
    %2380 = vmatprep.subr.mxu0 0.0
    %2381 = vmatpush1.msra.mxu0 %v2077
    %2382 = vmatprep.subr.mxu0 0.0
    %2383 = vmatpush1.msra.mxu0 %v2078
    %2384 = vmatprep.subr.mxu0 0.0
    %2385 = vmatpush1.msra.mxu0 %v2079
    %2386 = vmatprep.subr.mxu0 0.0
    %2387 = vmatpush1.msra.mxu0 %v2080
    %2388 = vmatprep.subr.mxu0 0.0
    %2389 = vmatpush1.msra.mxu0 %v2081
    %2390 = vmatprep.subr.mxu0 0.0
    %2391 = vmatpush1.msra.mxu0 %v2082
    %2392 = vmatprep.subr.mxu0 0.0
    %2393 = vmatpush1.msra.mxu0 %v2083
    %2394 = vmatprep.subr.mxu0 0.0
    %2395 = vmatpush1.msra.mxu0 %v2084
    %2396 = vmatprep.subr.mxu0 0.0
    %2397 = vmatpush1.msra.mxu0 %v2085
    %2398 = vmatprep.subr.mxu0 0.0
    %2399 = vmatpush1.msra.mxu0 %v2086
    %2400 = vmatprep.subr.mxu0 0.0
    %2401 = vmatpush1.msra.mxu0 %v2087
    %2402 = vmatprep.subr.mxu0 0.0
    %2403 = vmatpush1.msra.mxu0 %v2088
    %2404 = vmatprep.subr.mxu0 0.0
    %2405 = vmatpush1.msra.mxu0 %v2089
    %2406 = vmatprep.subr.mxu0 0.0
    %2407 = vmatpush1.msra.mxu0 %v2090
    %2408 = vmatprep.subr.mxu0 0.0
    %2409 = vmatpush1.msra.mxu0 %v2091
    %2410 = vmatprep.subr.mxu0 0.0
    %2411 = vmatpush1.msra.mxu0 %v2092
    %2412 = vmatprep.subr.mxu0 0.0
    %2413 = vmatpush1.msra.mxu0 0.0
    %2414 = vmatprep.subr.mxu0 0.0
    %2415 = vmatpush1.msra.mxu0 0.0
    %2416 = vmatprep.subr.mxu0 0.0
    %2417 = vmatpush1.msra.mxu0 0.0
    %2418 = vmatprep.subr.mxu0 0.0
    %2419 = vmatpush1.msra.mxu0 0.0
    %2420 = vmatprep.mubr.f32.mxu0 %v2144
    %2421 = vmatmul.mubr.f32.gmra.mrb[0].mxu0 %v2133
    %v2422 = vpop.f32.mrb[0].mxu0
    %v2423 = vadd.f32 %v2353, %v2422
    %v2424 = vpop.f32.mrb[0].mxu0
    %2425 = vdwg.mxu0
    %v2426 = vld [vmem:[%s10] sm:$0x1]
    %v2427 = vld [vmem:[%s11] sm:$0x1]
    %vm2428 = vcmask 517120
    %v2429 = vsel %vm2428, %v2423, 0.0
    %2430 = vadd.xlane.f32.xlu0 %v2429
    %v2431 = vpop.xlane.xlu0 %2430
    %v2432 = vrcp.pop 64.0
    %v2433 = vmul.f32 %v2431, %v2432
    %v2434 = vsub.f32 %v2423, %v2433
    %v2435 = vmul.f32 %v2434, %v2434
    %v2436 = vsel %vm2428, %v2435, 0.0
    %2437 = vadd.xlane.f32.xlu0 %v2436
    %v2438 = vpop.xlane.xlu0 %2437
    %v2439 = vmul.f32 %v2438, %v2432
    %v2440 = vadd.f32 %v2439, 1e-05
    %v2441 = vrsqrt.pop %v2440
    %v2442 = vmul.f32 %v2434, %v2441
    %v2444 = vlaneseq
    %v2445 = vshrl.u32 %v2444, 7
    %v2446 = vsub.s32 0, %v2445
    %v2447 = vrot.slane %v2426, %v2446
    %v2449 = vmul.f32 %v2442, %v2447
    %v2451 = vlaneseq
    %v2452 = vshrl.u32 %v2451, 7
    %v2453 = vsub.s32 0, %v2452
    %v2454 = vrot.slane %v2427, %v2453
    %v2456 = vadd.f32 %v2449, %v2454
    %vm2457 = vcmp.ge.f32.partialorder %v2456, 0.0
    %v2458 = vmul.f32 %v2456, 0.01
    %v2459 = vsel %vm2457, %v2456, %v2458
    %v2460 = vld [vmem:[%s12] sm:$0xff]
    %v2461 = vld [vmem:[%s12 + $0x8] sm:$0xff]
    %v2462 = vld [vmem:[%s12 + $0x10] sm:$0xff]
    %v2463 = vld [vmem:[%s12 + $0x18] sm:$0xff]
    %v2464 = vld [vmem:[%s12 + $0x20] sm:$0xff]
    %v2465 = vld [vmem:[%s12 + $0x28] sm:$0xff]
    %v2466 = vld [vmem:[%s12 + $0x30] sm:$0xff]
    %v2467 = vld [vmem:[%s12 + $0x38] sm:$0xff]
    %v2468 = vld [vmem:[%s13] sm:$0x1]
    %v2470 = vlaneseq
    %v2471 = vshrl.u32 %v2470, 7
    %v2472 = vsub.s32 0, %v2471
    %v2473 = vrot.slane %v2468, %v2472
    %vm2475 = vcmask 523264
    %v2477 = vsel %vm2475, %v2459, 0
    %2479 = vmatprep.subr.mxu0 0.0
    %2480 = vmatpush1.msra.mxu0 %v2460
    %2481 = vmatprep.subr.mxu0 0.0
    %2482 = vmatpush1.msra.mxu0 %v2461
    %2483 = vmatprep.subr.mxu0 0.0
    %2484 = vmatpush1.msra.mxu0 %v2462
    %2485 = vmatprep.subr.mxu0 0.0
    %2486 = vmatpush1.msra.mxu0 %v2463
    %2487 = vmatprep.subr.mxu0 0.0
    %2488 = vmatpush1.msra.mxu0 %v2464
    %2489 = vmatprep.subr.mxu0 0.0
    %2490 = vmatpush1.msra.mxu0 %v2465
    %2491 = vmatprep.subr.mxu0 0.0
    %2492 = vmatpush1.msra.mxu0 %v2466
    %2493 = vmatprep.subr.mxu0 0.0
    %2494 = vmatpush1.msra.mxu0 %v2467
    %2495 = vmatprep.subr.mxu0 0.0
    %2496 = vmatpush1.msra.mxu0 0.0
    %2497 = vmatprep.subr.mxu0 0.0
    %2498 = vmatpush1.msra.mxu0 0.0
    %2499 = vmatprep.subr.mxu0 0.0
    %2500 = vmatpush1.msra.mxu0 0.0
    %2501 = vmatprep.subr.mxu0 0.0
    %2502 = vmatpush1.msra.mxu0 0.0
    %2503 = vmatprep.subr.mxu0 0.0
    %2504 = vmatpush1.msra.mxu0 0.0
    %2505 = vmatprep.subr.mxu0 0.0
    %2506 = vmatpush1.msra.mxu0 0.0
    %2507 = vmatprep.subr.mxu0 0.0
    %2508 = vmatpush1.msra.mxu0 0.0
    %2509 = vmatprep.subr.mxu0 0.0
    %2510 = vmatpush1.msra.mxu0 0.0
    %2511 = vmatprep.subr.mxu0 0.0
    %2512 = vmatpush1.msra.mxu0 0.0
    %2513 = vmatprep.subr.mxu0 0.0
    %2514 = vmatpush1.msra.mxu0 0.0
    %2515 = vmatprep.subr.mxu0 0.0
    %2516 = vmatpush1.msra.mxu0 0.0
    %2517 = vmatprep.subr.mxu0 0.0
    %2518 = vmatpush1.msra.mxu0 0.0
    %2519 = vmatprep.subr.mxu0 0.0
    %2520 = vmatpush1.msra.mxu0 0.0
    %2521 = vmatprep.subr.mxu0 0.0
    %2522 = vmatpush1.msra.mxu0 0.0
    %2523 = vmatprep.subr.mxu0 0.0
    %2524 = vmatpush1.msra.mxu0 0.0
    %2525 = vmatprep.subr.mxu0 0.0
    %2526 = vmatpush1.msra.mxu0 0.0
    %2527 = vmatprep.subr.mxu0 0.0
    %2528 = vmatpush1.msra.mxu0 0.0
    %2529 = vmatprep.subr.mxu0 0.0
    %2530 = vmatpush1.msra.mxu0 0.0
    %2531 = vmatprep.subr.mxu0 0.0
    %2532 = vmatpush1.msra.mxu0 0.0
    %2533 = vmatprep.subr.mxu0 0.0
    %2534 = vmatpush1.msra.mxu0 0.0
    %2535 = vmatprep.subr.mxu0 0.0
    %2536 = vmatpush1.msra.mxu0 0.0
    %2537 = vmatprep.subr.mxu0 0.0
    %2538 = vmatpush1.msra.mxu0 0.0
    %2539 = vmatprep.subr.mxu0 0.0
    %2540 = vmatpush1.msra.mxu0 0.0
    %2541 = vmatprep.subr.mxu0 0.0
    %2542 = vmatpush1.msra.mxu0 0.0
    %2543 = vmatprep.mubr.f32.mxu0 0.0
    %2544 = vmatmul.mubr.f32.gmra.mrb[0].mxu0 %v2477
    %v2545 = vpop.f32.mrb[0].mxu0
    %v2546 = vadd.f32 %v2473, %v2545
    %v2547 = vpop.f32.mrb[0].mxu0
    %2548 = vdwg.mxu0
    %v2549 = vld [vmem:[%s14] sm:$0x1]
    %v2550 = vld [vmem:[%s15] sm:$0x1]
    %v2551 = vsel %vm2428, %v2546, 0.0
    %2552 = vadd.xlane.f32.xlu0 %v2551
    %v2553 = vpop.xlane.xlu0 %2552
    %v2554 = vmul.f32 %v2553, %v2432
    %v2555 = vsub.f32 %v2546, %v2554
    %v2556 = vmul.f32 %v2555, %v2555
    %v2557 = vsel %vm2428, %v2556, 0.0
    %2558 = vadd.xlane.f32.xlu0 %v2557
    %v2559 = vpop.xlane.xlu0 %2558
    %v2560 = vmul.f32 %v2559, %v2432
    %v2561 = vadd.f32 %v2560, 1e-05
    %v2562 = vrsqrt.pop %v2561
    %v2563 = vmul.f32 %v2555, %v2562
    %v2565 = vlaneseq
    %v2566 = vshrl.u32 %v2565, 7
    %v2567 = vsub.s32 0, %v2566
    %v2568 = vrot.slane %v2549, %v2567
    %v2570 = vmul.f32 %v2563, %v2568
    %v2572 = vlaneseq
    %v2573 = vshrl.u32 %v2572, 7
    %v2574 = vsub.s32 0, %v2573
    %v2575 = vrot.slane %v2550, %v2574
    %v2577 = vadd.f32 %v2570, %v2575
    %vm2578 = vcmp.ge.f32.partialorder %v2577, 0.0
    %v2579 = vmul.f32 %v2577, 0.01
    %v2580 = vsel %vm2578, %v2577, %v2579
    %v2581 = vld [vmem:[%s16] sm:$0xff]
    %v2582 = vld [vmem:[%s16 + $0x8] sm:$0xff]
    %v2583 = vld [vmem:[%s16 + $0x10] sm:$0xff]
    %v2584 = vld [vmem:[%s16 + $0x18] sm:$0xff]
    %v2585 = vld [vmem:[%s16 + $0x20] sm:$0xff]
    %v2586 = vld [vmem:[%s16 + $0x28] sm:$0xff]
    %v2587 = vld [vmem:[%s16 + $0x30] sm:$0xff]
    %v2588 = vld [vmem:[%s16 + $0x38] sm:$0xff]
    %v2589 = vld [vmem:[%s17] sm:$0x1]
    %v2591 = vlaneseq
    %v2592 = vshrl.u32 %v2591, 7
    %v2593 = vsub.s32 0, %v2592
    %v2594 = vrot.slane %v2589, %v2593
    %v2597 = vsel %vm2475, %v2580, 0
    %2599 = vmatprep.subr.mxu0 0.0
    %2600 = vmatpush1.msra.mxu0 %v2581
    %2601 = vmatprep.subr.mxu0 0.0
    %2602 = vmatpush1.msra.mxu0 %v2582
    %2603 = vmatprep.subr.mxu0 0.0
    %2604 = vmatpush1.msra.mxu0 %v2583
    %2605 = vmatprep.subr.mxu0 0.0
    %2606 = vmatpush1.msra.mxu0 %v2584
    %2607 = vmatprep.subr.mxu0 0.0
    %2608 = vmatpush1.msra.mxu0 %v2585
    %2609 = vmatprep.subr.mxu0 0.0
    %2610 = vmatpush1.msra.mxu0 %v2586
    %2611 = vmatprep.subr.mxu0 0.0
    %2612 = vmatpush1.msra.mxu0 %v2587
    %2613 = vmatprep.subr.mxu0 0.0
    %2614 = vmatpush1.msra.mxu0 %v2588
    %2615 = vmatprep.subr.mxu0 0.0
    %2616 = vmatpush1.msra.mxu0 0.0
    %2617 = vmatprep.subr.mxu0 0.0
    %2618 = vmatpush1.msra.mxu0 0.0
    %2619 = vmatprep.subr.mxu0 0.0
    %2620 = vmatpush1.msra.mxu0 0.0
    %2621 = vmatprep.subr.mxu0 0.0
    %2622 = vmatpush1.msra.mxu0 0.0
    %2623 = vmatprep.subr.mxu0 0.0
    %2624 = vmatpush1.msra.mxu0 0.0
    %2625 = vmatprep.subr.mxu0 0.0
    %2626 = vmatpush1.msra.mxu0 0.0
    %2627 = vmatprep.subr.mxu0 0.0
    %2628 = vmatpush1.msra.mxu0 0.0
    %2629 = vmatprep.subr.mxu0 0.0
    %2630 = vmatpush1.msra.mxu0 0.0
    %2631 = vmatprep.subr.mxu0 0.0
    %2632 = vmatpush1.msra.mxu0 0.0
    %2633 = vmatprep.subr.mxu0 0.0
    %2634 = vmatpush1.msra.mxu0 0.0
    %2635 = vmatprep.subr.mxu0 0.0
    %2636 = vmatpush1.msra.mxu0 0.0
    %2637 = vmatprep.subr.mxu0 0.0
    %2638 = vmatpush1.msra.mxu0 0.0
    %2639 = vmatprep.subr.mxu0 0.0
    %2640 = vmatpush1.msra.mxu0 0.0
    %2641 = vmatprep.subr.mxu0 0.0
    %2642 = vmatpush1.msra.mxu0 0.0
    %2643 = vmatprep.subr.mxu0 0.0
    %2644 = vmatpush1.msra.mxu0 0.0
    %2645 = vmatprep.subr.mxu0 0.0
    %2646 = vmatpush1.msra.mxu0 0.0
    %2647 = vmatprep.subr.mxu0 0.0
    %2648 = vmatpush1.msra.mxu0 0.0
    %2649 = vmatprep.subr.mxu0 0.0
    %2650 = vmatpush1.msra.mxu0 0.0
    %2651 = vmatprep.subr.mxu0 0.0
    %2652 = vmatpush1.msra.mxu0 0.0
    %2653 = vmatprep.subr.mxu0 0.0
    %2654 = vmatpush1.msra.mxu0 0.0
    %2655 = vmatprep.subr.mxu0 0.0
    %2656 = vmatpush1.msra.mxu0 0.0
    %2657 = vmatprep.subr.mxu0 0.0
    %2658 = vmatpush1.msra.mxu0 0.0
    %2659 = vmatprep.subr.mxu0 0.0
    %2660 = vmatpush1.msra.mxu0 0.0
    %2661 = vmatprep.subr.mxu0 0.0
    %2662 = vmatpush1.msra.mxu0 0.0
    %2663 = vmatprep.mubr.f32.mxu0 0.0
    %2664 = vmatmul.mubr.f32.gmra.mrb[0].mxu0 %v2597
    %v2665 = vpop.f32.mrb[0].mxu0
    %v2666 = vadd.f32 %v2594, %v2665
    %v2667 = vpop.f32.mrb[0].mxu0
    %2668 = vdwg.mxu0
    %vm2669 = vcmask 74752
    %2670 = vst.msk [vmem:[#allocation5] sm:$0x3] %vm2669, %v2666
    // Predicated region
    $region74: #{sincnet_forward.1} parent=1 // pred_check
      _
    $region75: #{sincnet_forward.1} parent=1 // pred_check_branch
      %2672 = sbr.rel (0) target = $region77
    $region76: #{sincnet_forward.1} parent=1 // pred_region
      %s2674 = ssub.s32 32, 32
      %2675 = vsyncadd [#allocation6], %s2674
      %s2677 = sshll.u32 [#allocation5], 4
      %s2678 = int_to_ptr.vmem [resolvable:$true] %s2677
      %2680 = dma.vmem_to_hbm [thread:$0]  %s2678, 32, %s18, [#allocation6]
    $region77: #{sincnet_forward.1} parent=1 // pred_fallthru
      _
    // Predicated region
    $region78: #{sincnet_forward.1} parent=1 // pred_check
      _
    $region79: #{sincnet_forward.1} parent=1 // pred_check_branch
      %2682 = sbr.rel (0) target = $region81
    $region80: #{sincnet_forward.1} parent=1 // pred_region
      %2683 = dma.done [#allocation6], 32
    $region81: #{sincnet_forward.1} parent=1 // pred_fallthru
      _
    %2684 = vsyncpa [#allocation6], 1

</llo_original>
